<compile_context>
chip_gen: v7x
topology: tpu7x:2x2x1
jax: 0.10.0
libtpu: 0.0.40
codegen_flags: <defaults>
</compile_context>

<pallas_src>
import math
from functools import partial

import numpy as np
import jax
import jax.numpy as jnp
from jax import lax
from jax.experimental import pallas as pl
from jax.experimental.pallas import tpu as pltpu


# Geometry implied by Net (fc1 = Linear(16*5*5, 120)  =>  32x32 inputs).
H_IN = 32
C_IN = 3
K = 5
C1 = 6                      # conv1 out channels
C2 = 16                     # conv2 out channels
OH1 = H_IN - K + 1          # 28  conv1 output H/W
PH1 = OH1 // 2              # 14  pooled conv1 H/W
OH2 = PH1 - K + 1           # 10  conv2 output H/W
PH2 = OH2 // 2              # 5   pooled conv2 H/W
F1, F2, F3 = 120, 84, 2


# ----------------------------------------------------------------------------
# Host-side constant helpers (tiny, built once)
# ----------------------------------------------------------------------------
def _pool_selectors(n_in, c):
    """Selection matrices for 2x2/2 max pooling of a (n_in, n_in*c) activation.

    rows : (2, n_in//2, n_in)        -- left-multiply picks even / odd rows.
    lanes: (2, n_in*c, (n_in//2)*c)  -- right-multiply picks even / odd column
                                         groups of width c.
    """
    n_out = n_in // 2
    e = np.zeros((n_in, n_out), np.float32)
    o = np.zeros((n_in, n_out), np.float32)
    e[2 * np.arange(n_out), np.arange(n_out)] = 1.0
    o[2 * np.arange(n_out) + 1, np.arange(n_out)] = 1.0
    rows = np.stack([e.T, o.T])
    eye_c = np.eye(c, dtype=np.float32)
    lanes = np.stack([np.kron(e, eye_c), np.kron(o, eye_c)])
    return rows, lanes


_POOL1_ROWS, _POOL1_LANES = _pool_selectors(OH1, C1)   # (2,14,28), (2,168,84)
_POOL2_ROWS, _POOL2_LANES = _pool_selectors(OH2, C2)   # (2,5,10),  (2,160,80)


def _conv_toeplitz(w, in_w, out_w):
    """Block-Toeplitz matrices for a VALID KxK conv on (H, W*Cin) rows.

    w: (cout, cin, K, K).  Returns (K, in_w*cin, out_w*cout); summing
    dot(x[kh:kh+out_h, :], T[kh]) over kh gives the conv output laid out as
    (y, x*cout + cout_idx).
    """
    cout, cin, kk, _ = w.shape
    mats = []
    for kh in range(kk):
        t = jnp.zeros((in_w * cin, out_w * cout), jnp.float32)
        for kw in range(kk):
            sel = jnp.eye(in_w, out_w, k=-kw, dtype=jnp.float32)   # sel[x+kw, x]=1
            t = t + jnp.kron(sel, w[:, :, kh, kw].T.astype(jnp.float32))
        mats.append(t)
    return jnp.stack(mats)


# ----------------------------------------------------------------------------
# Fused whole-network kernel (block_b samples per grid step)
# ----------------------------------------------------------------------------
def net_kernel(x_ref, t1_ref, b1t_ref, t2_ref, b2t_ref,
               rows1_ref, lanes1_ref, rows2_ref, lanes2_ref,
               f1w_ref, f1b_ref, f2w_ref, f2b_ref, f3w_ref, f3b_ref,
               out_ref, feats_ref, *, block_b):
    f32 = jnp.float32
    dot = lambda a, b: jnp.dot(a, b, preferred_element_type=f32)

    b1t = b1t_ref[...]                     # (1, 168)
    b2t = b2t_ref[...]                     # (1, 160)
    s1e, s1o = rows1_ref[0], rows1_ref[1]  # (14, 28)
    r1e, r1o = lanes1_ref[0], lanes1_ref[1]  # (168, 84)
    s2e, s2o = rows2_ref[0], rows2_ref[1]  # (5, 10)
    r2e, r2o = lanes2_ref[0], lanes2_ref[1]  # (160, 80)

    for b in range(block_b):
        xv = x_ref[b]                                        # (32, 96) = (h, w*3+c)

        # ---- conv1: 5 block-Toeplitz matmuls (K packed to 96) + bias + ReLU --
        a = dot(xv[0:OH1, :], t1_ref[0])
        for kh in range(1, K):
            a = a + dot(xv[kh:kh + OH1, :], t1_ref[kh])
        a = jnp.maximum(a + b1t, 0.0)                        # (28, 168) = (y, x*6+c)

        # ---- 2x2/2 max pool via selection matmuls (no stores / strided reads)
        vm = jnp.maximum(dot(s1e, a), dot(s1o, a))           # (14, 168)
        y1 = jnp.maximum(dot(vm, r1e), dot(vm, r1o))         # (14, 84) = (y, x*6+c)

        # ---- conv2: same scheme (K packed to 84) ----------------------------
        a2 = dot(y1[0:OH2, :], t2_ref[0])
        for kh in range(1, K):
            a2 = a2 + dot(y1[kh:kh + OH2, :], t2_ref[kh])
        a2 = jnp.maximum(a2 + b2t, 0.0)                      # (10, 160)
        vm2 = jnp.maximum(dot(s2e, a2), dot(s2o, a2))        # (5, 160)
        y2 = jnp.maximum(dot(vm2, r2e), dot(vm2, r2o))       # (5, 80) = (h, w*16+c)

        # ---- flatten (h, w, c) into the batched feature row ------------------
        for h in range(PH2):
            feats_ref[b:b + 1, h * PH2 * C2:(h + 1) * PH2 * C2] = y2[h:h + 1, :]

    # ---- fully-connected head, batched over the whole block -----------------
    f = feats_ref[...]                                       # (B, 400)
    h1 = jnp.maximum(dot(f, f1w_ref[...]) + f1b_ref[...], 0.0)   # (B, 120)
    h2 = jnp.maximum(dot(h1, f2w_ref[...]) + f2b_ref[...], 0.0)  # (B, 84)
    out_ref[...] = dot(h2, f3w_ref[...]) + f3b_ref[...]          # (B, 2)


def _const_spec(shape):
    nd = len(shape)
    return pl.BlockSpec(tuple(shape), lambda i, _nd=nd: (0,) * _nd)


# ----------------------------------------------------------------------------
# Wrapper: one-time weight re-layout (tiny) + single pallas_call
# ----------------------------------------------------------------------------
@jax.jit
def net_forward(x, params):
    (c1w, c1b, c2w, c2b, f1w, f1b, f2w, f2b, f3w, f3b) = params
    n = x.shape[0]
    block_b = max(1, min(8, (n + 1) // 2))     # >= 2 grid steps when n >= 2 (v7x)
    pad = (-n) % block_b
    n_pad = n + pad
    grid_n = n_pad // block_b

    # NCHW -> (N, H, W*C): each image row becomes one 96-lane vector.
    xr = jnp.transpose(x, (0, 2, 3, 1)).reshape(n, H_IN, H_IN * C_IN)
    xr = xr.astype(jnp.float32)
    if pad:
        xr = jnp.concatenate(
            [xr, jnp.zeros((pad, H_IN, H_IN * C_IN), jnp.float32)], axis=0)

    # Conv weights -> block-Toeplitz matrices; biases tiled over output width.
    t1 = _conv_toeplitz(c1w, H_IN, OH1)                      # (5, 96, 168)
    t2 = _conv_toeplitz(c2w, PH1, OH2)                       # (5, 84, 160)
    b1t = jnp.tile(c1b, OH1).reshape(1, OH1 * C1)            # (1, 168)
    b2t = jnp.tile(c2b, OH2).reshape(1, OH2 * C2)            # (1, 160)
    # fc1 rows: PyTorch flatten order (c, h, w) -> kernel order (h, w, c).
    f1wp = (f1w.reshape(C2, PH2, PH2, F1)
                .transpose(1, 2, 0, 3)
                .reshape(PH2 * PH2 * C2, F1))                # (400, 120)

    rows1 = jnp.asarray(_POOL1_ROWS)
    lanes1 = jnp.asarray(_POOL1_LANES)
    rows2 = jnp.asarray(_POOL2_ROWS)
    lanes2 = jnp.asarray(_POOL2_LANES)

    out = pl.pallas_call(
        partial(net_kernel, block_b=block_b),
        out_shape=jax.ShapeDtypeStruct((grid_n, block_b, F3), jnp.float32),
        grid=(grid_n,),
        in_specs=[
            pl.BlockSpec((block_b, H_IN, H_IN * C_IN), lambda i: (i, 0, 0)),
            _const_spec(t1.shape), _const_spec(b1t.shape),
            _const_spec(t2.shape), _const_spec(b2t.shape),
            _const_spec(rows1.shape), _const_spec(lanes1.shape),
            _const_spec(rows2.shape), _const_spec(lanes2.shape),
            _const_spec(f1wp.shape), _const_spec((1, F1)),
            _const_spec((F1, F2)), _const_spec((1, F2)),
            _const_spec((F2, F3)), _const_spec((1, F3)),
        ],
        out_specs=pl.BlockSpec((None, block_b, F3), lambda i: (i, 0, 0)),
        scratch_shapes=[pltpu.VMEM((block_b, PH2 * PH2 * C2), jnp.float32)],
        compiler_params=pltpu.CompilerParams(
            dimension_semantics=("parallel",)),              # batch across TCs
    )(xr, t1, b1t, t2, b2t, rows1, lanes1, rows2, lanes2,
      f1wp, f1b.reshape(1, F1), f2w, f2b.reshape(1, F2),
      f3w, f3b.reshape(1, F3))
    return out.reshape(n_pad, F3)[:n]


# ----------------------------------------------------------------------------
# Deterministic parameter init + pure-JAX reference for a sanity check
# ----------------------------------------------------------------------------
def init_params(key):
    ks = jax.random.split(key, 10)

    def u(k, shape, fan_in):
        b = 1.0 / math.sqrt(fan_in)
        return jax.random.uniform(k, shape, jnp.float32, -b, b)

    return (
        u(ks[0], (C1, C_IN, K, K), C_IN * K * K), u(ks[1], (C1,), C_IN * K * K),
        u(ks[2], (C2, C1, K, K), C1 * K * K), u(ks[3], (C2,), C1 * K * K),
        u(ks[4], (C2 * PH2 * PH2, F1), C2 * PH2 * PH2),
        u(ks[5], (F1,), C2 * PH2 * PH2),
        u(ks[6], (F1, F2), F1), u(ks[7], (F2,), F1),
        u(ks[8], (F2, F3), F2), u(ks[9], (F3,), F2),
    )


def ref_forward(x, params):
    (c1w, c1b, c2w, c2b, f1w, f1b, f2w, f2b, f3w, f3b) = params

    def conv(x, w, b):
        y = lax.conv_general_dilated(
            x, w, (1, 1), "VALID", dimension_numbers=("NCHW", "OIHW", "NCHW"))
        return y + b[None, :, None, None]

    def pool(x):
        return lax.reduce_window(
            x, -jnp.inf, lax.max, (1, 1, 2, 2), (1, 1, 2, 2), "VALID")

    x = pool(jax.nn.relu(conv(x, c1w, c1b)))
    x = pool(jax.nn.relu(conv(x, c2w, c2b)))
    x = x.reshape(x.shape[0], -1)
    x = jax.nn.relu(x @ f1w + f1b)
    x = jax.nn.relu(x @ f2w + f2b)
    return x @ f3w + f3b


if __name__ == "__main__":
    key = jax.random.PRNGKey(0)
    pkey, xkey = jax.random.split(key)
    params = init_params(pkey)
    # Net's fc1 implies 32x32 spatial inputs (LeNet-on-CIFAR geometry).
    # batch=4 -> block_b=2, grid=2: exercises both the batched-fc path and
    # multi-step grid parallelism.
    x = jax.random.normal(xkey, (4, 3, 32, 32), jnp.float32)

    out = jax.block_until_ready(net_forward(x, params))
    ref = jax.block_until_ready(ref_forward(x, params))
    assert out.shape == (4, 2), out.shape
    assert jnp.allclose(out, ref, rtol=1e-3, atol=1e-3), (out, ref)

    print("KERNEL_OK")
</pallas_src>

<mosaic_0001>
module attributes {stable_mosaic.version = 11 : i64} {
  func.func @net_kernel(%arg0: i32, %arg1: memref<2x32x96xf32, #tpu.memory_space<vmem>>, %arg2: memref<5x96x168xf32, #tpu.memory_space<vmem>>, %arg3: memref<1x168xf32, #tpu.memory_space<vmem>>, %arg4: memref<5x84x160xf32, #tpu.memory_space<vmem>>, %arg5: memref<1x160xf32, #tpu.memory_space<vmem>>, %arg6: memref<2x14x28xf32, #tpu.memory_space<vmem>>, %arg7: memref<2x168x84xf32, #tpu.memory_space<vmem>>, %arg8: memref<2x5x10xf32, #tpu.memory_space<vmem>>, %arg9: memref<2x160x80xf32, #tpu.memory_space<vmem>>, %arg10: memref<400x120xf32, #tpu.memory_space<vmem>>, %arg11: memref<1x120xf32, #tpu.memory_space<vmem>>, %arg12: memref<120x84xf32, #tpu.memory_space<vmem>>, %arg13: memref<1x84xf32, #tpu.memory_space<vmem>>, %arg14: memref<84x2xf32, #tpu.memory_space<vmem>>, %arg15: memref<1x2xf32, #tpu.memory_space<vmem>>, %arg16: memref<1x2x2xf32, #tpu.memory_space<vmem>>, %arg17: memref<2x400xf32, #tpu.memory_space<vmem>>) attributes {dimension_semantics = [#tpu.dimension_semantics<parallel>], iteration_bounds = array<i64: 2>, scalar_prefetch = 0 : i64, scratch_operands = 1 : i64, tpu.core_type = #tpu.core_type<tc>, window_params = [{transform_indices = @transform_0, window_bounds = array<i64: 2, 32, 96>}, {pipeline_mode = #tpu.pipeline_mode<synchronous>, transform_indices = @transform_1, window_bounds = array<i64: 5, 96, 168>}, {pipeline_mode = #tpu.pipeline_mode<synchronous>, transform_indices = @transform_2, window_bounds = array<i64: 1, 168>}, {pipeline_mode = #tpu.pipeline_mode<synchronous>, transform_indices = @transform_3, window_bounds = array<i64: 5, 84, 160>}, {pipeline_mode = #tpu.pipeline_mode<synchronous>, transform_indices = @transform_4, window_bounds = array<i64: 1, 160>}, {pipeline_mode = #tpu.pipeline_mode<synchronous>, transform_indices = @transform_5, window_bounds = array<i64: 2, 14, 28>}, {pipeline_mode = #tpu.pipeline_mode<synchronous>, transform_indices = @transform_6, window_bounds = array<i64: 2, 168, 84>}, {pipeline_mode = #tpu.pipeline_mode<synchronous>, transform_indices = @transform_7, window_bounds = array<i64: 2, 5, 10>}, {pipeline_mode = #tpu.pipeline_mode<synchronous>, transform_indices = @transform_8, window_bounds = array<i64: 2, 160, 80>}, {pipeline_mode = #tpu.pipeline_mode<synchronous>, transform_indices = @transform_9, window_bounds = array<i64: 400, 120>}, {pipeline_mode = #tpu.pipeline_mode<synchronous>, transform_indices = @transform_10, window_bounds = array<i64: 1, 120>}, {pipeline_mode = #tpu.pipeline_mode<synchronous>, transform_indices = @transform_11, window_bounds = array<i64: 120, 84>}, {pipeline_mode = #tpu.pipeline_mode<synchronous>, transform_indices = @transform_12, window_bounds = array<i64: 1, 84>}, {pipeline_mode = #tpu.pipeline_mode<synchronous>, transform_indices = @transform_13, window_bounds = array<i64: 84, 2>}, {pipeline_mode = #tpu.pipeline_mode<synchronous>, transform_indices = @transform_14, window_bounds = array<i64: 1, 2>}, {transform_indices = @transform_15, window_bounds = array<i64: 1, 2, 2>}]} {
    %c0 = arith.constant 0 : index
    %c0_0 = arith.constant 0 : index
    %0 = vector.load %arg3[%c0, %c0_0] : memref<1x168xf32, #tpu.memory_space<vmem>>, vector<1x168xf32>
    %c0_1 = arith.constant 0 : index
    %c0_2 = arith.constant 0 : index
    %1 = vector.load %arg5[%c0_1, %c0_2] : memref<1x160xf32, #tpu.memory_space<vmem>>, vector<1x160xf32>
    %c0_3 = arith.constant 0 : index
    %c0_4 = arith.constant 0 : index
    %c0_5 = arith.constant 0 : index
    %2 = vector.load %arg6[%c0_3, %c0_4, %c0_5] : memref<2x14x28xf32, #tpu.memory_space<vmem>>, vector<1x14x28xf32>
    %3 = vector.shape_cast %2 : vector<1x14x28xf32> to vector<14x28xf32>
    %c1 = arith.constant 1 : index
    %c0_6 = arith.constant 0 : index
    %c0_7 = arith.constant 0 : index
    %4 = vector.load %arg6[%c1, %c0_6, %c0_7] : memref<2x14x28xf32, #tpu.memory_space<vmem>>, vector<1x14x28xf32>
    %5 = vector.shape_cast %4 : vector<1x14x28xf32> to vector<14x28xf32>
    %c0_8 = arith.constant 0 : index
    %c0_9 = arith.constant 0 : index
    %c0_10 = arith.constant 0 : index
    %6 = vector.load %arg7[%c0_8, %c0_9, %c0_10] : memref<2x168x84xf32, #tpu.memory_space<vmem>>, vector<1x168x84xf32>
    %7 = vector.shape_cast %6 : vector<1x168x84xf32> to vector<168x84xf32>
    %c1_11 = arith.constant 1 : index
    %c0_12 = arith.constant 0 : index
    %c0_13 = arith.constant 0 : index
    %8 = vector.load %arg7[%c1_11, %c0_12, %c0_13] : memref<2x168x84xf32, #tpu.memory_space<vmem>>, vector<1x168x84xf32>
    %9 = vector.shape_cast %8 : vector<1x168x84xf32> to vector<168x84xf32>
    %c0_14 = arith.constant 0 : index
    %c0_15 = arith.constant 0 : index
    %c0_16 = arith.constant 0 : index
    %10 = vector.load %arg8[%c0_14, %c0_15, %c0_16] : memref<2x5x10xf32, #tpu.memory_space<vmem>>, vector<1x5x10xf32>
    %11 = vector.shape_cast %10 : vector<1x5x10xf32> to vector<5x10xf32>
    %c1_17 = arith.constant 1 : index
    %c0_18 = arith.constant 0 : index
    %c0_19 = arith.constant 0 : index
    %12 = vector.load %arg8[%c1_17, %c0_18, %c0_19] : memref<2x5x10xf32, #tpu.memory_space<vmem>>, vector<1x5x10xf32>
    %13 = vector.shape_cast %12 : vector<1x5x10xf32> to vector<5x10xf32>
    %c0_20 = arith.constant 0 : index
    %c0_21 = arith.constant 0 : index
    %c0_22 = arith.constant 0 : index
    %14 = vector.load %arg9[%c0_20, %c0_21, %c0_22] : memref<2x160x80xf32, #tpu.memory_space<vmem>>, vector<1x160x80xf32>
    %15 = vector.shape_cast %14 : vector<1x160x80xf32> to vector<160x80xf32>
    %c1_23 = arith.constant 1 : index
    %c0_24 = arith.constant 0 : index
    %c0_25 = arith.constant 0 : index
    %16 = vector.load %arg9[%c1_23, %c0_24, %c0_25] : memref<2x160x80xf32, #tpu.memory_space<vmem>>, vector<1x160x80xf32>
    %17 = vector.shape_cast %16 : vector<1x160x80xf32> to vector<160x80xf32>
    %c0_26 = arith.constant 0 : index
    %c0_27 = arith.constant 0 : index
    %c0_28 = arith.constant 0 : index
    %18 = vector.load %arg1[%c0_26, %c0_27, %c0_28] : memref<2x32x96xf32, #tpu.memory_space<vmem>>, vector<1x32x96xf32>
    %19 = vector.shape_cast %18 : vector<1x32x96xf32> to vector<32x96xf32>
    %20 = vector.extract_strided_slice %19 {offsets = [0, 0], sizes = [28, 96], strides = [1, 1]} : vector<32x96xf32> to vector<28x96xf32>
    %c0_29 = arith.constant 0 : index
    %c0_30 = arith.constant 0 : index
    %c0_31 = arith.constant 0 : index
    %21 = vector.load %arg2[%c0_29, %c0_30, %c0_31] : memref<5x96x168xf32, #tpu.memory_space<vmem>>, vector<1x96x168xf32>
    %22 = vector.shape_cast %21 : vector<1x96x168xf32> to vector<96x168xf32>
    %cst = arith.constant dense<0.000000e+00> : vector<28x168xf32>
    %23 = tpu.matmul %20, %22, %cst {dimension_numbers = #tpu.dot_dimension_numbers<[1], [0], [0], [1], [0, 0, 1, 1], [], []>} : vector<28x96xf32>, vector<96x168xf32>, vector<28x168xf32> -> vector<28x168xf32>
    %24 = vector.extract_strided_slice %19 {offsets = [1, 0], sizes = [28, 96], strides = [1, 1]} : vector<32x96xf32> to vector<28x96xf32>
    %c1_32 = arith.constant 1 : index
    %c0_33 = arith.constant 0 : index
    %c0_34 = arith.constant 0 : index
    %25 = vector.load %arg2[%c1_32, %c0_33, %c0_34] : memref<5x96x168xf32, #tpu.memory_space<vmem>>, vector<1x96x168xf32>
    %26 = vector.shape_cast %25 : vector<1x96x168xf32> to vector<96x168xf32>
    %cst_35 = arith.constant dense<0.000000e+00> : vector<28x168xf32>
    %27 = tpu.matmul %24, %26, %cst_35 {dimension_numbers = #tpu.dot_dimension_numbers<[1], [0], [0], [1], [0, 0, 1, 1], [], []>} : vector<28x96xf32>, vector<96x168xf32>, vector<28x168xf32> -> vector<28x168xf32>
    %28 = arith.addf %23, %27 : vector<28x168xf32>
    %29 = vector.extract_strided_slice %19 {offsets = [2, 0], sizes = [28, 96], strides = [1, 1]} : vector<32x96xf32> to vector<28x96xf32>
    %c2 = arith.constant 2 : index
    %c0_36 = arith.constant 0 : index
    %c0_37 = arith.constant 0 : index
    %30 = vector.load %arg2[%c2, %c0_36, %c0_37] : memref<5x96x168xf32, #tpu.memory_space<vmem>>, vector<1x96x168xf32>
    %31 = vector.shape_cast %30 : vector<1x96x168xf32> to vector<96x168xf32>
    %cst_38 = arith.constant dense<0.000000e+00> : vector<28x168xf32>
    %32 = tpu.matmul %29, %31, %cst_38 {dimension_numbers = #tpu.dot_dimension_numbers<[1], [0], [0], [1], [0, 0, 1, 1], [], []>} : vector<28x96xf32>, vector<96x168xf32>, vector<28x168xf32> -> vector<28x168xf32>
    %33 = arith.addf %28, %32 : vector<28x168xf32>
    %34 = vector.extract_strided_slice %19 {offsets = [3, 0], sizes = [28, 96], strides = [1, 1]} : vector<32x96xf32> to vector<28x96xf32>
    %c3 = arith.constant 3 : index
    %c0_39 = arith.constant 0 : index
    %c0_40 = arith.constant 0 : index
    %35 = vector.load %arg2[%c3, %c0_39, %c0_40] : memref<5x96x168xf32, #tpu.memory_space<vmem>>, vector<1x96x168xf32>
    %36 = vector.shape_cast %35 : vector<1x96x168xf32> to vector<96x168xf32>
    %cst_41 = arith.constant dense<0.000000e+00> : vector<28x168xf32>
    %37 = tpu.matmul %34, %36, %cst_41 {dimension_numbers = #tpu.dot_dimension_numbers<[1], [0], [0], [1], [0, 0, 1, 1], [], []>} : vector<28x96xf32>, vector<96x168xf32>, vector<28x168xf32> -> vector<28x168xf32>
    %38 = arith.addf %33, %37 : vector<28x168xf32>
    %39 = vector.extract_strided_slice %19 {offsets = [4, 0], sizes = [28, 96], strides = [1, 1]} : vector<32x96xf32> to vector<28x96xf32>
    %c4 = arith.constant 4 : index
    %c0_42 = arith.constant 0 : index
    %c0_43 = arith.constant 0 : index
    %40 = vector.load %arg2[%c4, %c0_42, %c0_43] : memref<5x96x168xf32, #tpu.memory_space<vmem>>, vector<1x96x168xf32>
    %41 = vector.shape_cast %40 : vector<1x96x168xf32> to vector<96x168xf32>
    %cst_44 = arith.constant dense<0.000000e+00> : vector<28x168xf32>
    %42 = tpu.matmul %39, %41, %cst_44 {dimension_numbers = #tpu.dot_dimension_numbers<[1], [0], [0], [1], [0, 0, 1, 1], [], []>} : vector<28x96xf32>, vector<96x168xf32>, vector<28x168xf32> -> vector<28x168xf32>
    %43 = arith.addf %38, %42 : vector<28x168xf32>
    %44 = vector.broadcast %0 : vector<1x168xf32> to vector<28x168xf32>
    %45 = arith.addf %43, %44 : vector<28x168xf32>
    %cst_45 = arith.constant 0.000000e+00 : f32
    %46 = vector.broadcast %cst_45 : f32 to vector<28x168xf32>
    %47 = arith.maximumf %45, %46 : vector<28x168xf32>
    %cst_46 = arith.constant dense<0.000000e+00> : vector<14x168xf32>
    %48 = tpu.matmul %3, %47, %cst_46 {dimension_numbers = #tpu.dot_dimension_numbers<[1], [0], [0], [1], [0, 0, 1, 1], [], []>} : vector<14x28xf32>, vector<28x168xf32>, vector<14x168xf32> -> vector<14x168xf32>
    %cst_47 = arith.constant dense<0.000000e+00> : vector<14x168xf32>
    %49 = tpu.matmul %5, %47, %cst_47 {dimension_numbers = #tpu.dot_dimension_numbers<[1], [0], [0], [1], [0, 0, 1, 1], [], []>} : vector<14x28xf32>, vector<28x168xf32>, vector<14x168xf32> -> vector<14x168xf32>
    %50 = arith.maximumf %48, %49 : vector<14x168xf32>
    %cst_48 = arith.constant dense<0.000000e+00> : vector<14x84xf32>
    %51 = tpu.matmul %50, %7, %cst_48 {dimension_numbers = #tpu.dot_dimension_numbers<[1], [0], [0], [1], [0, 0, 1, 1], [], []>} : vector<14x168xf32>, vector<168x84xf32>, vector<14x84xf32> -> vector<14x84xf32>
    %cst_49 = arith.constant dense<0.000000e+00> : vector<14x84xf32>
    %52 = tpu.matmul %50, %9, %cst_49 {dimension_numbers = #tpu.dot_dimension_numbers<[1], [0], [0], [1], [0, 0, 1, 1], [], []>} : vector<14x168xf32>, vector<168x84xf32>, vector<14x84xf32> -> vector<14x84xf32>
    %53 = arith.maximumf %51, %52 : vector<14x84xf32>
    %54 = vector.extract_strided_slice %53 {offsets = [0, 0], sizes = [10, 84], strides = [1, 1]} : vector<14x84xf32> to vector<10x84xf32>
    %c0_50 = arith.constant 0 : index
    %c0_51 = arith.constant 0 : index
    %c0_52 = arith.constant 0 : index
    %55 = vector.load %arg4[%c0_50, %c0_51, %c0_52] : memref<5x84x160xf32, #tpu.memory_space<vmem>>, vector<1x84x160xf32>
    %56 = vector.shape_cast %55 : vector<1x84x160xf32> to vector<84x160xf32>
    %cst_53 = arith.constant dense<0.000000e+00> : vector<10x160xf32>
    %57 = tpu.matmul %54, %56, %cst_53 {dimension_numbers = #tpu.dot_dimension_numbers<[1], [0], [0], [1], [0, 0, 1, 1], [], []>} : vector<10x84xf32>, vector<84x160xf32>, vector<10x160xf32> -> vector<10x160xf32>
    %58 = vector.extract_strided_slice %53 {offsets = [1, 0], sizes = [10, 84], strides = [1, 1]} : vector<14x84xf32> to vector<10x84xf32>
    %c1_54 = arith.constant 1 : index
    %c0_55 = arith.constant 0 : index
    %c0_56 = arith.constant 0 : index
    %59 = vector.load %arg4[%c1_54, %c0_55, %c0_56] : memref<5x84x160xf32, #tpu.memory_space<vmem>>, vector<1x84x160xf32>
    %60 = vector.shape_cast %59 : vector<1x84x160xf32> to vector<84x160xf32>
    %cst_57 = arith.constant dense<0.000000e+00> : vector<10x160xf32>
    %61 = tpu.matmul %58, %60, %cst_57 {dimension_numbers = #tpu.dot_dimension_numbers<[1], [0], [0], [1], [0, 0, 1, 1], [], []>} : vector<10x84xf32>, vector<84x160xf32>, vector<10x160xf32> -> vector<10x160xf32>
    %62 = arith.addf %57, %61 : vector<10x160xf32>
    %63 = vector.extract_strided_slice %53 {offsets = [2, 0], sizes = [10, 84], strides = [1, 1]} : vector<14x84xf32> to vector<10x84xf32>
    %c2_58 = arith.constant 2 : index
    %c0_59 = arith.constant 0 : index
    %c0_60 = arith.constant 0 : index
    %64 = vector.load %arg4[%c2_58, %c0_59, %c0_60] : memref<5x84x160xf32, #tpu.memory_space<vmem>>, vector<1x84x160xf32>
    %65 = vector.shape_cast %64 : vector<1x84x160xf32> to vector<84x160xf32>
    %cst_61 = arith.constant dense<0.000000e+00> : vector<10x160xf32>
    %66 = tpu.matmul %63, %65, %cst_61 {dimension_numbers = #tpu.dot_dimension_numbers<[1], [0], [0], [1], [0, 0, 1, 1], [], []>} : vector<10x84xf32>, vector<84x160xf32>, vector<10x160xf32> -> vector<10x160xf32>
    %67 = arith.addf %62, %66 : vector<10x160xf32>
    %68 = vector.extract_strided_slice %53 {offsets = [3, 0], sizes = [10, 84], strides = [1, 1]} : vector<14x84xf32> to vector<10x84xf32>
    %c3_62 = arith.constant 3 : index
    %c0_63 = arith.constant 0 : index
    %c0_64 = arith.constant 0 : index
    %69 = vector.load %arg4[%c3_62, %c0_63, %c0_64] : memref<5x84x160xf32, #tpu.memory_space<vmem>>, vector<1x84x160xf32>
    %70 = vector.shape_cast %69 : vector<1x84x160xf32> to vector<84x160xf32>
    %cst_65 = arith.constant dense<0.000000e+00> : vector<10x160xf32>
    %71 = tpu.matmul %68, %70, %cst_65 {dimension_numbers = #tpu.dot_dimension_numbers<[1], [0], [0], [1], [0, 0, 1, 1], [], []>} : vector<10x84xf32>, vector<84x160xf32>, vector<10x160xf32> -> vector<10x160xf32>
    %72 = arith.addf %67, %71 : vector<10x160xf32>
    %73 = vector.extract_strided_slice %53 {offsets = [4, 0], sizes = [10, 84], strides = [1, 1]} : vector<14x84xf32> to vector<10x84xf32>
    %c4_66 = arith.constant 4 : index
    %c0_67 = arith.constant 0 : index
    %c0_68 = arith.constant 0 : index
    %74 = vector.load %arg4[%c4_66, %c0_67, %c0_68] : memref<5x84x160xf32, #tpu.memory_space<vmem>>, vector<1x84x160xf32>
    %75 = vector.shape_cast %74 : vector<1x84x160xf32> to vector<84x160xf32>
    %cst_69 = arith.constant dense<0.000000e+00> : vector<10x160xf32>
    %76 = tpu.matmul %73, %75, %cst_69 {dimension_numbers = #tpu.dot_dimension_numbers<[1], [0], [0], [1], [0, 0, 1, 1], [], []>} : vector<10x84xf32>, vector<84x160xf32>, vector<10x160xf32> -> vector<10x160xf32>
    %77 = arith.addf %72, %76 : vector<10x160xf32>
    %78 = vector.broadcast %1 : vector<1x160xf32> to vector<10x160xf32>
    %79 = arith.addf %77, %78 : vector<10x160xf32>
    %cst_70 = arith.constant 0.000000e+00 : f32
    %80 = vector.broadcast %cst_70 : f32 to vector<10x160xf32>
    %81 = arith.maximumf %79, %80 : vector<10x160xf32>
    %cst_71 = arith.constant dense<0.000000e+00> : vector<5x160xf32>
    %82 = tpu.matmul %11, %81, %cst_71 {dimension_numbers = #tpu.dot_dimension_numbers<[1], [0], [0], [1], [0, 0, 1, 1], [], []>} : vector<5x10xf32>, vector<10x160xf32>, vector<5x160xf32> -> vector<5x160xf32>
    %cst_72 = arith.constant dense<0.000000e+00> : vector<5x160xf32>
    %83 = tpu.matmul %13, %81, %cst_72 {dimension_numbers = #tpu.dot_dimension_numbers<[1], [0], [0], [1], [0, 0, 1, 1], [], []>} : vector<5x10xf32>, vector<10x160xf32>, vector<5x160xf32> -> vector<5x160xf32>
    %84 = arith.maximumf %82, %83 : vector<5x160xf32>
    %cst_73 = arith.constant dense<0.000000e+00> : vector<5x80xf32>
    %85 = tpu.matmul %84, %15, %cst_73 {dimension_numbers = #tpu.dot_dimension_numbers<[1], [0], [0], [1], [0, 0, 1, 1], [], []>} : vector<5x160xf32>, vector<160x80xf32>, vector<5x80xf32> -> vector<5x80xf32>
    %cst_74 = arith.constant dense<0.000000e+00> : vector<5x80xf32>
    %86 = tpu.matmul %84, %17, %cst_74 {dimension_numbers = #tpu.dot_dimension_numbers<[1], [0], [0], [1], [0, 0, 1, 1], [], []>} : vector<5x160xf32>, vector<160x80xf32>, vector<5x80xf32> -> vector<5x80xf32>
    %87 = arith.maximumf %85, %86 : vector<5x80xf32>
    %88 = vector.extract_strided_slice %87 {offsets = [0, 0], sizes = [1, 80], strides = [1, 1]} : vector<5x80xf32> to vector<1x80xf32>
    %c0_75 = arith.constant 0 : index
    %c0_76 = arith.constant 0 : index
    %89 = vector.load %arg17[%c0_75, %c0_76] : memref<2x400xf32, #tpu.memory_space<vmem>>, vector<1x80xf32>
    tpu.vector_store %arg17[%c0_75, %c0_76], %88 {strides = array<i32>} : memref<2x400xf32, #tpu.memory_space<vmem>>, vector<1x80xf32>,
    %90 = vector.extract_strided_slice %87 {offsets = [1, 0], sizes = [1, 80], strides = [1, 1]} : vector<5x80xf32> to vector<1x80xf32>
    %c0_77 = arith.constant 0 : index
    %c80 = arith.constant 80 : index
    %91 = vector.load %arg17[%c0_77, %c80] : memref<2x400xf32, #tpu.memory_space<vmem>>, vector<1x80xf32>
    tpu.vector_store %arg17[%c0_77, %c80], %90 {strides = array<i32>} : memref<2x400xf32, #tpu.memory_space<vmem>>, vector<1x80xf32>,
    %92 = vector.extract_strided_slice %87 {offsets = [2, 0], sizes = [1, 80], strides = [1, 1]} : vector<5x80xf32> to vector<1x80xf32>
    %c0_78 = arith.constant 0 : index
    %c160 = arith.constant 160 : index
    %93 = vector.load %arg17[%c0_78, %c160] : memref<2x400xf32, #tpu.memory_space<vmem>>, vector<1x80xf32>
    tpu.vector_store %arg17[%c0_78, %c160], %92 {strides = array<i32>} : memref<2x400xf32, #tpu.memory_space<vmem>>, vector<1x80xf32>,
    %94 = vector.extract_strided_slice %87 {offsets = [3, 0], sizes = [1, 80], strides = [1, 1]} : vector<5x80xf32> to vector<1x80xf32>
    %c0_79 = arith.constant 0 : index
    %c240 = arith.constant 240 : index
    %95 = vector.load %arg17[%c0_79, %c240] : memref<2x400xf32, #tpu.memory_space<vmem>>, vector<1x80xf32>
    tpu.vector_store %arg17[%c0_79, %c240], %94 {strides = array<i32>} : memref<2x400xf32, #tpu.memory_space<vmem>>, vector<1x80xf32>,
    %96 = vector.extract_strided_slice %87 {offsets = [4, 0], sizes = [1, 80], strides = [1, 1]} : vector<5x80xf32> to vector<1x80xf32>
    %c0_80 = arith.constant 0 : index
    %c320 = arith.constant 320 : index
    %97 = vector.load %arg17[%c0_80, %c320] : memref<2x400xf32, #tpu.memory_space<vmem>>, vector<1x80xf32>
    tpu.vector_store %arg17[%c0_80, %c320], %96 {strides = array<i32>} : memref<2x400xf32, #tpu.memory_space<vmem>>, vector<1x80xf32>,
    %c1_81 = arith.constant 1 : index
    %c0_82 = arith.constant 0 : index
    %c0_83 = arith.constant 0 : index
    %98 = vector.load %arg1[%c1_81, %c0_82, %c0_83] : memref<2x32x96xf32, #tpu.memory_space<vmem>>, vector<1x32x96xf32>
    %99 = vector.shape_cast %98 : vector<1x32x96xf32> to vector<32x96xf32>
    %100 = vector.extract_strided_slice %99 {offsets = [0, 0], sizes = [28, 96], strides = [1, 1]} : vector<32x96xf32> to vector<28x96xf32>
    %c0_84 = arith.constant 0 : index
    %c0_85 = arith.constant 0 : index
    %c0_86 = arith.constant 0 : index
    %101 = vector.load %arg2[%c0_84, %c0_85, %c0_86] : memref<5x96x168xf32, #tpu.memory_space<vmem>>, vector<1x96x168xf32>
    %102 = vector.shape_cast %101 : vector<1x96x168xf32> to vector<96x168xf32>
    %cst_87 = arith.constant dense<0.000000e+00> : vector<28x168xf32>
    %103 = tpu.matmul %100, %102, %cst_87 {dimension_numbers = #tpu.dot_dimension_numbers<[1], [0], [0], [1], [0, 0, 1, 1], [], []>} : vector<28x96xf32>, vector<96x168xf32>, vector<28x168xf32> -> vector<28x168xf32>
    %104 = vector.extract_strided_slice %99 {offsets = [1, 0], sizes = [28, 96], strides = [1, 1]} : vector<32x96xf32> to vector<28x96xf32>
    %c1_88 = arith.constant 1 : index
    %c0_89 = arith.constant 0 : index
    %c0_90 = arith.constant 0 : index
    %105 = vector.load %arg2[%c1_88, %c0_89, %c0_90] : memref<5x96x168xf32, #tpu.memory_space<vmem>>, vector<1x96x168xf32>
    %106 = vector.shape_cast %105 : vector<1x96x168xf32> to vector<96x168xf32>
    %cst_91 = arith.constant dense<0.000000e+00> : vector<28x168xf32>
    %107 = tpu.matmul %104, %106, %cst_91 {dimension_numbers = #tpu.dot_dimension_numbers<[1], [0], [0], [1], [0, 0, 1, 1], [], []>} : vector<28x96xf32>, vector<96x168xf32>, vector<28x168xf32> -> vector<28x168xf32>
    %108 = arith.addf %103, %107 : vector<28x168xf32>
    %109 = vector.extract_strided_slice %99 {offsets = [2, 0], sizes = [28, 96], strides = [1, 1]} : vector<32x96xf32> to vector<28x96xf32>
    %c2_92 = arith.constant 2 : index
    %c0_93 = arith.constant 0 : index
    %c0_94 = arith.constant 0 : index
    %110 = vector.load %arg2[%c2_92, %c0_93, %c0_94] : memref<5x96x168xf32, #tpu.memory_space<vmem>>, vector<1x96x168xf32>
    %111 = vector.shape_cast %110 : vector<1x96x168xf32> to vector<96x168xf32>
    %cst_95 = arith.constant dense<0.000000e+00> : vector<28x168xf32>
    %112 = tpu.matmul %109, %111, %cst_95 {dimension_numbers = #tpu.dot_dimension_numbers<[1], [0], [0], [1], [0, 0, 1, 1], [], []>} : vector<28x96xf32>, vector<96x168xf32>, vector<28x168xf32> -> vector<28x168xf32>
    %113 = arith.addf %108, %112 : vector<28x168xf32>
    %114 = vector.extract_strided_slice %99 {offsets = [3, 0], sizes = [28, 96], strides = [1, 1]} : vector<32x96xf32> to vector<28x96xf32>
    %c3_96 = arith.constant 3 : index
    %c0_97 = arith.constant 0 : index
    %c0_98 = arith.constant 0 : index
    %115 = vector.load %arg2[%c3_96, %c0_97, %c0_98] : memref<5x96x168xf32, #tpu.memory_space<vmem>>, vector<1x96x168xf32>
    %116 = vector.shape_cast %115 : vector<1x96x168xf32> to vector<96x168xf32>
    %cst_99 = arith.constant dense<0.000000e+00> : vector<28x168xf32>
    %117 = tpu.matmul %114, %116, %cst_99 {dimension_numbers = #tpu.dot_dimension_numbers<[1], [0], [0], [1], [0, 0, 1, 1], [], []>} : vector<28x96xf32>, vector<96x168xf32>, vector<28x168xf32> -> vector<28x168xf32>
    %118 = arith.addf %113, %117 : vector<28x168xf32>
    %119 = vector.extract_strided_slice %99 {offsets = [4, 0], sizes = [28, 96], strides = [1, 1]} : vector<32x96xf32> to vector<28x96xf32>
    %c4_100 = arith.constant 4 : index
    %c0_101 = arith.constant 0 : index
    %c0_102 = arith.constant 0 : index
    %120 = vector.load %arg2[%c4_100, %c0_101, %c0_102] : memref<5x96x168xf32, #tpu.memory_space<vmem>>, vector<1x96x168xf32>
    %121 = vector.shape_cast %120 : vector<1x96x168xf32> to vector<96x168xf32>
    %cst_103 = arith.constant dense<0.000000e+00> : vector<28x168xf32>
    %122 = tpu.matmul %119, %121, %cst_103 {dimension_numbers = #tpu.dot_dimension_numbers<[1], [0], [0], [1], [0, 0, 1, 1], [], []>} : vector<28x96xf32>, vector<96x168xf32>, vector<28x168xf32> -> vector<28x168xf32>
    %123 = arith.addf %118, %122 : vector<28x168xf32>
    %124 = vector.broadcast %0 : vector<1x168xf32> to vector<28x168xf32>
    %125 = arith.addf %123, %124 : vector<28x168xf32>
    %cst_104 = arith.constant 0.000000e+00 : f32
    %126 = vector.broadcast %cst_104 : f32 to vector<28x168xf32>
    %127 = arith.maximumf %125, %126 : vector<28x168xf32>
    %cst_105 = arith.constant dense<0.000000e+00> : vector<14x168xf32>
    %128 = tpu.matmul %3, %127, %cst_105 {dimension_numbers = #tpu.dot_dimension_numbers<[1], [0], [0], [1], [0, 0, 1, 1], [], []>} : vector<14x28xf32>, vector<28x168xf32>, vector<14x168xf32> -> vector<14x168xf32>
    %cst_106 = arith.constant dense<0.000000e+00> : vector<14x168xf32>
    %129 = tpu.matmul %5, %127, %cst_106 {dimension_numbers = #tpu.dot_dimension_numbers<[1], [0], [0], [1], [0, 0, 1, 1], [], []>} : vector<14x28xf32>, vector<28x168xf32>, vector<14x168xf32> -> vector<14x168xf32>
    %130 = arith.maximumf %128, %129 : vector<14x168xf32>
    %cst_107 = arith.constant dense<0.000000e+00> : vector<14x84xf32>
    %131 = tpu.matmul %130, %7, %cst_107 {dimension_numbers = #tpu.dot_dimension_numbers<[1], [0], [0], [1], [0, 0, 1, 1], [], []>} : vector<14x168xf32>, vector<168x84xf32>, vector<14x84xf32> -> vector<14x84xf32>
    %cst_108 = arith.constant dense<0.000000e+00> : vector<14x84xf32>
    %132 = tpu.matmul %130, %9, %cst_108 {dimension_numbers = #tpu.dot_dimension_numbers<[1], [0], [0], [1], [0, 0, 1, 1], [], []>} : vector<14x168xf32>, vector<168x84xf32>, vector<14x84xf32> -> vector<14x84xf32>
    %133 = arith.maximumf %131, %132 : vector<14x84xf32>
    %134 = vector.extract_strided_slice %133 {offsets = [0, 0], sizes = [10, 84], strides = [1, 1]} : vector<14x84xf32> to vector<10x84xf32>
    %c0_109 = arith.constant 0 : index
    %c0_110 = arith.constant 0 : index
    %c0_111 = arith.constant 0 : index
    %135 = vector.load %arg4[%c0_109, %c0_110, %c0_111] : memref<5x84x160xf32, #tpu.memory_space<vmem>>, vector<1x84x160xf32>
    %136 = vector.shape_cast %135 : vector<1x84x160xf32> to vector<84x160xf32>
    %cst_112 = arith.constant dense<0.000000e+00> : vector<10x160xf32>
    %137 = tpu.matmul %134, %136, %cst_112 {dimension_numbers = #tpu.dot_dimension_numbers<[1], [0], [0], [1], [0, 0, 1, 1], [], []>} : vector<10x84xf32>, vector<84x160xf32>, vector<10x160xf32> -> vector<10x160xf32>
    %138 = vector.extract_strided_slice %133 {offsets = [1, 0], sizes = [10, 84], strides = [1, 1]} : vector<14x84xf32> to vector<10x84xf32>
    %c1_113 = arith.constant 1 : index
    %c0_114 = arith.constant 0 : index
    %c0_115 = arith.constant 0 : index
    %139 = vector.load %arg4[%c1_113, %c0_114, %c0_115] : memref<5x84x160xf32, #tpu.memory_space<vmem>>, vector<1x84x160xf32>
    %140 = vector.shape_cast %139 : vector<1x84x160xf32> to vector<84x160xf32>
    %cst_116 = arith.constant dense<0.000000e+00> : vector<10x160xf32>
    %141 = tpu.matmul %138, %140, %cst_116 {dimension_numbers = #tpu.dot_dimension_numbers<[1], [0], [0], [1], [0, 0, 1, 1], [], []>} : vector<10x84xf32>, vector<84x160xf32>, vector<10x160xf32> -> vector<10x160xf32>
    %142 = arith.addf %137, %141 : vector<10x160xf32>
    %143 = vector.extract_strided_slice %133 {offsets = [2, 0], sizes = [10, 84], strides = [1, 1]} : vector<14x84xf32> to vector<10x84xf32>
    %c2_117 = arith.constant 2 : index
    %c0_118 = arith.constant 0 : index
    %c0_119 = arith.constant 0 : index
    %144 = vector.load %arg4[%c2_117, %c0_118, %c0_119] : memref<5x84x160xf32, #tpu.memory_space<vmem>>, vector<1x84x160xf32>
    %145 = vector.shape_cast %144 : vector<1x84x160xf32> to vector<84x160xf32>
    %cst_120 = arith.constant dense<0.000000e+00> : vector<10x160xf32>
    %146 = tpu.matmul %143, %145, %cst_120 {dimension_numbers = #tpu.dot_dimension_numbers<[1], [0], [0], [1], [0, 0, 1, 1], [], []>} : vector<10x84xf32>, vector<84x160xf32>, vector<10x160xf32> -> vector<10x160xf32>
    %147 = arith.addf %142, %146 : vector<10x160xf32>
    %148 = vector.extract_strided_slice %133 {offsets = [3, 0], sizes = [10, 84], strides = [1, 1]} : vector<14x84xf32> to vector<10x84xf32>
    %c3_121 = arith.constant 3 : index
    %c0_122 = arith.constant 0 : index
    %c0_123 = arith.constant 0 : index
    %149 = vector.load %arg4[%c3_121, %c0_122, %c0_123] : memref<5x84x160xf32, #tpu.memory_space<vmem>>, vector<1x84x160xf32>
    %150 = vector.shape_cast %149 : vector<1x84x160xf32> to vector<84x160xf32>
    %cst_124 = arith.constant dense<0.000000e+00> : vector<10x160xf32>
    %151 = tpu.matmul %148, %150, %cst_124 {dimension_numbers = #tpu.dot_dimension_numbers<[1], [0], [0], [1], [0, 0, 1, 1], [], []>} : vector<10x84xf32>, vector<84x160xf32>, vector<10x160xf32> -> vector<10x160xf32>
    %152 = arith.addf %147, %151 : vector<10x160xf32>
    %153 = vector.extract_strided_slice %133 {offsets = [4, 0], sizes = [10, 84], strides = [1, 1]} : vector<14x84xf32> to vector<10x84xf32>
    %c4_125 = arith.constant 4 : index
    %c0_126 = arith.constant 0 : index
    %c0_127 = arith.constant 0 : index
    %154 = vector.load %arg4[%c4_125, %c0_126, %c0_127] : memref<5x84x160xf32, #tpu.memory_space<vmem>>, vector<1x84x160xf32>
    %155 = vector.shape_cast %154 : vector<1x84x160xf32> to vector<84x160xf32>
    %cst_128 = arith.constant dense<0.000000e+00> : vector<10x160xf32>
    %156 = tpu.matmul %153, %155, %cst_128 {dimension_numbers = #tpu.dot_dimension_numbers<[1], [0], [0], [1], [0, 0, 1, 1], [], []>} : vector<10x84xf32>, vector<84x160xf32>, vector<10x160xf32> -> vector<10x160xf32>
    %157 = arith.addf %152, %156 : vector<10x160xf32>
    %158 = vector.broadcast %1 : vector<1x160xf32> to vector<10x160xf32>
    %159 = arith.addf %157, %158 : vector<10x160xf32>
    %cst_129 = arith.constant 0.000000e+00 : f32
    %160 = vector.broadcast %cst_129 : f32 to vector<10x160xf32>
    %161 = arith.maximumf %159, %160 : vector<10x160xf32>
    %cst_130 = arith.constant dense<0.000000e+00> : vector<5x160xf32>
    %162 = tpu.matmul %11, %161, %cst_130 {dimension_numbers = #tpu.dot_dimension_numbers<[1], [0], [0], [1], [0, 0, 1, 1], [], []>} : vector<5x10xf32>, vector<10x160xf32>, vector<5x160xf32> -> vector<5x160xf32>
    %cst_131 = arith.constant dense<0.000000e+00> : vector<5x160xf32>
    %163 = tpu.matmul %13, %161, %cst_131 {dimension_numbers = #tpu.dot_dimension_numbers<[1], [0], [0], [1], [0, 0, 1, 1], [], []>} : vector<5x10xf32>, vector<10x160xf32>, vector<5x160xf32> -> vector<5x160xf32>
    %164 = arith.maximumf %162, %163 : vector<5x160xf32>
    %cst_132 = arith.constant dense<0.000000e+00> : vector<5x80xf32>
    %165 = tpu.matmul %164, %15, %cst_132 {dimension_numbers = #tpu.dot_dimension_numbers<[1], [0], [0], [1], [0, 0, 1, 1], [], []>} : vector<5x160xf32>, vector<160x80xf32>, vector<5x80xf32> -> vector<5x80xf32>
    %cst_133 = arith.constant dense<0.000000e+00> : vector<5x80xf32>
    %166 = tpu.matmul %164, %17, %cst_133 {dimension_numbers = #tpu.dot_dimension_numbers<[1], [0], [0], [1], [0, 0, 1, 1], [], []>} : vector<5x160xf32>, vector<160x80xf32>, vector<5x80xf32> -> vector<5x80xf32>
    %167 = arith.maximumf %165, %166 : vector<5x80xf32>
    %168 = vector.extract_strided_slice %167 {offsets = [0, 0], sizes = [1, 80], strides = [1, 1]} : vector<5x80xf32> to vector<1x80xf32>
    %c1_134 = arith.constant 1 : index
    %c0_135 = arith.constant 0 : index
    %169 = vector.load %arg17[%c1_134, %c0_135] : memref<2x400xf32, #tpu.memory_space<vmem>>, vector<1x80xf32>
    tpu.vector_store %arg17[%c1_134, %c0_135], %168 {strides = array<i32>} : memref<2x400xf32, #tpu.memory_space<vmem>>, vector<1x80xf32>,
    %170 = vector.extract_strided_slice %167 {offsets = [1, 0], sizes = [1, 80], strides = [1, 1]} : vector<5x80xf32> to vector<1x80xf32>
    %c1_136 = arith.constant 1 : index
    %c80_137 = arith.constant 80 : index
    %171 = vector.load %arg17[%c1_136, %c80_137] : memref<2x400xf32, #tpu.memory_space<vmem>>, vector<1x80xf32>
    tpu.vector_store %arg17[%c1_136, %c80_137], %170 {strides = array<i32>} : memref<2x400xf32, #tpu.memory_space<vmem>>, vector<1x80xf32>,
    %172 = vector.extract_strided_slice %167 {offsets = [2, 0], sizes = [1, 80], strides = [1, 1]} : vector<5x80xf32> to vector<1x80xf32>
    %c1_138 = arith.constant 1 : index
    %c160_139 = arith.constant 160 : index
    %173 = vector.load %arg17[%c1_138, %c160_139] : memref<2x400xf32, #tpu.memory_space<vmem>>, vector<1x80xf32>
    tpu.vector_store %arg17[%c1_138, %c160_139], %172 {strides = array<i32>} : memref<2x400xf32, #tpu.memory_space<vmem>>, vector<1x80xf32>,
    %174 = vector.extract_strided_slice %167 {offsets = [3, 0], sizes = [1, 80], strides = [1, 1]} : vector<5x80xf32> to vector<1x80xf32>
    %c1_140 = arith.constant 1 : index
    %c240_141 = arith.constant 240 : index
    %175 = vector.load %arg17[%c1_140, %c240_141] : memref<2x400xf32, #tpu.memory_space<vmem>>, vector<1x80xf32>
    tpu.vector_store %arg17[%c1_140, %c240_141], %174 {strides = array<i32>} : memref<2x400xf32, #tpu.memory_space<vmem>>, vector<1x80xf32>,
    %176 = vector.extract_strided_slice %167 {offsets = [4, 0], sizes = [1, 80], strides = [1, 1]} : vector<5x80xf32> to vector<1x80xf32>
    %c1_142 = arith.constant 1 : index
    %c320_143 = arith.constant 320 : index
    %177 = vector.load %arg17[%c1_142, %c320_143] : memref<2x400xf32, #tpu.memory_space<vmem>>, vector<1x80xf32>
    tpu.vector_store %arg17[%c1_142, %c320_143], %176 {strides = array<i32>} : memref<2x400xf32, #tpu.memory_space<vmem>>, vector<1x80xf32>,
    %c0_144 = arith.constant 0 : index
    %c0_145 = arith.constant 0 : index
    %178 = vector.load %arg17[%c0_144, %c0_145] : memref<2x400xf32, #tpu.memory_space<vmem>>, vector<2x400xf32>
    %c0_146 = arith.constant 0 : index
    %c0_147 = arith.constant 0 : index
    %179 = vector.load %arg10[%c0_146, %c0_147] : memref<400x120xf32, #tpu.memory_space<vmem>>, vector<400x120xf32>
    %cst_148 = arith.constant dense<0.000000e+00> : vector<2x120xf32>
    %180 = tpu.matmul %178, %179, %cst_148 {dimension_numbers = #tpu.dot_dimension_numbers<[1], [0], [0], [1], [0, 0, 1, 1], [], []>} : vector<2x400xf32>, vector<400x120xf32>, vector<2x120xf32> -> vector<2x120xf32>
    %c0_149 = arith.constant 0 : index
    %c0_150 = arith.constant 0 : index
    %181 = vector.load %arg11[%c0_149, %c0_150] : memref<1x120xf32, #tpu.memory_space<vmem>>, vector<1x120xf32>
    %182 = vector.broadcast %181 : vector<1x120xf32> to vector<2x120xf32>
    %183 = arith.addf %180, %182 : vector<2x120xf32>
    %cst_151 = arith.constant 0.000000e+00 : f32
    %184 = vector.broadcast %cst_151 : f32 to vector<2x120xf32>
    %185 = arith.maximumf %183, %184 : vector<2x120xf32>
    %c0_152 = arith.constant 0 : index
    %c0_153 = arith.constant 0 : index
    %186 = vector.load %arg12[%c0_152, %c0_153] : memref<120x84xf32, #tpu.memory_space<vmem>>, vector<120x84xf32>
    %cst_154 = arith.constant dense<0.000000e+00> : vector<2x84xf32>
    %187 = tpu.matmul %185, %186, %cst_154 {dimension_numbers = #tpu.dot_dimension_numbers<[1], [0], [0], [1], [0, 0, 1, 1], [], []>} : vector<2x120xf32>, vector<120x84xf32>, vector<2x84xf32> -> vector<2x84xf32>
    %c0_155 = arith.constant 0 : index
    %c0_156 = arith.constant 0 : index
    %188 = vector.load %arg13[%c0_155, %c0_156] : memref<1x84xf32, #tpu.memory_space<vmem>>, vector<1x84xf32>
    %189 = vector.broadcast %188 : vector<1x84xf32> to vector<2x84xf32>
    %190 = arith.addf %187, %189 : vector<2x84xf32>
    %cst_157 = arith.constant 0.000000e+00 : f32
    %191 = vector.broadcast %cst_157 : f32 to vector<2x84xf32>
    %192 = arith.maximumf %190, %191 : vector<2x84xf32>
    %c0_158 = arith.constant 0 : index
    %c0_159 = arith.constant 0 : index
    %193 = vector.load %arg14[%c0_158, %c0_159] : memref<84x2xf32, #tpu.memory_space<vmem>>, vector<84x2xf32>
    %cst_160 = arith.constant dense<0.000000e+00> : vector<2x2xf32>
    %194 = tpu.matmul %192, %193, %cst_160 {dimension_numbers = #tpu.dot_dimension_numbers<[1], [0], [0], [1], [0, 0, 1, 1], [], []>} : vector<2x84xf32>, vector<84x2xf32>, vector<2x2xf32> -> vector<2x2xf32>
    %c0_161 = arith.constant 0 : index
    %c0_162 = arith.constant 0 : index
    %195 = vector.load %arg15[%c0_161, %c0_162] : memref<1x2xf32, #tpu.memory_space<vmem>>, vector<1x2xf32>
    %196 = vector.broadcast %195 : vector<1x2xf32> to vector<2x2xf32>
    %197 = arith.addf %194, %196 : vector<2x2xf32>
    %c0_163 = arith.constant 0 : index
    %c0_164 = arith.constant 0 : index
    %c0_165 = arith.constant 0 : index
    %198 = vector.load %arg16[%c0_163, %c0_164, %c0_165] : memref<1x2x2xf32, #tpu.memory_space<vmem>>, vector<1x2x2xf32>
    %199 = vector.shape_cast %198 : vector<1x2x2xf32> to vector<2x2xf32>
    %200 = vector.shape_cast %197 : vector<2x2xf32> to vector<1x2x2xf32>
    tpu.vector_store %arg16[%c0_163, %c0_164, %c0_165], %200 {strides = array<i32>} : memref<1x2x2xf32, #tpu.memory_space<vmem>>, vector<1x2x2xf32>,
    return
  }
  func.func @transform_0(%arg0: i32) -> (i32, i32, i32) {
    %c0_i32 = arith.constant 0 : i32
    %c0_i32_0 = arith.constant 0 : i32
    %c0_i32_1 = arith.constant 0 : i32
    return %arg0, %c0_i32, %c0_i32_0 : i32, i32, i32
  }
  func.func @transform_1(%arg0: i32) -> (i32, i32, i32) {
    %c0_i32 = arith.constant 0 : i32
    %c0_i32_0 = arith.constant 0 : i32
    %c0_i32_1 = arith.constant 0 : i32
    %c0_i32_2 = arith.constant 0 : i32
    return %c0_i32, %c0_i32_0, %c0_i32_1 : i32, i32, i32
  }
  func.func @transform_2(%arg0: i32) -> (i32, i32) {
    %c0_i32 = arith.constant 0 : i32
    %c0_i32_0 = arith.constant 0 : i32
    %c0_i32_1 = arith.constant 0 : i32
    return %c0_i32, %c0_i32_0 : i32, i32
  }
  func.func @transform_3(%arg0: i32) -> (i32, i32, i32) {
    %c0_i32 = arith.constant 0 : i32
    %c0_i32_0 = arith.constant 0 : i32
    %c0_i32_1 = arith.constant 0 : i32
    %c0_i32_2 = arith.constant 0 : i32
    return %c0_i32, %c0_i32_0, %c0_i32_1 : i32, i32, i32
  }
  func.func @transform_4(%arg0: i32) -> (i32, i32) {
    %c0_i32 = arith.constant 0 : i32
    %c0_i32_0 = arith.constant 0 : i32
    %c0_i32_1 = arith.constant 0 : i32
    return %c0_i32, %c0_i32_0 : i32, i32
  }
  func.func @transform_5(%arg0: i32) -> (i32, i32, i32) {
    %c0_i32 = arith.constant 0 : i32
    %c0_i32_0 = arith.constant 0 : i32
    %c0_i32_1 = arith.constant 0 : i32
    %c0_i32_2 = arith.constant 0 : i32
    return %c0_i32, %c0_i32_0, %c0_i32_1 : i32, i32, i32
  }
  func.func @transform_6(%arg0: i32) -> (i32, i32, i32) {
    %c0_i32 = arith.constant 0 : i32
    %c0_i32_0 = arith.constant 0 : i32
    %c0_i32_1 = arith.constant 0 : i32
    %c0_i32_2 = arith.constant 0 : i32
    return %c0_i32, %c0_i32_0, %c0_i32_1 : i32, i32, i32
  }
  func.func @transform_7(%arg0: i32) -> (i32, i32, i32) {
    %c0_i32 = arith.constant 0 : i32
    %c0_i32_0 = arith.constant 0 : i32
    %c0_i32_1 = arith.constant 0 : i32
    %c0_i32_2 = arith.constant 0 : i32
    return %c0_i32, %c0_i32_0, %c0_i32_1 : i32, i32, i32
  }
  func.func @transform_8(%arg0: i32) -> (i32, i32, i32) {
    %c0_i32 = arith.constant 0 : i32
    %c0_i32_0 = arith.constant 0 : i32
    %c0_i32_1 = arith.constant 0 : i32
    %c0_i32_2 = arith.constant 0 : i32
    return %c0_i32, %c0_i32_0, %c0_i32_1 : i32, i32, i32
  }
  func.func @transform_9(%arg0: i32) -> (i32, i32) {
    %c0_i32 = arith.constant 0 : i32
    %c0_i32_0 = arith.constant 0 : i32
    %c0_i32_1 = arith.constant 0 : i32
    return %c0_i32, %c0_i32_0 : i32, i32
  }
  func.func @transform_10(%arg0: i32) -> (i32, i32) {
    %c0_i32 = arith.constant 0 : i32
    %c0_i32_0 = arith.constant 0 : i32
    %c0_i32_1 = arith.constant 0 : i32
    return %c0_i32, %c0_i32_0 : i32, i32
  }
  func.func @transform_11(%arg0: i32) -> (i32, i32) {
    %c0_i32 = arith.constant 0 : i32
    %c0_i32_0 = arith.constant 0 : i32
    %c0_i32_1 = arith.constant 0 : i32
    return %c0_i32, %c0_i32_0 : i32, i32
  }
  func.func @transform_12(%arg0: i32) -> (i32, i32) {
    %c0_i32 = arith.constant 0 : i32
    %c0_i32_0 = arith.constant 0 : i32
    %c0_i32_1 = arith.constant 0 : i32
    return %c0_i32, %c0_i32_0 : i32, i32
  }
  func.func @transform_13(%arg0: i32) -> (i32, i32) {
    %c0_i32 = arith.constant 0 : i32
    %c0_i32_0 = arith.constant 0 : i32
    %c0_i32_1 = arith.constant 0 : i32
    return %c0_i32, %c0_i32_0 : i32, i32
  }
  func.func @transform_14(%arg0: i32) -> (i32, i32) {
    %c0_i32 = arith.constant 0 : i32
    %c0_i32_0 = arith.constant 0 : i32
    %c0_i32_1 = arith.constant 0 : i32
    return %c0_i32, %c0_i32_0 : i32, i32
  }
  func.func @transform_15(%arg0: i32) -> (i32, i32, i32) {
    %c0_i32 = arith.constant 0 : i32
    %c0_i32_0 = arith.constant 0 : i32
    %c0_i32_1 = arith.constant 0 : i32
    return %arg0, %c0_i32, %c0_i32_0 : i32, i32, i32
  }
}

</mosaic_0001>

<llo_original>
// kernel: tile.18
$region0: #{tile.18}
  #allocation2 [shape = 's32[1]{0}', space=sflag, size = 0x4, scoped, tag = 'scoped memory for tile.18']
  %s0 = inlined_call_operand.hbm [shape: f32[16], index: 0, kind: input, shape index: {}]
  %s1 = inlined_call_operand.vmem [shape: f32[10,16], index: 1, kind: output, shape index: {}]
  $region1: #{tile.18} parent=0
    #allocation0 [shape = 'u8[512]{0}', space=vmem, size = 0x400, scoped, tag = 'operand span for operand 0']
    #allocation1 [shape = 's32[1]{0}', space=sflag, size = 0x4, scoped, tag = 'scoped memory for tile.18']
    %2 = vsyncpa [#allocation1], 0
    // Predicated region
    $region2: #{tile.18} parent=1 // pred_check
      _
    $region3: #{tile.18} parent=1 // pred_check_branch
      %4 = sbr.rel (0) target = $region5
    $region4: #{tile.18} parent=1 // pred_region
      %s6 = ssub.s32 16, 16
      %7 = vsyncadd [#allocation1], %s6
      %s9 = sshll.u32 [#allocation0], 4
      %s10 = int_to_ptr.vmem [resolvable:$true] %s9
      %12 = dma.hbm_to_vmem [thread:$0]  %s0, 16, %s10, [#allocation1]
    $region5: #{tile.18} parent=1 // pred_fallthru
      _
    // Predicated region
    $region6: #{tile.18} parent=1 // pred_check
      _
    $region7: #{tile.18} parent=1 // pred_check_branch
      %14 = sbr.rel (0) target = $region9
    $region8: #{tile.18} parent=1 // pred_region
      %15 = dma.done [#allocation1], 16
    $region9: #{tile.18} parent=1 // pred_fallthru
      _
    %v16 = vld [vmem:[#allocation0] ss:$0 sm:$0xff]
    %17 = vst [vmem:[%s1] sm:$0xff] %v16
    %s18 = scalar_lea.vmem %s1, 8
    %19 = vst [vmem:[%s18] sm:$0xff] %v16
    %20 = vsyncpa [#allocation1], 1

// kernel: tile.19
$region0: #{tile.19}
  %s0 = inlined_call_operand.vmem [shape: f32[10,16], index: 0, kind: input, shape index: {}]
  %s1 = inlined_call_operand.vmem [shape: f32[1,160], index: 1, kind: output, shape index: {}]
  $region1: #{tile.19} parent=0
    #allocation0 [shape = 'u8[8192]{0}', space=vmem, size = 0x2000, scoped, tag = 'scoped mem for output reshape']
    %s2 = smov 3
    %v3 = vld [vmem:[%s0] ss:$8 sm:%s2]
    %vm4 = vcmask 130048
    %5 = vst.msk [vmem:[#allocation0] ss:$8 sm:$0x3] %vm4, %v3
    %s6 = scalar_lea.vmem %s0, 7
    %v7 = vld [vmem:[%s6] sm:$0x1]
    %8 = vrot.lane.b32.xlu0 %v7, 112
    %v9 = vpop.permute.xlu0 %8
    %vm10 = vcmask 1048448
    %11 = vst.msk [vmem:[#allocation0] sm:$0x1] %vm10, %v9
    %s12 = scalar_lea.vmem %s0, 6
    %v13 = vld [vmem:[%s12] sm:$0x1]
    %14 = vrot.lane.b32.xlu0 %v13, 96
    %v15 = vpop.permute.xlu0 %14
    %vm16 = vcmask 917248
    %17 = vst.msk [vmem:[#allocation0] sm:$0x1] %vm16, %v15
    %s18 = scalar_lea.vmem %s0, 5
    %v19 = vld [vmem:[%s18] sm:$0x1]
    %20 = vrot.lane.b32.xlu0 %v19, 80
    %v21 = vpop.permute.xlu0 %20
    %vm22 = vcmask 786048
    %23 = vst.msk [vmem:[#allocation0] sm:$0x1] %vm22, %v21
    %s24 = scalar_lea.vmem %s0, 4
    %v25 = vld [vmem:[%s24] sm:$0x1]
    %26 = vrot.lane.b32.xlu0 %v25, 64
    %v27 = vpop.permute.xlu0 %26
    %vm28 = vcmask 654848
    %29 = vst.msk [vmem:[#allocation0] sm:$0x1] %vm28, %v27
    %s30 = scalar_lea.vmem %s0, 3
    %v31 = vld [vmem:[%s30] sm:$0x1]
    %32 = vrot.lane.b32.xlu0 %v31, 48
    %v33 = vpop.permute.xlu0 %32
    %vm34 = vcmask 523648
    %35 = vst.msk [vmem:[#allocation0] sm:$0x1] %vm34, %v33
    %s36 = scalar_lea.vmem %s0, 2
    %v37 = vld [vmem:[%s36] sm:$0x1]
    %38 = vrot.lane.b32.xlu0 %v37, 32
    %v39 = vpop.permute.xlu0 %38
    %vm40 = vcmask 392448
    %41 = vst.msk [vmem:[#allocation0] sm:$0x1] %vm40, %v39
    %s42 = scalar_lea.vmem %s0, 1
    %s43 = smov 3
    %v44 = vld [vmem:[%s42] ss:$8 sm:%s43]
    %45 = vrot.lane.b32.xlu0 %v44, 16
    %v46 = vpop.permute.xlu0 %45
    %vm47 = vcmask 261248
    %48 = vst.msk [vmem:[#allocation0] ss:$8 sm:$0x3] %vm47, %v46
    %s50 = sshllo.u32 0, 1
    %v52 = vld [vmem:[#allocation0] sm:%s50]
    %s53 = sshllo.u32 0, 1
    %54 = vst [vmem:[%s1] sm:%s53] %v52
    %s55 = scalar_lea.vmem [#allocation0], 8
    %v56 = vld [vmem:[%s55] sm:%s50]
    %s57 = sshllo.u32 0, 1
    %s58 = scalar_lea.vmem %s1, 1
    %59 = vst [vmem:[%s58] sm:%s57] %v56

// kernel: tile.13
$region0: #{tile.13}
  #allocation2 [shape = 's32[1]{0}', space=sflag, size = 0x4, scoped, tag = 'scoped memory for tile.13']
  %s0 = inlined_call_operand.hbm [shape: f32[6], index: 0, kind: input, shape index: {}]
  %s1 = inlined_call_operand.vmem [shape: f32[28,6], index: 1, kind: output, shape index: {}]
  $region1: #{tile.13} parent=0
    #allocation0 [shape = 'u8[512]{0}', space=vmem, size = 0x400, scoped, tag = 'operand span for operand 0']
    #allocation1 [shape = 's32[1]{0}', space=sflag, size = 0x4, scoped, tag = 'scoped memory for tile.13']
    %2 = vsyncpa [#allocation1], 0
    // Predicated region
    $region2: #{tile.13} parent=1 // pred_check
      _
    $region3: #{tile.13} parent=1 // pred_check_branch
      %4 = sbr.rel (0) target = $region5
    $region4: #{tile.13} parent=1 // pred_region
      %s6 = ssub.s32 16, 16
      %7 = vsyncadd [#allocation1], %s6
      %s9 = sshll.u32 [#allocation0], 4
      %s10 = int_to_ptr.vmem [resolvable:$true] %s9
      %12 = dma.hbm_to_vmem [thread:$0]  %s0, 16, %s10, [#allocation1]
    $region5: #{tile.13} parent=1 // pred_fallthru
      _
    // Predicated region
    $region6: #{tile.13} parent=1 // pred_check
      _
    $region7: #{tile.13} parent=1 // pred_check_branch
      %14 = sbr.rel (0) target = $region9
    $region8: #{tile.13} parent=1 // pred_region
      %15 = dma.done [#allocation1], 16
    $region9: #{tile.13} parent=1 // pred_fallthru
      _
    %v16 = vld [vmem:[#allocation0] ss:$0 sm:$0xff]
    %17 = vst [vmem:[%s1] sm:$0xff] %v16
    %s18 = scalar_lea.vmem %s1, 8
    %19 = vst [vmem:[%s18] sm:$0xff] %v16
    %s20 = scalar_lea.vmem %s1, 16
    %21 = vst [vmem:[%s20] sm:$0xff] %v16
    %s22 = scalar_lea.vmem %s1, 24
    %23 = vst [vmem:[%s22] sm:$0xff] %v16
    %24 = vsyncpa [#allocation1], 1

// kernel: tile.14
$region0: #{tile.14}
  %s0 = inlined_call_operand.vmem [shape: f32[28,6], index: 0, kind: input, shape index: {}]
  %s1 = inlined_call_operand.vmem [shape: f32[1,168], index: 1, kind: output, shape index: {}]
  $region1: #{tile.14} parent=0
    #allocation0 [shape = 'u8[8192]{0}', space=vmem, size = 0x2000, scoped, tag = 'scoped mem for output reshape']
    %v2 = vld [vmem:[%s0] sm:$0x1]
    %vm3 = vcmask 48128
    %4 = vst.msk [vmem:[#allocation0] sm:$0x1] %vm3, %v2
    %s5 = scalar_lea.vmem %s0, 21
    %v6 = vld [vmem:[%s5] sm:$0x1]
    %s7 = scalar_lea.vmem %s0, 21
    %v8 = vld [vmem:[%s7] sm:$0x1]
    %vm9 = vcmask 15360
    %v10 = vsel %vm9, %v8, %v6
    %11 = vrot.lane.b32.xlu0 %v10, 126
    %v12 = vpop.permute.xlu0 %11
    %vm13 = vcmask 31744
    %s14 = scalar_lea.vmem [#allocation0], 8
    %15 = vst.msk [vmem:[%s14] sm:$0x1] %vm13, %v12
    %vm16 = vcmask 1048560
    %17 = vst.msk [vmem:[#allocation0] sm:$0x1] %vm16, %v12
    %s18 = scalar_lea.vmem %s0, 20
    %v19 = vld [vmem:[%s18] sm:$0x1]
    %20 = vrot.lane.b32.xlu0 %v19, 120
    %v21 = vpop.permute.xlu0 %20
    %vm22 = vcmask 1032128
    %23 = vst.msk [vmem:[#allocation0] sm:$0x1] %vm22, %v21
    %s24 = scalar_lea.vmem %s0, 19
    %v25 = vld [vmem:[%s24] sm:$0x1]
    %26 = vrot.lane.b32.xlu0 %v25, 114
    %v27 = vpop.permute.xlu0 %26
    %vm28 = vcmask 982928
    %29 = vst.msk [vmem:[#allocation0] sm:$0x1] %vm28, %v27
    %s30 = scalar_lea.vmem %s0, 18
    %v31 = vld [vmem:[%s30] sm:$0x1]
    %32 = vrot.lane.b32.xlu0 %v31, 108
    %v33 = vpop.permute.xlu0 %32
    %vm34 = vcmask 933728
    %35 = vst.msk [vmem:[#allocation0] sm:$0x1] %vm34, %v33
    %s36 = scalar_lea.vmem %s0, 17
    %v37 = vld [vmem:[%s36] sm:$0x1]
    %38 = vrot.lane.b32.xlu0 %v37, 102
    %v39 = vpop.permute.xlu0 %38
    %vm40 = vcmask 884528
    %41 = vst.msk [vmem:[#allocation0] sm:$0x1] %vm40, %v39
    %s42 = scalar_lea.vmem %s0, 16
    %v43 = vld [vmem:[%s42] sm:$0x1]
    %44 = vrot.lane.b32.xlu0 %v43, 96
    %v45 = vpop.permute.xlu0 %44
    %vm46 = vcmask 835328
    %47 = vst.msk [vmem:[#allocation0] sm:$0x1] %vm46, %v45
    %s48 = scalar_lea.vmem %s0, 15
    %v49 = vld [vmem:[%s48] sm:$0x1]
    %50 = vrot.lane.b32.xlu0 %v49, 90
    %v51 = vpop.permute.xlu0 %50
    %vm52 = vcmask 786128
    %53 = vst.msk [vmem:[#allocation0] sm:$0x1] %vm52, %v51
    %s54 = scalar_lea.vmem %s0, 14
    %v55 = vld [vmem:[%s54] sm:$0x1]
    %56 = vrot.lane.b32.xlu0 %v55, 84
    %v57 = vpop.permute.xlu0 %56
    %vm58 = vcmask 736928
    %59 = vst.msk [vmem:[#allocation0] sm:$0x1] %vm58, %v57
    %s60 = scalar_lea.vmem %s0, 13
    %v61 = vld [vmem:[%s60] sm:$0x1]
    %62 = vrot.lane.b32.xlu0 %v61, 78
    %v63 = vpop.permute.xlu0 %62
    %vm64 = vcmask 687728
    %65 = vst.msk [vmem:[#allocation0] sm:$0x1] %vm64, %v63
    %s66 = scalar_lea.vmem %s0, 12
    %v67 = vld [vmem:[%s66] sm:$0x1]
    %68 = vrot.lane.b32.xlu0 %v67, 72
    %v69 = vpop.permute.xlu0 %68
    %vm70 = vcmask 638528
    %71 = vst.msk [vmem:[#allocation0] sm:$0x1] %vm70, %v69
    %s72 = scalar_lea.vmem %s0, 11
    %v73 = vld [vmem:[%s72] sm:$0x1]
    %74 = vrot.lane.b32.xlu0 %v73, 66
    %v75 = vpop.permute.xlu0 %74
    %vm76 = vcmask 589328
    %77 = vst.msk [vmem:[#allocation0] sm:$0x1] %vm76, %v75
    %s78 = scalar_lea.vmem %s0, 10
    %v79 = vld [vmem:[%s78] sm:$0x1]
    %80 = vrot.lane.b32.xlu0 %v79, 60
    %v81 = vpop.permute.xlu0 %80
    %vm82 = vcmask 540128
    %83 = vst.msk [vmem:[#allocation0] sm:$0x1] %vm82, %v81
    %s84 = scalar_lea.vmem %s0, 9
    %v85 = vld [vmem:[%s84] sm:$0x1]
    %86 = vrot.lane.b32.xlu0 %v85, 54
    %v87 = vpop.permute.xlu0 %86
    %vm88 = vcmask 490928
    %89 = vst.msk [vmem:[#allocation0] sm:$0x1] %vm88, %v87
    %s90 = scalar_lea.vmem %s0, 8
    %v91 = vld [vmem:[%s90] sm:$0x1]
    %92 = vrot.lane.b32.xlu0 %v91, 48
    %v93 = vpop.permute.xlu0 %92
    %vm94 = vcmask 441728
    %95 = vst.msk [vmem:[#allocation0] sm:$0x1] %vm94, %v93
    %s96 = scalar_lea.vmem %s0, 7
    %v97 = vld [vmem:[%s96] sm:$0x1]
    %98 = vrot.lane.b32.xlu0 %v97, 42
    %v99 = vpop.permute.xlu0 %98
    %vm100 = vcmask 392528
    %101 = vst.msk [vmem:[#allocation0] sm:$0x1] %vm100, %v99
    %s102 = scalar_lea.vmem %s0, 6
    %v103 = vld [vmem:[%s102] sm:$0x1]
    %104 = vrot.lane.b32.xlu0 %v103, 36
    %v105 = vpop.permute.xlu0 %104
    %vm106 = vcmask 343328
    %107 = vst.msk [vmem:[#allocation0] sm:$0x1] %vm106, %v105
    %s108 = scalar_lea.vmem %s0, 27
    %v109 = vld [vmem:[%s108] sm:$0x1]
    %110 = vrot.lane.b32.xlu0 %v109, 34
    %v111 = vpop.permute.xlu0 %110
    %vm112 = vcmask 326928
    %s113 = scalar_lea.vmem [#allocation0], 8
    %114 = vst.msk [vmem:[%s113] sm:$0x1] %vm112, %v111
    %s115 = scalar_lea.vmem %s0, 5
    %v116 = vld [vmem:[%s115] sm:$0x1]
    %117 = vrot.lane.b32.xlu0 %v116, 30
    %v118 = vpop.permute.xlu0 %117
    %vm119 = vcmask 294128
    %120 = vst.msk [vmem:[#allocation0] sm:$0x1] %vm119, %v118
    %s121 = scalar_lea.vmem %s0, 26
    %v122 = vld [vmem:[%s121] sm:$0x1]
    %123 = vrot.lane.b32.xlu0 %v122, 28
    %v124 = vpop.permute.xlu0 %123
    %vm125 = vcmask 277728
    %s126 = scalar_lea.vmem [#allocation0], 8
    %127 = vst.msk [vmem:[%s126] sm:$0x1] %vm125, %v124
    %s128 = scalar_lea.vmem %s0, 4
    %v129 = vld [vmem:[%s128] sm:$0x1]
    %130 = vrot.lane.b32.xlu0 %v129, 24
    %v131 = vpop.permute.xlu0 %130
    %vm132 = vcmask 244928
    %133 = vst.msk [vmem:[#allocation0] sm:$0x1] %vm132, %v131
    %s134 = scalar_lea.vmem %s0, 25
    %v135 = vld [vmem:[%s134] sm:$0x1]
    %136 = vrot.lane.b32.xlu0 %v135, 22
    %v137 = vpop.permute.xlu0 %136
    %vm138 = vcmask 228528
    %s139 = scalar_lea.vmem [#allocation0], 8
    %140 = vst.msk [vmem:[%s139] sm:$0x1] %vm138, %v137
    %s141 = scalar_lea.vmem %s0, 3
    %v142 = vld [vmem:[%s141] sm:$0x1]
    %143 = vrot.lane.b32.xlu0 %v142, 18
    %v144 = vpop.permute.xlu0 %143
    %vm145 = vcmask 195728
    %146 = vst.msk [vmem:[#allocation0] sm:$0x1] %vm145, %v144
    %s147 = scalar_lea.vmem %s0, 24
    %v148 = vld [vmem:[%s147] sm:$0x1]
    %149 = vrot.lane.b32.xlu0 %v148, 16
    %v150 = vpop.permute.xlu0 %149
    %vm151 = vcmask 179328
    %s152 = scalar_lea.vmem [#allocation0], 8
    %153 = vst.msk [vmem:[%s152] sm:$0x1] %vm151, %v150
    %s154 = scalar_lea.vmem %s0, 2
    %v155 = vld [vmem:[%s154] sm:$0x1]
    %156 = vrot.lane.b32.xlu0 %v155, 12
    %v157 = vpop.permute.xlu0 %156
    %vm158 = vcmask 146528
    %159 = vst.msk [vmem:[#allocation0] sm:$0x1] %vm158, %v157
    %s160 = scalar_lea.vmem %s0, 23
    %v161 = vld [vmem:[%s160] sm:$0x1]
    %162 = vrot.lane.b32.xlu0 %v161, 10
    %v163 = vpop.permute.xlu0 %162
    %vm164 = vcmask 130128
    %s165 = scalar_lea.vmem [#allocation0], 8
    %166 = vst.msk [vmem:[%s165] sm:$0x1] %vm164, %v163
    %s167 = scalar_lea.vmem %s0, 1
    %v168 = vld [vmem:[%s167] sm:$0x1]
    %169 = vrot.lane.b32.xlu0 %v168, 6
    %v170 = vpop.permute.xlu0 %169
    %vm171 = vcmask 97328
    %172 = vst.msk [vmem:[#allocation0] sm:$0x1] %vm171, %v170
    %s173 = scalar_lea.vmem %s0, 22
    %v174 = vld [vmem:[%s173] sm:$0x1]
    %175 = vrot.lane.b32.xlu0 %v174, 4
    %v176 = vpop.permute.xlu0 %175
    %vm177 = vcmask 80928
    %s178 = scalar_lea.vmem [#allocation0], 8
    %179 = vst.msk [vmem:[%s178] sm:$0x1] %vm177, %v176
    %s181 = sshllo.u32 0, 1
    %v183 = vld [vmem:[#allocation0] sm:%s181]
    %s184 = sshllo.u32 0, 1
    %185 = vst [vmem:[%s1] sm:%s184] %v183
    %s186 = scalar_lea.vmem [#allocation0], 8
    %v187 = vld [vmem:[%s186] sm:%s181]
    %s188 = sshllo.u32 0, 1
    %s189 = scalar_lea.vmem %s1, 1
    %190 = vst [vmem:[%s189] sm:%s188] %v187

// kernel: net_forward.1
$region0: #{net_forward.1}
  #allocation0 [shape = 'u32[]', space=smem, size = 0x4, offset = 0x4, fixed_abs, tag = 'smem constant byte address 0x4 - core index']
  #allocation1 [shape = 'u32[144,128]{1,0:T(1,128)}', space=vmem, size = 0x12000, scoped, tag = 'internal scratch']
  #allocation2 [shape = 'f32[2,400]{1,0:T(2,128)}', space=vmem, size = 0x1000, scoped, tag = 'scratch operand']
  %s0 = inlined_call_operand.vmem [shape: f32[4,32,96], index: 0, kind: input, shape index: {}]
  %s1 = inlined_call_operand.vmem [shape: f32[5,96,168], index: 1, kind: input, shape index: {}]
  %s2 = inlined_call_operand.vmem [shape: f32[1,168], index: 2, kind: input, shape index: {}]
  %s3 = inlined_call_operand.vmem [shape: f32[5,84,160], index: 3, kind: input, shape index: {}]
  %s4 = inlined_call_operand.vmem [shape: f32[1,160], index: 4, kind: input, shape index: {}]
  %s5 = inlined_call_operand.vmem [shape: f32[2,14,28], index: 5, kind: input, shape index: {}]
  %s6 = inlined_call_operand.vmem [shape: f32[2,168,84], index: 6, kind: input, shape index: {}]
  %s7 = inlined_call_operand.vmem [shape: f32[2,5,10], index: 7, kind: input, shape index: {}]
  %s8 = inlined_call_operand.vmem [shape: f32[2,160,80], index: 8, kind: input, shape index: {}]
  %s9 = inlined_call_operand.vmem [shape: f32[400,120], index: 9, kind: input, shape index: {}]
  %s10 = inlined_call_operand.vmem [shape: f32[1,120], index: 10, kind: input, shape index: {}]
  %s11 = inlined_call_operand.vmem [shape: f32[120,84], index: 11, kind: input, shape index: {}]
  %s12 = inlined_call_operand.vmem [shape: f32[1,84], index: 12, kind: input, shape index: {}]
  %s13 = inlined_call_operand.vmem [shape: f32[84,2], index: 13, kind: input, shape index: {}]
  %s14 = inlined_call_operand.vmem [shape: f32[1,2], index: 14, kind: input, shape index: {}]
  %s15 = inlined_call_operand.vmem [shape: f32[2,2,2], index: 15, kind: output, shape index: {}]
  %s16 = sld [smem:[#allocation0]]
  $region93: #{net_forward.1} parent=0
    _
  %s18 = ssub.s32 1, %s16
  %s19 = scalar_select 0, %s18, %s16
  loop: start=0, step=1, limit=4
  $region2: #{net_forward.1} parent=0 // loop_pre_header
    _
  $region3: #{net_forward.1} parent=0 // loop_header
    %s21 = sphi 0, %s25
    %p22 = scmp.ge.s32.totalorder %s21, 4
    %s31 = sphi 0, %s33
    %s34 = sphi 0, %s31
    %s35 = sphi 0, %s34
    %s51 = sphi 0, %s35
    %s55 = sphi 0, %s55
    %s57 = sphi 0, %s55
    %s58 = sphi 0, %s57
    %s72 = sphi 0, %s58
    %s76 = sphi 0, %s76
    %s78 = sphi 0, %s76
    %s79 = sphi 0, %s78
    %s93 = sphi 0, %s79
    %s97 = sphi 0, %s97
    %s99 = sphi 0, %s97
    %s100 = sphi 0, %s99
    %s114 = sphi 0, %s100
    %s118 = sphi 0, %s118
    %s120 = sphi 0, %s118
    %s121 = sphi 0, %s120
    %s135 = sphi 0, %s121
    %s139 = sphi 0, %s139
    %s141 = sphi 0, %s139
    %s142 = sphi 0, %s141
    %s156 = sphi 0, %s142
    %s160 = sphi 0, %s160
    %s162 = sphi 0, %s160
    %s163 = sphi 0, %s162
    %s177 = sphi 0, %s163
    %s181 = sphi 0, %s181
    %s183 = sphi 0, %s181
    %s184 = sphi 0, %s183
    %s198 = sphi 0, %s184
    %s202 = sphi 0, %s202
    %s204 = sphi 0, %s202
    %s205 = sphi 0, %s204
    %s219 = sphi 0, %s205
    %s223 = sphi 0, %s223
    %s225 = sphi 0, %s223
    %s226 = sphi 0, %s225
    %s240 = sphi 0, %s226
    %s244 = sphi 0, %s244
    %s246 = sphi 0, %s244
    %s247 = sphi 0, %s246
    %s261 = sphi 0, %s247
    %s265 = sphi 0, %s265
    %s267 = sphi 0, %s265
    %s268 = sphi 0, %s267
    %s282 = sphi 0, %s268
    %s286 = sphi 0, %s286
    %s288 = sphi 0, %s286
    %s289 = sphi 0, %s288
    %s303 = sphi 0, %s289
    %s307 = sphi 0, %s307
    %s309 = sphi 0, %s307
    %s310 = sphi 0, %s309
    %s324 = sphi 0, %s310
    %s328 = sphi 0, %s328
    %s330 = sphi 0, %s328
    %s331 = sphi 0, %s330
    %s345 = sphi 0, %s331
    %s351 = sphi 0, %s353
    %s354 = sphi 0, %s351
    %s355 = sphi 0, %s354
    %s371 = sphi 0, %s355
  $region4: #{net_forward.1} parent=0 // loop_header_branch
    %24 = sbr.rel (%p22) target = $region8
  $region5: #{net_forward.1} parent=0 // loop_body
    %s26 = ssub.s32 %s21, 1
    %s27 = ssub.s32 %s21, 2
    %s28 = sadd.s32 %s21, 1
    %s29 = ssub.s32 %s21, %s28
    %p30 = scmp.eq.s32.totalorder %s29, 0
    %s32 = sadd.s32 %s31, 1
    %s33 = scalar_select %p30, %s31, %s32
    %p36 = pneg %p30
    %p37 = scmp.eq.s32.totalorder %s21, 1
    %p38 = por %p36, %p37
    %p39 = scmp.ne.s32.totalorder %s31, %s34
    %p40 = scmp.eq.s32.totalorder %s21, 0
    %p41 = por %p39, %p40
    %p42 = scmp.ne.s32.totalorder %s31, %s34
    %p43 = scmp.eq.s32.totalorder %s26, 1
    %p44 = por %p42, %p43
    %p45 = scmp.ne.s32.totalorder %s34, %s35
    %p46 = scmp.eq.s32.totalorder %s26, 0
    %p47 = por %p45, %p46
    %p48 = scmp.ne.s32.totalorder %s34, %s35
    %p49 = scmp.eq.s32.totalorder %s27, 1
    %p50 = por %p48, %p49
    %p52 = scmp.ne.s32.totalorder %s35, %s51
    %p53 = scmp.eq.s32.totalorder %s27, 0
    %p54 = por %p52, %p53
    %s56 = sadd.s32 %s55, 1
    %p59 = scmp.eq.s32.totalorder %s21, 1
    %p60 = scmp.ne.s32.totalorder %s55, %s57
    %p61 = scmp.eq.s32.totalorder %s21, 0
    %p62 = por %p60, %p61
    %p63 = scmp.ne.s32.totalorder %s55, %s57
    %p64 = scmp.eq.s32.totalorder %s26, 1
    %p65 = por %p63, %p64
    %p66 = scmp.ne.s32.totalorder %s57, %s58
    %p67 = scmp.eq.s32.totalorder %s26, 0
    %p68 = por %p66, %p67
    %p69 = scmp.ne.s32.totalorder %s57, %s58
    %p70 = scmp.eq.s32.totalorder %s27, 1
    %p71 = por %p69, %p70
    %p73 = scmp.ne.s32.totalorder %s58, %s72
    %p74 = scmp.eq.s32.totalorder %s27, 0
    %p75 = por %p73, %p74
    %s77 = sadd.s32 %s76, 1
    %p80 = scmp.eq.s32.totalorder %s21, 1
    %p81 = scmp.ne.s32.totalorder %s76, %s78
    %p82 = scmp.eq.s32.totalorder %s21, 0
    %p83 = por %p81, %p82
    %p84 = scmp.ne.s32.totalorder %s76, %s78
    %p85 = scmp.eq.s32.totalorder %s26, 1
    %p86 = por %p84, %p85
    %p87 = scmp.ne.s32.totalorder %s78, %s79
    %p88 = scmp.eq.s32.totalorder %s26, 0
    %p89 = por %p87, %p88
    %p90 = scmp.ne.s32.totalorder %s78, %s79
    %p91 = scmp.eq.s32.totalorder %s27, 1
    %p92 = por %p90, %p91
    %p94 = scmp.ne.s32.totalorder %s79, %s93
    %p95 = scmp.eq.s32.totalorder %s27, 0
    %p96 = por %p94, %p95
    %s98 = sadd.s32 %s97, 1
    %p101 = scmp.eq.s32.totalorder %s21, 1
    %p102 = scmp.ne.s32.totalorder %s97, %s99
    %p103 = scmp.eq.s32.totalorder %s21, 0
    %p104 = por %p102, %p103
    %p105 = scmp.ne.s32.totalorder %s97, %s99
    %p106 = scmp.eq.s32.totalorder %s26, 1
    %p107 = por %p105, %p106
    %p108 = scmp.ne.s32.totalorder %s99, %s100
    %p109 = scmp.eq.s32.totalorder %s26, 0
    %p110 = por %p108, %p109
    %p111 = scmp.ne.s32.totalorder %s99, %s100
    %p112 = scmp.eq.s32.totalorder %s27, 1
    %p113 = por %p111, %p112
    %p115 = scmp.ne.s32.totalorder %s100, %s114
    %p116 = scmp.eq.s32.totalorder %s27, 0
    %p117 = por %p115, %p116
    %s119 = sadd.s32 %s118, 1
    %p122 = scmp.eq.s32.totalorder %s21, 1
    %p123 = scmp.ne.s32.totalorder %s118, %s120
    %p124 = scmp.eq.s32.totalorder %s21, 0
    %p125 = por %p123, %p124
    %p126 = scmp.ne.s32.totalorder %s118, %s120
    %p127 = scmp.eq.s32.totalorder %s26, 1
    %p128 = por %p126, %p127
    %p129 = scmp.ne.s32.totalorder %s120, %s121
    %p130 = scmp.eq.s32.totalorder %s26, 0
    %p131 = por %p129, %p130
    %p132 = scmp.ne.s32.totalorder %s120, %s121
    %p133 = scmp.eq.s32.totalorder %s27, 1
    %p134 = por %p132, %p133
    %p136 = scmp.ne.s32.totalorder %s121, %s135
    %p137 = scmp.eq.s32.totalorder %s27, 0
    %p138 = por %p136, %p137
    %s140 = sadd.s32 %s139, 1
    %p143 = scmp.eq.s32.totalorder %s21, 1
    %p144 = scmp.ne.s32.totalorder %s139, %s141
    %p145 = scmp.eq.s32.totalorder %s21, 0
    %p146 = por %p144, %p145
    %p147 = scmp.ne.s32.totalorder %s139, %s141
    %p148 = scmp.eq.s32.totalorder %s26, 1
    %p149 = por %p147, %p148
    %p150 = scmp.ne.s32.totalorder %s141, %s142
    %p151 = scmp.eq.s32.totalorder %s26, 0
    %p152 = por %p150, %p151
    %p153 = scmp.ne.s32.totalorder %s141, %s142
    %p154 = scmp.eq.s32.totalorder %s27, 1
    %p155 = por %p153, %p154
    %p157 = scmp.ne.s32.totalorder %s142, %s156
    %p158 = scmp.eq.s32.totalorder %s27, 0
    %p159 = por %p157, %p158
    %s161 = sadd.s32 %s160, 1
    %p164 = scmp.eq.s32.totalorder %s21, 1
    %p165 = scmp.ne.s32.totalorder %s160, %s162
    %p166 = scmp.eq.s32.totalorder %s21, 0
    %p167 = por %p165, %p166
    %p168 = scmp.ne.s32.totalorder %s160, %s162
    %p169 = scmp.eq.s32.totalorder %s26, 1
    %p170 = por %p168, %p169
    %p171 = scmp.ne.s32.totalorder %s162, %s163
    %p172 = scmp.eq.s32.totalorder %s26, 0
    %p173 = por %p171, %p172
    %p174 = scmp.ne.s32.totalorder %s162, %s163
    %p175 = scmp.eq.s32.totalorder %s27, 1
    %p176 = por %p174, %p175
    %p178 = scmp.ne.s32.totalorder %s163, %s177
    %p179 = scmp.eq.s32.totalorder %s27, 0
    %p180 = por %p178, %p179
    %s182 = sadd.s32 %s181, 1
    %p185 = scmp.eq.s32.totalorder %s21, 1
    %p186 = scmp.ne.s32.totalorder %s181, %s183
    %p187 = scmp.eq.s32.totalorder %s21, 0
    %p188 = por %p186, %p187
    %p189 = scmp.ne.s32.totalorder %s181, %s183
    %p190 = scmp.eq.s32.totalorder %s26, 1
    %p191 = por %p189, %p190
    %p192 = scmp.ne.s32.totalorder %s183, %s184
    %p193 = scmp.eq.s32.totalorder %s26, 0
    %p194 = por %p192, %p193
    %p195 = scmp.ne.s32.totalorder %s183, %s184
    %p196 = scmp.eq.s32.totalorder %s27, 1
    %p197 = por %p195, %p196
    %p199 = scmp.ne.s32.totalorder %s184, %s198
    %p200 = scmp.eq.s32.totalorder %s27, 0
    %p201 = por %p199, %p200
    %s203 = sadd.s32 %s202, 1
    %p206 = scmp.eq.s32.totalorder %s21, 1
    %p207 = scmp.ne.s32.totalorder %s202, %s204
    %p208 = scmp.eq.s32.totalorder %s21, 0
    %p209 = por %p207, %p208
    %p210 = scmp.ne.s32.totalorder %s202, %s204
    %p211 = scmp.eq.s32.totalorder %s26, 1
    %p212 = por %p210, %p211
    %p213 = scmp.ne.s32.totalorder %s204, %s205
    %p214 = scmp.eq.s32.totalorder %s26, 0
    %p215 = por %p213, %p214
    %p216 = scmp.ne.s32.totalorder %s204, %s205
    %p217 = scmp.eq.s32.totalorder %s27, 1
    %p218 = por %p216, %p217
    %p220 = scmp.ne.s32.totalorder %s205, %s219
    %p221 = scmp.eq.s32.totalorder %s27, 0
    %p222 = por %p220, %p221
    %s224 = sadd.s32 %s223, 1
    %p227 = scmp.eq.s32.totalorder %s21, 1
    %p228 = scmp.ne.s32.totalorder %s223, %s225
    %p229 = scmp.eq.s32.totalorder %s21, 0
    %p230 = por %p228, %p229
    %p231 = scmp.ne.s32.totalorder %s223, %s225
    %p232 = scmp.eq.s32.totalorder %s26, 1
    %p233 = por %p231, %p232
    %p234 = scmp.ne.s32.totalorder %s225, %s226
    %p235 = scmp.eq.s32.totalorder %s26, 0
    %p236 = por %p234, %p235
    %p237 = scmp.ne.s32.totalorder %s225, %s226
    %p238 = scmp.eq.s32.totalorder %s27, 1
    %p239 = por %p237, %p238
    %p241 = scmp.ne.s32.totalorder %s226, %s240
    %p242 = scmp.eq.s32.totalorder %s27, 0
    %p243 = por %p241, %p242
    %s245 = sadd.s32 %s244, 1
    %p248 = scmp.eq.s32.totalorder %s21, 1
    %p249 = scmp.ne.s32.totalorder %s244, %s246
    %p250 = scmp.eq.s32.totalorder %s21, 0
    %p251 = por %p249, %p250
    %p252 = scmp.ne.s32.totalorder %s244, %s246
    %p253 = scmp.eq.s32.totalorder %s26, 1
    %p254 = por %p252, %p253
    %p255 = scmp.ne.s32.totalorder %s246, %s247
    %p256 = scmp.eq.s32.totalorder %s26, 0
    %p257 = por %p255, %p256
    %p258 = scmp.ne.s32.totalorder %s246, %s247
    %p259 = scmp.eq.s32.totalorder %s27, 1
    %p260 = por %p258, %p259
    %p262 = scmp.ne.s32.totalorder %s247, %s261
    %p263 = scmp.eq.s32.totalorder %s27, 0
    %p264 = por %p262, %p263
    %s266 = sadd.s32 %s265, 1
    %p269 = scmp.eq.s32.totalorder %s21, 1
    %p270 = scmp.ne.s32.totalorder %s265, %s267
    %p271 = scmp.eq.s32.totalorder %s21, 0
    %p272 = por %p270, %p271
    %p273 = scmp.ne.s32.totalorder %s265, %s267
    %p274 = scmp.eq.s32.totalorder %s26, 1
    %p275 = por %p273, %p274
    %p276 = scmp.ne.s32.totalorder %s267, %s268
    %p277 = scmp.eq.s32.totalorder %s26, 0
    %p278 = por %p276, %p277
    %p279 = scmp.ne.s32.totalorder %s267, %s268
    %p280 = scmp.eq.s32.totalorder %s27, 1
    %p281 = por %p279, %p280
    %p283 = scmp.ne.s32.totalorder %s268, %s282
    %p284 = scmp.eq.s32.totalorder %s27, 0
    %p285 = por %p283, %p284
    %s287 = sadd.s32 %s286, 1
    %p290 = scmp.eq.s32.totalorder %s21, 1
    %p291 = scmp.ne.s32.totalorder %s286, %s288
    %p292 = scmp.eq.s32.totalorder %s21, 0
    %p293 = por %p291, %p292
    %p294 = scmp.ne.s32.totalorder %s286, %s288
    %p295 = scmp.eq.s32.totalorder %s26, 1
    %p296 = por %p294, %p295
    %p297 = scmp.ne.s32.totalorder %s288, %s289
    %p298 = scmp.eq.s32.totalorder %s26, 0
    %p299 = por %p297, %p298
    %p300 = scmp.ne.s32.totalorder %s288, %s289
    %p301 = scmp.eq.s32.totalorder %s27, 1
    %p302 = por %p300, %p301
    %p304 = scmp.ne.s32.totalorder %s289, %s303
    %p305 = scmp.eq.s32.totalorder %s27, 0
    %p306 = por %p304, %p305
    %s308 = sadd.s32 %s307, 1
    %p311 = scmp.eq.s32.totalorder %s21, 1
    %p312 = scmp.ne.s32.totalorder %s307, %s309
    %p313 = scmp.eq.s32.totalorder %s21, 0
    %p314 = por %p312, %p313
    %p315 = scmp.ne.s32.totalorder %s307, %s309
    %p316 = scmp.eq.s32.totalorder %s26, 1
    %p317 = por %p315, %p316
    %p318 = scmp.ne.s32.totalorder %s309, %s310
    %p319 = scmp.eq.s32.totalorder %s26, 0
    %p320 = por %p318, %p319
    %p321 = scmp.ne.s32.totalorder %s309, %s310
    %p322 = scmp.eq.s32.totalorder %s27, 1
    %p323 = por %p321, %p322
    %p325 = scmp.ne.s32.totalorder %s310, %s324
    %p326 = scmp.eq.s32.totalorder %s27, 0
    %p327 = por %p325, %p326
    %s329 = sadd.s32 %s328, 1
    %p332 = scmp.eq.s32.totalorder %s21, 1
    %p333 = scmp.ne.s32.totalorder %s328, %s330
    %p334 = scmp.eq.s32.totalorder %s21, 0
    %p335 = por %p333, %p334
    %p336 = scmp.ne.s32.totalorder %s328, %s330
    %p337 = scmp.eq.s32.totalorder %s26, 1
    %p338 = por %p336, %p337
    %p339 = scmp.ne.s32.totalorder %s330, %s331
    %p340 = scmp.eq.s32.totalorder %s26, 0
    %p341 = por %p339, %p340
    %p342 = scmp.ne.s32.totalorder %s330, %s331
    %p343 = scmp.eq.s32.totalorder %s27, 1
    %p344 = por %p342, %p343
    %p346 = scmp.ne.s32.totalorder %s331, %s345
    %p347 = scmp.eq.s32.totalorder %s27, 0
    %p348 = por %p346, %p347
    %s349 = ssub.s32 %s21, %s28
    %p350 = scmp.eq.s32.totalorder %s349, 0
    %s352 = sadd.s32 %s351, 1
    %s353 = scalar_select %p350, %s351, %s352
    %p356 = pneg %p350
    %p357 = scmp.eq.s32.totalorder %s21, 1
    %p358 = por %p356, %p357
    %p359 = scmp.ne.s32.totalorder %s351, %s354
    %p360 = scmp.eq.s32.totalorder %s21, 0
    %p361 = por %p359, %p360
    %p362 = scmp.ne.s32.totalorder %s351, %s354
    %p363 = scmp.eq.s32.totalorder %s26, 1
    %p364 = por %p362, %p363
    %p365 = scmp.ne.s32.totalorder %s354, %s355
    %p366 = scmp.eq.s32.totalorder %s26, 0
    %p367 = por %p365, %p366
    %p368 = scmp.ne.s32.totalorder %s354, %s355
    %p369 = scmp.eq.s32.totalorder %s27, 1
    %p370 = por %p368, %p369
    %p372 = scmp.ne.s32.totalorder %s355, %s371
    %p373 = scmp.eq.s32.totalorder %s27, 0
    %p374 = por %p372, %p373
    %p375 = scmp.le.s32.totalorder 1, %s21
    %p376 = scmp.lt.s32.totalorder %s21, 3
    %p377 = pnand %p375, %p376
    %p378 = pneg %p377
    // Predicated region
    $region9: #{net_forward.1} parent=5 // pred_check
      _
    $region10: #{net_forward.1} parent=5 // pred_check_branch
      %380 = sbr.rel (%p377) target = $region12
    $region11: #{net_forward.1} parent=5 // pred_region
      %s381 = ssub.s32 %s21, 1
      // Predicated region
      $region13: #{net_forward.1} parent=11 // pred_check
        %p382 = pneg %p68
      $region14: #{net_forward.1} parent=11 // pred_check_branch
        %384 = sbr.rel (%p382) target = $region16
      $region15: #{net_forward.1} parent=11 // pred_region
        _
      $region16: #{net_forward.1} parent=11 // pred_fallthru
        _
      // Predicated region
      $region17: #{net_forward.1} parent=11 // pred_check
        %p385 = pneg %p89
      $region18: #{net_forward.1} parent=11 // pred_check_branch
        %387 = sbr.rel (%p385) target = $region20
      $region19: #{net_forward.1} parent=11 // pred_region
        _
      $region20: #{net_forward.1} parent=11 // pred_fallthru
        _
      // Predicated region
      $region21: #{net_forward.1} parent=11 // pred_check
        %p388 = pneg %p110
      $region22: #{net_forward.1} parent=11 // pred_check_branch
        %390 = sbr.rel (%p388) target = $region24
      $region23: #{net_forward.1} parent=11 // pred_region
        _
      $region24: #{net_forward.1} parent=11 // pred_fallthru
        _
      // Predicated region
      $region25: #{net_forward.1} parent=11 // pred_check
        %p391 = pneg %p131
      $region26: #{net_forward.1} parent=11 // pred_check_branch
        %393 = sbr.rel (%p391) target = $region28
      $region27: #{net_forward.1} parent=11 // pred_region
        _
      $region28: #{net_forward.1} parent=11 // pred_fallthru
        _
      // Predicated region
      $region29: #{net_forward.1} parent=11 // pred_check
        %p394 = pneg %p152
      $region30: #{net_forward.1} parent=11 // pred_check_branch
        %396 = sbr.rel (%p394) target = $region32
      $region31: #{net_forward.1} parent=11 // pred_region
        _
      $region32: #{net_forward.1} parent=11 // pred_fallthru
        _
      // Predicated region
      $region33: #{net_forward.1} parent=11 // pred_check
        %p397 = pneg %p173
      $region34: #{net_forward.1} parent=11 // pred_check_branch
        %399 = sbr.rel (%p397) target = $region36
      $region35: #{net_forward.1} parent=11 // pred_region
        _
      $region36: #{net_forward.1} parent=11 // pred_fallthru
        _
      // Predicated region
      $region37: #{net_forward.1} parent=11 // pred_check
        %p400 = pneg %p194
      $region38: #{net_forward.1} parent=11 // pred_check_branch
        %402 = sbr.rel (%p400) target = $region40
      $region39: #{net_forward.1} parent=11 // pred_region
        _
      $region40: #{net_forward.1} parent=11 // pred_fallthru
        _
      // Predicated region
      $region41: #{net_forward.1} parent=11 // pred_check
        %p403 = pneg %p215
      $region42: #{net_forward.1} parent=11 // pred_check_branch
        %405 = sbr.rel (%p403) target = $region44
      $region43: #{net_forward.1} parent=11 // pred_region
        _
      $region44: #{net_forward.1} parent=11 // pred_fallthru
        _
      // Predicated region
      $region45: #{net_forward.1} parent=11 // pred_check
        %p406 = pneg %p236
      $region46: #{net_forward.1} parent=11 // pred_check_branch
        %408 = sbr.rel (%p406) target = $region48
      $region47: #{net_forward.1} parent=11 // pred_region
        _
      $region48: #{net_forward.1} parent=11 // pred_fallthru
        _
      // Predicated region
      $region49: #{net_forward.1} parent=11 // pred_check
        %p409 = pneg %p257
      $region50: #{net_forward.1} parent=11 // pred_check_branch
        %411 = sbr.rel (%p409) target = $region52
      $region51: #{net_forward.1} parent=11 // pred_region
        _
      $region52: #{net_forward.1} parent=11 // pred_fallthru
        _
      // Predicated region
      $region53: #{net_forward.1} parent=11 // pred_check
        %p412 = pneg %p278
      $region54: #{net_forward.1} parent=11 // pred_check_branch
        %414 = sbr.rel (%p412) target = $region56
      $region55: #{net_forward.1} parent=11 // pred_region
        _
      $region56: #{net_forward.1} parent=11 // pred_fallthru
        _
      // Predicated region
      $region57: #{net_forward.1} parent=11 // pred_check
        %p415 = pneg %p299
      $region58: #{net_forward.1} parent=11 // pred_check_branch
        %417 = sbr.rel (%p415) target = $region60
      $region59: #{net_forward.1} parent=11 // pred_region
        _
      $region60: #{net_forward.1} parent=11 // pred_fallthru
        _
      // Predicated region
      $region61: #{net_forward.1} parent=11 // pred_check
        %p418 = pneg %p320
      $region62: #{net_forward.1} parent=11 // pred_check_branch
        %420 = sbr.rel (%p418) target = $region64
      $region63: #{net_forward.1} parent=11 // pred_region
        _
      $region64: #{net_forward.1} parent=11 // pred_fallthru
        _
      // Predicated region
      $region65: #{net_forward.1} parent=11 // pred_check
        %p421 = pneg %p341
      $region66: #{net_forward.1} parent=11 // pred_check_branch
        %423 = sbr.rel (%p421) target = $region68
      $region67: #{net_forward.1} parent=11 // pred_region
        _
      $region68: #{net_forward.1} parent=11 // pred_fallthru
        _
    $region12: #{net_forward.1} parent=5 // pred_fallthru
      _
    %p424 = scmp.lt.s32.totalorder %s21, 2
    // Predicated region
    $region69: #{net_forward.1} parent=5 // pred_check
      %p425 = pneg %p424
    $region70: #{net_forward.1} parent=5 // pred_check_branch
      %427 = sbr.rel (%p425) target = $region72
    $region71: #{net_forward.1} parent=5 // pred_region
      // Predicated region
      $region73: #{net_forward.1} parent=71 // pred_check
        %p428 = pneg %p41
      $region74: #{net_forward.1} parent=71 // pred_check_branch
        %430 = sbr.rel (%p428) target = $region76
      $region75: #{net_forward.1} parent=71 // pred_region
        %s431 = smul.u32 2, %s21
        %p432 = scmp.lt.s32.totalorder %s431, 3
        %s433 = scalar_select %p432, %s431, 3
        %s434 = smul.addr %s433, 4
        %s435 = smul.addr %s434, 8
        %s436 = scalar_lea.vmem %s0, %s435
        %s437 = smul.u32 2, %s21
      $region76: #{net_forward.1} parent=71 // pred_fallthru
        _
    $region72: #{net_forward.1} parent=5 // pred_fallthru
      _
    %p438 = scmp.le.s32.totalorder 1, %s21
    %p439 = scmp.lt.s32.totalorder %s21, 3
    %p440 = pnand %p438, %p439
    %p441 = pneg %p440
    // Predicated region
    $region77: #{net_forward.1} parent=5 // pred_check
      _
    $region78: #{net_forward.1} parent=5 // pred_check_branch
      %443 = sbr.rel (%p440) target = $region80
    $region79: #{net_forward.1} parent=5 // pred_region
      %s444 = ssub.s32 %s21, 1
      %s445 = smul.u32 2, %s26
      %p446 = scmp.lt.s32.totalorder %s445, 3
      %s447 = scalar_select %p446, %s445, 3
      %s448 = smul.addr %s447, 4
      %s449 = smul.addr %s448, 8
      %s450 = scalar_lea.vmem %s0, %s449
      %p451 = pneg %p47
      %p452 = pneg %p44
      %p453 = pneg %p68
      %p454 = pneg %p65
      %p455 = pneg %p89
      %p456 = pneg %p86
      %p457 = pneg %p110
      %p458 = pneg %p107
      %p459 = pneg %p131
      %p460 = pneg %p128
      %p461 = pneg %p152
      %p462 = pneg %p149
      %p463 = pneg %p173
      %p464 = pneg %p170
      %p465 = pneg %p194
      %p466 = pneg %p191
      %p467 = pneg %p215
      %p468 = pneg %p212
      %p469 = pneg %p236
      %p470 = pneg %p233
      %p471 = pneg %p257
      %p472 = pneg %p254
      %p473 = pneg %p278
      %p474 = pneg %p275
      %p475 = pneg %p299
      %p476 = pneg %p296
      %p477 = pneg %p320
      %p478 = pneg %p317
      %p479 = pneg %p341
      %p480 = pneg %p338
      %p481 = pneg %p367
      %p482 = pneg %p364
      %p483 = scmp.lt.s32.totalorder %s26, 1
      %s484 = scalar_select %p483, %s26, 1
      %s485 = smul.addr %s484, 2
      %s486 = scalar_lea.vmem %s15, %s485
      %s487 = smul.u32 2, %s26
      %p488 = scmp.lt.s32.totalorder %s487, 3
      %s489 = scalar_select %p488, %s487, 3
      %s490 = smul.addr %s489, 4
      %s491 = smul.addr %s490, 8
      %s492 = scalar_lea.vmem %s0, %s491
      %s493 = smul.u32 2, %s26
      %p494 = scmp.lt.s32.totalorder %s26, 1
      %s495 = scalar_select %p494, %s26, 1
      %s496 = smul.addr %s495, 2
      %s497 = scalar_lea.vmem %s15, %s496
      %v498 = vld [vmem:[%s2] sm:$0x3]
      %v499 = vld [vmem:[%s4] sm:$0x3]
      %v500 = vld [vmem:[%s5] sm:$0xff]
      %v501 = vld [vmem:[%s5 + $0x8] sm:$0x3f]
      %s502 = scalar_lea.vmem %s5, 16
      %v503 = vld [vmem:[%s502] sm:$0xff]
      %v504 = vld [vmem:[%s502 + $0x8] sm:$0x3f]
      %v505 = vld [vmem:[%s6] sm:$0xff]
      %v506 = vld [vmem:[%s6 + $0x8] sm:$0xff]
      %v507 = vld [vmem:[%s6 + $0x10] sm:$0xff]
      %v508 = vld [vmem:[%s6 + $0x18] sm:$0xff]
      %v509 = vld [vmem:[%s6 + $0x20] sm:$0xff]
      %v510 = vld [vmem:[%s6 + $0x28] sm:$0xff]
      %v511 = vld [vmem:[%s6 + $0x30] sm:$0xff]
      %v512 = vld [vmem:[%s6 + $0x38] sm:$0xff]
      %v513 = vld [vmem:[%s6 + $0x40] sm:$0xff]
      %v514 = vld [vmem:[%s6 + $0x48] sm:$0xff]
      %v515 = vld [vmem:[%s6 + $0x50] sm:$0xff]
      %v516 = vld [vmem:[%s6 + $0x58] sm:$0xff]
      %v517 = vld [vmem:[%s6 + $0x60] sm:$0xff]
      %v518 = vld [vmem:[%s6 + $0x68] sm:$0xff]
      %v519 = vld [vmem:[%s6 + $0x70] sm:$0xff]
      %v520 = vld [vmem:[%s6 + $0x78] sm:$0xff]
      %v521 = vld [vmem:[%s6 + $0x80] sm:$0xff]
      %v522 = vld [vmem:[%s6 + $0x88] sm:$0xff]
      %v523 = vld [vmem:[%s6 + $0x90] sm:$0xff]
      %v524 = vld [vmem:[%s6 + $0x98] sm:$0xff]
      %v525 = vld [vmem:[%s6 + $0xa0] sm:$0xff]
      %s526 = scalar_lea.vmem %s6, 168
      %v527 = vld [vmem:[%s526] sm:$0xff]
      %v528 = vld [vmem:[%s526 + $0x8] sm:$0xff]
      %v529 = vld [vmem:[%s526 + $0x10] sm:$0xff]
      %v530 = vld [vmem:[%s526 + $0x18] sm:$0xff]
      %v531 = vld [vmem:[%s526 + $0x20] sm:$0xff]
      %v532 = vld [vmem:[%s526 + $0x28] sm:$0xff]
      %v533 = vld [vmem:[%s526 + $0x30] sm:$0xff]
      %v534 = vld [vmem:[%s526 + $0x38] sm:$0xff]
      %v535 = vld [vmem:[%s526 + $0x40] sm:$0xff]
      %v536 = vld [vmem:[%s526 + $0x48] sm:$0xff]
      %v537 = vld [vmem:[%s526 + $0x50] sm:$0xff]
      %v538 = vld [vmem:[%s526 + $0x58] sm:$0xff]
      %v539 = vld [vmem:[%s526 + $0x60] sm:$0xff]
      %v540 = vld [vmem:[%s526 + $0x68] sm:$0xff]
      %v541 = vld [vmem:[%s526 + $0x70] sm:$0xff]
      %v542 = vld [vmem:[%s526 + $0x78] sm:$0xff]
      %v543 = vld [vmem:[%s526 + $0x80] sm:$0xff]
      %v544 = vld [vmem:[%s526 + $0x88] sm:$0xff]
      %v545 = vld [vmem:[%s526 + $0x90] sm:$0xff]
      %v546 = vld [vmem:[%s526 + $0x98] sm:$0xff]
      %v547 = vld [vmem:[%s526 + $0xa0] sm:$0xff]
      %v548 = vld [vmem:[%s7] sm:$0x1f]
      %s549 = scalar_lea.vmem %s7, 8
      %v550 = vld [vmem:[%s549] sm:$0x1f]
      %v551 = vld [vmem:[%s8] sm:$0xff]
      %v552 = vld [vmem:[%s8 + $0x8] sm:$0xff]
      %v553 = vld [vmem:[%s8 + $0x10] sm:$0xff]
      %v554 = vld [vmem:[%s8 + $0x18] sm:$0xff]
      %v555 = vld [vmem:[%s8 + $0x20] sm:$0xff]
      %v556 = vld [vmem:[%s8 + $0x28] sm:$0xff]
      %v557 = vld [vmem:[%s8 + $0x30] sm:$0xff]
      %v558 = vld [vmem:[%s8 + $0x38] sm:$0xff]
      %v559 = vld [vmem:[%s8 + $0x40] sm:$0xff]
      %v560 = vld [vmem:[%s8 + $0x48] sm:$0xff]
      %v561 = vld [vmem:[%s8 + $0x50] sm:$0xff]
      %v562 = vld [vmem:[%s8 + $0x58] sm:$0xff]
      %v563 = vld [vmem:[%s8 + $0x60] sm:$0xff]
      %v564 = vld [vmem:[%s8 + $0x68] sm:$0xff]
      %v565 = vld [vmem:[%s8 + $0x70] sm:$0xff]
      %v566 = vld [vmem:[%s8 + $0x78] sm:$0xff]
      %v567 = vld [vmem:[%s8 + $0x80] sm:$0xff]
      %v568 = vld [vmem:[%s8 + $0x88] sm:$0xff]
      %v569 = vld [vmem:[%s8 + $0x90] sm:$0xff]
      %v570 = vld [vmem:[%s8 + $0x98] sm:$0xff]
      %s571 = scalar_lea.vmem %s8, 160
      %v572 = vld [vmem:[%s571] sm:$0xff]
      %v573 = vld [vmem:[%s571 + $0x8] sm:$0xff]
      %v574 = vld [vmem:[%s571 + $0x10] sm:$0xff]
      %v575 = vld [vmem:[%s571 + $0x18] sm:$0xff]
      %v576 = vld [vmem:[%s571 + $0x20] sm:$0xff]
      %v577 = vld [vmem:[%s571 + $0x28] sm:$0xff]
      %v578 = vld [vmem:[%s571 + $0x30] sm:$0xff]
      %v579 = vld [vmem:[%s571 + $0x38] sm:$0xff]
      %v580 = vld [vmem:[%s571 + $0x40] sm:$0xff]
      %v581 = vld [vmem:[%s571 + $0x48] sm:$0xff]
      %v582 = vld [vmem:[%s571 + $0x50] sm:$0xff]
      %v583 = vld [vmem:[%s571 + $0x58] sm:$0xff]
      %v584 = vld [vmem:[%s571 + $0x60] sm:$0xff]
      %v585 = vld [vmem:[%s571 + $0x68] sm:$0xff]
      %v586 = vld [vmem:[%s571 + $0x70] sm:$0xff]
      %v587 = vld [vmem:[%s571 + $0x78] sm:$0xff]
      %v588 = vld [vmem:[%s571 + $0x80] sm:$0xff]
      %v589 = vld [vmem:[%s571 + $0x88] sm:$0xff]
      %v590 = vld [vmem:[%s571 + $0x90] sm:$0xff]
      %v591 = vld [vmem:[%s571 + $0x98] sm:$0xff]
      %v592 = vld [vmem:[%s492] sm:$0xff]
      %v593 = vld [vmem:[%s492 + $0x8] sm:$0xff]
      %v594 = vld [vmem:[%s492 + $0x10] sm:$0xff]
      %v595 = vld [vmem:[%s492 + $0x18] sm:$0xff]
      %v596 = vld [vmem:[%s1] sm:$0xff]
      %v597 = vld [vmem:[%s1 + $0x8] sm:$0xff]
      %v598 = vld [vmem:[%s1 + $0x10] sm:$0xff]
      %v599 = vld [vmem:[%s1 + $0x18] sm:$0xff]
      %v600 = vld [vmem:[%s1 + $0x20] sm:$0xff]
      %v601 = vld [vmem:[%s1 + $0x28] sm:$0xff]
      %v602 = vld [vmem:[%s1 + $0x30] sm:$0xff]
      %v603 = vld [vmem:[%s1 + $0x38] sm:$0xff]
      %v604 = vld [vmem:[%s1 + $0x40] sm:$0xff]
      %v605 = vld [vmem:[%s1 + $0x48] sm:$0xff]
      %v606 = vld [vmem:[%s1 + $0x50] sm:$0xff]
      %v607 = vld [vmem:[%s1 + $0x58] sm:$0xff]
      %v608 = vld [vmem:[%s1 + $0x60] sm:$0xff]
      %v609 = vld [vmem:[%s1 + $0x68] sm:$0xff]
      %v610 = vld [vmem:[%s1 + $0x70] sm:$0xff]
      %v611 = vld [vmem:[%s1 + $0x78] sm:$0xff]
      %v612 = vld [vmem:[%s1 + $0x80] sm:$0xff]
      %v613 = vld [vmem:[%s1 + $0x88] sm:$0xff]
      %v614 = vld [vmem:[%s1 + $0x90] sm:$0xff]
      %v615 = vld [vmem:[%s1 + $0x98] sm:$0xff]
      %v616 = vld [vmem:[%s1 + $0xa0] sm:$0xff]
      %v617 = vld [vmem:[%s1 + $0xa8] sm:$0xff]
      %v618 = vld [vmem:[%s1 + $0xb0] sm:$0xff]
      %v619 = vld [vmem:[%s1 + $0xb8] sm:$0xff]
      %s620 = scalar_lea.vmem %s1, 192
      %v621 = vld [vmem:[%s620] sm:$0xff]
      %v622 = vld [vmem:[%s620 + $0x8] sm:$0xff]
      %v623 = vld [vmem:[%s620 + $0x10] sm:$0xff]
      %v624 = vld [vmem:[%s620 + $0x18] sm:$0xff]
      %v625 = vld [vmem:[%s620 + $0x20] sm:$0xff]
      %v626 = vld [vmem:[%s620 + $0x28] sm:$0xff]
      %v627 = vld [vmem:[%s620 + $0x30] sm:$0xff]
      %v628 = vld [vmem:[%s620 + $0x38] sm:$0xff]
      %v629 = vld [vmem:[%s620 + $0x40] sm:$0xff]
      %v630 = vld [vmem:[%s620 + $0x48] sm:$0xff]
      %v631 = vld [vmem:[%s620 + $0x50] sm:$0xff]
      %v632 = vld [vmem:[%s620 + $0x58] sm:$0xff]
      %v633 = vld [vmem:[%s620 + $0x60] sm:$0xff]
      %v634 = vld [vmem:[%s620 + $0x68] sm:$0xff]
      %v635 = vld [vmem:[%s620 + $0x70] sm:$0xff]
      %v636 = vld [vmem:[%s620 + $0x78] sm:$0xff]
      %v637 = vld [vmem:[%s620 + $0x80] sm:$0xff]
      %v638 = vld [vmem:[%s620 + $0x88] sm:$0xff]
      %v639 = vld [vmem:[%s620 + $0x90] sm:$0xff]
      %v640 = vld [vmem:[%s620 + $0x98] sm:$0xff]
      %v641 = vld [vmem:[%s620 + $0xa0] sm:$0xff]
      %v642 = vld [vmem:[%s620 + $0xa8] sm:$0xff]
      %v643 = vld [vmem:[%s620 + $0xb0] sm:$0xff]
      %v644 = vld [vmem:[%s620 + $0xb8] sm:$0xff]
      %vm649 = vcmask 1046528
      %v650 = vrot.slane %v592, 1
      %v651 = vrot.slane %v593, 1
      %v652 = vsel %vm649, %v650, %v651
      %v653 = vrot.slane %v594, 1
      %v654 = vsel %vm649, %v651, %v653
      %v655 = vrot.slane %v595, 1
      %v656 = vsel %vm649, %v653, %v655
      %vm657 = vcmask 785408
      %v658 = vsel %vm657, %v652, 0
      %v660 = vsel %vm657, %v654, 0
      %v662 = vsel %vm657, %v656, 0
      %v664 = vsel %vm657, %v655, 0
      %666 = vmatprep.subr.mxu0 %v622
      %667 = vmatpush1.msra.mxu0 %v621
      %668 = vmatprep.subr.mxu0 %v624
      %669 = vmatpush1.msra.mxu0 %v623
      %670 = vmatprep.subr.mxu0 %v626
      %671 = vmatpush1.msra.mxu0 %v625
      %672 = vmatprep.subr.mxu0 %v628
      %673 = vmatpush1.msra.mxu0 %v627
      %674 = vmatprep.subr.mxu0 %v630
      %675 = vmatpush1.msra.mxu0 %v629
      %676 = vmatprep.subr.mxu0 %v632
      %677 = vmatpush1.msra.mxu0 %v631
      %678 = vmatprep.subr.mxu0 %v634
      %679 = vmatpush1.msra.mxu0 %v633
      %680 = vmatprep.subr.mxu0 %v636
      %681 = vmatpush1.msra.mxu0 %v635
      %682 = vmatprep.subr.mxu0 %v638
      %683 = vmatpush1.msra.mxu0 %v637
      %684 = vmatprep.subr.mxu0 %v640
      %685 = vmatpush1.msra.mxu0 %v639
      %686 = vmatprep.subr.mxu0 %v642
      %687 = vmatpush1.msra.mxu0 %v641
      %688 = vmatprep.subr.mxu0 %v644
      %689 = vmatpush1.msra.mxu0 %v643
      %690 = vmatprep.subr.mxu0 0.0
      %691 = vmatpush1.msra.mxu0 0.0
      %692 = vmatprep.subr.mxu0 0.0
      %693 = vmatpush1.msra.mxu0 0.0
      %694 = vmatprep.subr.mxu0 0.0
      %695 = vmatpush1.msra.mxu0 0.0
      %696 = vmatprep.subr.mxu0 0.0
      %697 = vmatpush1.msra.mxu0 0.0
      %698 = vmatprep.subr.mxu0 0.0
      %699 = vmatpush1.msra.mxu0 0.0
      %700 = vmatprep.subr.mxu0 0.0
      %701 = vmatpush1.msra.mxu0 0.0
      %702 = vmatprep.subr.mxu0 0.0
      %703 = vmatpush1.msra.mxu0 0.0
      %704 = vmatprep.subr.mxu0 0.0
      %705 = vmatpush1.msra.mxu0 0.0
      %706 = vmatprep.subr.mxu0 0.0
      %707 = vmatpush1.msra.mxu0 0.0
      %708 = vmatprep.subr.mxu0 0.0
      %709 = vmatpush1.msra.mxu0 0.0
      %710 = vmatprep.subr.mxu0 0.0
      %711 = vmatpush1.msra.mxu0 0.0
      %712 = vmatprep.subr.mxu0 0.0
      %713 = vmatpush1.msra.mxu0 0.0
      %714 = vmatprep.subr.mxu0 0.0
      %715 = vmatpush1.msra.mxu0 0.0
      %716 = vmatprep.subr.mxu0 0.0
      %717 = vmatpush1.msra.mxu0 0.0
      %718 = vmatprep.subr.mxu0 0.0
      %719 = vmatpush1.msra.mxu0 0.0
      %720 = vmatprep.subr.mxu0 0.0
      %721 = vmatpush1.msra.mxu0 0.0
      %722 = vmatprep.subr.mxu0 0.0
      %723 = vmatpush1.msra.mxu0 0.0
      %724 = vmatprep.subr.mxu0 0.0
      %725 = vmatpush1.msra.mxu0 0.0
      %726 = vmatprep.subr.mxu0 0.0
      %727 = vmatpush1.msra.mxu0 0.0
      %728 = vmatprep.subr.mxu0 0.0
      %729 = vmatpush1.msra.mxu0 0.0
      %730 = vmatprep.mubr.f32.mxu0 0.0
      %731 = vmatmul.mubr.f32.gmra.mrb[0].mxu0 %v658
      %v732 = vpop.f32.mrb[0].mxu0
      %v733 = vadd.f32 0.0, %v732
      %v734 = vpop.f32.mrb[0].mxu0
      %v735 = vadd.f32 0.0, %v734
      %736 = vmatprep.mubr.f32.mxu0 0.0
      %737 = vmatmul.mubr.f32.gmra.mrb[0].mxu0 %v660
      %v738 = vpop.f32.mrb[0].mxu0
      %v739 = vadd.f32 0.0, %v738
      %v740 = vpop.f32.mrb[0].mxu0
      %v741 = vadd.f32 0.0, %v740
      %742 = vmatprep.mubr.f32.mxu0 0.0
      %743 = vmatmul.mubr.f32.gmra.mrb[0].mxu0 %v662
      %v744 = vpop.f32.mrb[0].mxu0
      %v745 = vadd.f32 0.0, %v744
      %v746 = vpop.f32.mrb[0].mxu0
      %v747 = vadd.f32 0.0, %v746
      %748 = vmatprep.mubr.f32.mxu0 0.0
      %749 = vmatmul.mubr.f32.gmra.mrb[0].mxu0 %v664
      %v750 = vpop.f32.mrb[0].mxu0
      %v751 = vadd.f32 0.0, %v750
      %v752 = vpop.f32.mrb[0].mxu0
      %v753 = vadd.f32 0.0, %v752
      %754 = vdwg.mxu0
      %v755 = vsel %vm657, %v592, 0
      %v757 = vsel %vm657, %v593, 0
      %v759 = vsel %vm657, %v594, 0
      %v761 = vsel %vm657, %v595, 0
      %763 = vmatprep.subr.mxu0 %v597
      %764 = vmatpush1.msra.mxu0 %v596
      %765 = vmatprep.subr.mxu0 %v599
      %766 = vmatpush1.msra.mxu0 %v598
      %767 = vmatprep.subr.mxu0 %v601
      %768 = vmatpush1.msra.mxu0 %v600
      %769 = vmatprep.subr.mxu0 %v603
      %770 = vmatpush1.msra.mxu0 %v602
      %771 = vmatprep.subr.mxu0 %v605
      %772 = vmatpush1.msra.mxu0 %v604
      %773 = vmatprep.subr.mxu0 %v607
      %774 = vmatpush1.msra.mxu0 %v606
      %775 = vmatprep.subr.mxu0 %v609
      %776 = vmatpush1.msra.mxu0 %v608
      %777 = vmatprep.subr.mxu0 %v611
      %778 = vmatpush1.msra.mxu0 %v610
      %779 = vmatprep.subr.mxu0 %v613
      %780 = vmatpush1.msra.mxu0 %v612
      %781 = vmatprep.subr.mxu0 %v615
      %782 = vmatpush1.msra.mxu0 %v614
      %783 = vmatprep.subr.mxu0 %v617
      %784 = vmatpush1.msra.mxu0 %v616
      %785 = vmatprep.subr.mxu0 %v619
      %786 = vmatpush1.msra.mxu0 %v618
      %787 = vmatprep.subr.mxu0 0.0
      %788 = vmatpush1.msra.mxu0 0.0
      %789 = vmatprep.subr.mxu0 0.0
      %790 = vmatpush1.msra.mxu0 0.0
      %791 = vmatprep.subr.mxu0 0.0
      %792 = vmatpush1.msra.mxu0 0.0
      %793 = vmatprep.subr.mxu0 0.0
      %794 = vmatpush1.msra.mxu0 0.0
      %795 = vmatprep.subr.mxu0 0.0
      %796 = vmatpush1.msra.mxu0 0.0
      %797 = vmatprep.subr.mxu0 0.0
      %798 = vmatpush1.msra.mxu0 0.0
      %799 = vmatprep.subr.mxu0 0.0
      %800 = vmatpush1.msra.mxu0 0.0
      %801 = vmatprep.subr.mxu0 0.0
      %802 = vmatpush1.msra.mxu0 0.0
      %803 = vmatprep.subr.mxu0 0.0
      %804 = vmatpush1.msra.mxu0 0.0
      %805 = vmatprep.subr.mxu0 0.0
      %806 = vmatpush1.msra.mxu0 0.0
      %807 = vmatprep.subr.mxu0 0.0
      %808 = vmatpush1.msra.mxu0 0.0
      %809 = vmatprep.subr.mxu0 0.0
      %810 = vmatpush1.msra.mxu0 0.0
      %811 = vmatprep.subr.mxu0 0.0
      %812 = vmatpush1.msra.mxu0 0.0
      %813 = vmatprep.subr.mxu0 0.0
      %814 = vmatpush1.msra.mxu0 0.0
      %815 = vmatprep.subr.mxu0 0.0
      %816 = vmatpush1.msra.mxu0 0.0
      %817 = vmatprep.subr.mxu0 0.0
      %818 = vmatpush1.msra.mxu0 0.0
      %819 = vmatprep.subr.mxu0 0.0
      %820 = vmatpush1.msra.mxu0 0.0
      %821 = vmatprep.subr.mxu0 0.0
      %822 = vmatpush1.msra.mxu0 0.0
      %823 = vmatprep.subr.mxu0 0.0
      %824 = vmatpush1.msra.mxu0 0.0
      %825 = vmatprep.subr.mxu0 0.0
      %826 = vmatpush1.msra.mxu0 0.0
      %827 = vmatprep.mubr.f32.mxu0 0.0
      %828 = vmatmul.mubr.f32.gmra.mrb[0].mxu0 %v755
      %v829 = vpop.f32.mrb[0].mxu0
      %v830 = vadd.f32 %v733, %v829
      %v831 = vpop.f32.mrb[0].mxu0
      %v832 = vadd.f32 %v735, %v831
      %833 = vmatprep.mubr.f32.mxu0 0.0
      %834 = vmatmul.mubr.f32.gmra.mrb[0].mxu0 %v757
      %v835 = vpop.f32.mrb[0].mxu0
      %v836 = vadd.f32 %v739, %v835
      %v837 = vpop.f32.mrb[0].mxu0
      %v838 = vadd.f32 %v741, %v837
      %839 = vmatprep.mubr.f32.mxu0 0.0
      %840 = vmatmul.mubr.f32.gmra.mrb[0].mxu0 %v759
      %v841 = vpop.f32.mrb[0].mxu0
      %v842 = vadd.f32 %v745, %v841
      %v843 = vpop.f32.mrb[0].mxu0
      %v844 = vadd.f32 %v747, %v843
      %845 = vmatprep.mubr.f32.mxu0 0.0
      %846 = vmatmul.mubr.f32.gmra.mrb[0].mxu0 %v761
      %v847 = vpop.f32.mrb[0].mxu0
      %v848 = vadd.f32 %v751, %v847
      %v849 = vpop.f32.mrb[0].mxu0
      %v850 = vadd.f32 %v753, %v849
      %851 = vdwg.mxu0
      %s852 = scalar_lea.vmem %s1, 384
      %v853 = vld [vmem:[%s852] sm:$0xff]
      %v854 = vld [vmem:[%s852 + $0x8] sm:$0xff]
      %v855 = vld [vmem:[%s852 + $0x10] sm:$0xff]
      %v856 = vld [vmem:[%s852 + $0x18] sm:$0xff]
      %v857 = vld [vmem:[%s852 + $0x20] sm:$0xff]
      %v858 = vld [vmem:[%s852 + $0x28] sm:$0xff]
      %v859 = vld [vmem:[%s852 + $0x30] sm:$0xff]
      %v860 = vld [vmem:[%s852 + $0x38] sm:$0xff]
      %v861 = vld [vmem:[%s852 + $0x40] sm:$0xff]
      %v862 = vld [vmem:[%s852 + $0x48] sm:$0xff]
      %v863 = vld [vmem:[%s852 + $0x50] sm:$0xff]
      %v864 = vld [vmem:[%s852 + $0x58] sm:$0xff]
      %v865 = vld [vmem:[%s852 + $0x60] sm:$0xff]
      %v866 = vld [vmem:[%s852 + $0x68] sm:$0xff]
      %v867 = vld [vmem:[%s852 + $0x70] sm:$0xff]
      %v868 = vld [vmem:[%s852 + $0x78] sm:$0xff]
      %v869 = vld [vmem:[%s852 + $0x80] sm:$0xff]
      %v870 = vld [vmem:[%s852 + $0x88] sm:$0xff]
      %v871 = vld [vmem:[%s852 + $0x90] sm:$0xff]
      %v872 = vld [vmem:[%s852 + $0x98] sm:$0xff]
      %v873 = vld [vmem:[%s852 + $0xa0] sm:$0xff]
      %v874 = vld [vmem:[%s852 + $0xa8] sm:$0xff]
      %v875 = vld [vmem:[%s852 + $0xb0] sm:$0xff]
      %v876 = vld [vmem:[%s852 + $0xb8] sm:$0xff]
      %vm877 = vcmask 1045504
      %v878 = vrot.slane %v592, 2
      %v879 = vrot.slane %v593, 2
      %v880 = vsel %vm877, %v878, %v879
      %v881 = vrot.slane %v594, 2
      %v882 = vsel %vm877, %v879, %v881
      %v883 = vrot.slane %v595, 2
      %v884 = vsel %vm877, %v881, %v883
      %v885 = vsel %vm657, %v880, 0
      %v887 = vsel %vm657, %v882, 0
      %v889 = vsel %vm657, %v884, 0
      %v891 = vsel %vm657, %v883, 0
      %893 = vmatprep.subr.mxu0 %v854
      %894 = vmatpush1.msra.mxu0 %v853
      %895 = vmatprep.subr.mxu0 %v856
      %896 = vmatpush1.msra.mxu0 %v855
      %897 = vmatprep.subr.mxu0 %v858
      %898 = vmatpush1.msra.mxu0 %v857
      %899 = vmatprep.subr.mxu0 %v860
      %900 = vmatpush1.msra.mxu0 %v859
      %901 = vmatprep.subr.mxu0 %v862
      %902 = vmatpush1.msra.mxu0 %v861
      %903 = vmatprep.subr.mxu0 %v864
      %904 = vmatpush1.msra.mxu0 %v863
      %905 = vmatprep.subr.mxu0 %v866
      %906 = vmatpush1.msra.mxu0 %v865
      %907 = vmatprep.subr.mxu0 %v868
      %908 = vmatpush1.msra.mxu0 %v867
      %909 = vmatprep.subr.mxu0 %v870
      %910 = vmatpush1.msra.mxu0 %v869
      %911 = vmatprep.subr.mxu0 %v872
      %912 = vmatpush1.msra.mxu0 %v871
      %913 = vmatprep.subr.mxu0 %v874
      %914 = vmatpush1.msra.mxu0 %v873
      %915 = vmatprep.subr.mxu0 %v876
      %916 = vmatpush1.msra.mxu0 %v875
      %917 = vmatprep.subr.mxu0 0.0
      %918 = vmatpush1.msra.mxu0 0.0
      %919 = vmatprep.subr.mxu0 0.0
      %920 = vmatpush1.msra.mxu0 0.0
      %921 = vmatprep.subr.mxu0 0.0
      %922 = vmatpush1.msra.mxu0 0.0
      %923 = vmatprep.subr.mxu0 0.0
      %924 = vmatpush1.msra.mxu0 0.0
      %925 = vmatprep.subr.mxu0 0.0
      %926 = vmatpush1.msra.mxu0 0.0
      %927 = vmatprep.subr.mxu0 0.0
      %928 = vmatpush1.msra.mxu0 0.0
      %929 = vmatprep.subr.mxu0 0.0
      %930 = vmatpush1.msra.mxu0 0.0
      %931 = vmatprep.subr.mxu0 0.0
      %932 = vmatpush1.msra.mxu0 0.0
      %933 = vmatprep.subr.mxu0 0.0
      %934 = vmatpush1.msra.mxu0 0.0
      %935 = vmatprep.subr.mxu0 0.0
      %936 = vmatpush1.msra.mxu0 0.0
      %937 = vmatprep.subr.mxu0 0.0
      %938 = vmatpush1.msra.mxu0 0.0
      %939 = vmatprep.subr.mxu0 0.0
      %940 = vmatpush1.msra.mxu0 0.0
      %941 = vmatprep.subr.mxu0 0.0
      %942 = vmatpush1.msra.mxu0 0.0
      %943 = vmatprep.subr.mxu0 0.0
      %944 = vmatpush1.msra.mxu0 0.0
      %945 = vmatprep.subr.mxu0 0.0
      %946 = vmatpush1.msra.mxu0 0.0
      %947 = vmatprep.subr.mxu0 0.0
      %948 = vmatpush1.msra.mxu0 0.0
      %949 = vmatprep.subr.mxu0 0.0
      %950 = vmatpush1.msra.mxu0 0.0
      %951 = vmatprep.subr.mxu0 0.0
      %952 = vmatpush1.msra.mxu0 0.0
      %953 = vmatprep.subr.mxu0 0.0
      %954 = vmatpush1.msra.mxu0 0.0
      %955 = vmatprep.subr.mxu0 0.0
      %956 = vmatpush1.msra.mxu0 0.0
      %957 = vmatprep.mubr.f32.mxu0 0.0
      %958 = vmatmul.mubr.f32.gmra.mrb[0].mxu0 %v885
      %v959 = vpop.f32.mrb[0].mxu0
      %v960 = vadd.f32 0.0, %v959
      %v961 = vpop.f32.mrb[0].mxu0
      %v962 = vadd.f32 0.0, %v961
      %963 = vmatprep.mubr.f32.mxu0 0.0
      %964 = vmatmul.mubr.f32.gmra.mrb[0].mxu0 %v887
      %v965 = vpop.f32.mrb[0].mxu0
      %v966 = vadd.f32 0.0, %v965
      %v967 = vpop.f32.mrb[0].mxu0
      %v968 = vadd.f32 0.0, %v967
      %969 = vmatprep.mubr.f32.mxu0 0.0
      %970 = vmatmul.mubr.f32.gmra.mrb[0].mxu0 %v889
      %v971 = vpop.f32.mrb[0].mxu0
      %v972 = vadd.f32 0.0, %v971
      %v973 = vpop.f32.mrb[0].mxu0
      %v974 = vadd.f32 0.0, %v973
      %975 = vmatprep.mubr.f32.mxu0 0.0
      %976 = vmatmul.mubr.f32.gmra.mrb[0].mxu0 %v891
      %v977 = vpop.f32.mrb[0].mxu0
      %v978 = vadd.f32 0.0, %v977
      %v979 = vpop.f32.mrb[0].mxu0
      %v980 = vadd.f32 0.0, %v979
      %981 = vdwg.mxu0
      %v982 = vadd.f32 %v830, %v960
      %v983 = vadd.f32 %v832, %v962
      %v984 = vadd.f32 %v836, %v966
      %v985 = vadd.f32 %v838, %v968
      %v986 = vadd.f32 %v842, %v972
      %v987 = vadd.f32 %v844, %v974
      %v988 = vadd.f32 %v848, %v978
      %v989 = vadd.f32 %v850, %v980
      %s990 = scalar_lea.vmem %s1, 576
      %v991 = vld [vmem:[%s990] sm:$0xff]
      %v992 = vld [vmem:[%s990 + $0x8] sm:$0xff]
      %v993 = vld [vmem:[%s990 + $0x10] sm:$0xff]
      %v994 = vld [vmem:[%s990 + $0x18] sm:$0xff]
      %v995 = vld [vmem:[%s990 + $0x20] sm:$0xff]
      %v996 = vld [vmem:[%s990 + $0x28] sm:$0xff]
      %v997 = vld [vmem:[%s990 + $0x30] sm:$0xff]
      %v998 = vld [vmem:[%s990 + $0x38] sm:$0xff]
      %v999 = vld [vmem:[%s990 + $0x40] sm:$0xff]
      %v1000 = vld [vmem:[%s990 + $0x48] sm:$0xff]
      %v1001 = vld [vmem:[%s990 + $0x50] sm:$0xff]
      %v1002 = vld [vmem:[%s990 + $0x58] sm:$0xff]
      %v1003 = vld [vmem:[%s990 + $0x60] sm:$0xff]
      %v1004 = vld [vmem:[%s990 + $0x68] sm:$0xff]
      %v1005 = vld [vmem:[%s990 + $0x70] sm:$0xff]
      %v1006 = vld [vmem:[%s990 + $0x78] sm:$0xff]
      %v1007 = vld [vmem:[%s990 + $0x80] sm:$0xff]
      %v1008 = vld [vmem:[%s990 + $0x88] sm:$0xff]
      %v1009 = vld [vmem:[%s990 + $0x90] sm:$0xff]
      %v1010 = vld [vmem:[%s990 + $0x98] sm:$0xff]
      %v1011 = vld [vmem:[%s990 + $0xa0] sm:$0xff]
      %v1012 = vld [vmem:[%s990 + $0xa8] sm:$0xff]
      %v1013 = vld [vmem:[%s990 + $0xb0] sm:$0xff]
      %v1014 = vld [vmem:[%s990 + $0xb8] sm:$0xff]
      %vm1015 = vcmask 1044480
      %v1016 = vrot.slane %v592, 3
      %v1017 = vrot.slane %v593, 3
      %v1018 = vsel %vm1015, %v1016, %v1017
      %v1019 = vrot.slane %v594, 3
      %v1020 = vsel %vm1015, %v1017, %v1019
      %v1021 = vrot.slane %v595, 3
      %v1022 = vsel %vm1015, %v1019, %v1021
      %v1023 = vsel %vm657, %v1018, 0
      %v1025 = vsel %vm657, %v1020, 0
      %v1027 = vsel %vm657, %v1022, 0
      %v1029 = vsel %vm657, %v1021, 0
      %1031 = vmatprep.subr.mxu0 %v992
      %1032 = vmatpush1.msra.mxu0 %v991
      %1033 = vmatprep.subr.mxu0 %v994
      %1034 = vmatpush1.msra.mxu0 %v993
      %1035 = vmatprep.subr.mxu0 %v996
      %1036 = vmatpush1.msra.mxu0 %v995
      %1037 = vmatprep.subr.mxu0 %v998
      %1038 = vmatpush1.msra.mxu0 %v997
      %1039 = vmatprep.subr.mxu0 %v1000
      %1040 = vmatpush1.msra.mxu0 %v999
      %1041 = vmatprep.subr.mxu0 %v1002
      %1042 = vmatpush1.msra.mxu0 %v1001
      %1043 = vmatprep.subr.mxu0 %v1004
      %1044 = vmatpush1.msra.mxu0 %v1003
      %1045 = vmatprep.subr.mxu0 %v1006
      %1046 = vmatpush1.msra.mxu0 %v1005
      %1047 = vmatprep.subr.mxu0 %v1008
      %1048 = vmatpush1.msra.mxu0 %v1007
      %1049 = vmatprep.subr.mxu0 %v1010
      %1050 = vmatpush1.msra.mxu0 %v1009
      %1051 = vmatprep.subr.mxu0 %v1012
      %1052 = vmatpush1.msra.mxu0 %v1011
      %1053 = vmatprep.subr.mxu0 %v1014
      %1054 = vmatpush1.msra.mxu0 %v1013
      %1055 = vmatprep.subr.mxu0 0.0
      %1056 = vmatpush1.msra.mxu0 0.0
      %1057 = vmatprep.subr.mxu0 0.0
      %1058 = vmatpush1.msra.mxu0 0.0
      %1059 = vmatprep.subr.mxu0 0.0
      %1060 = vmatpush1.msra.mxu0 0.0
      %1061 = vmatprep.subr.mxu0 0.0
      %1062 = vmatpush1.msra.mxu0 0.0
      %1063 = vmatprep.subr.mxu0 0.0
      %1064 = vmatpush1.msra.mxu0 0.0
      %1065 = vmatprep.subr.mxu0 0.0
      %1066 = vmatpush1.msra.mxu0 0.0
      %1067 = vmatprep.subr.mxu0 0.0
      %1068 = vmatpush1.msra.mxu0 0.0
      %1069 = vmatprep.subr.mxu0 0.0
      %1070 = vmatpush1.msra.mxu0 0.0
      %1071 = vmatprep.subr.mxu0 0.0
      %1072 = vmatpush1.msra.mxu0 0.0
      %1073 = vmatprep.subr.mxu0 0.0
      %1074 = vmatpush1.msra.mxu0 0.0
      %1075 = vmatprep.subr.mxu0 0.0
      %1076 = vmatpush1.msra.mxu0 0.0
      %1077 = vmatprep.subr.mxu0 0.0
      %1078 = vmatpush1.msra.mxu0 0.0
      %1079 = vmatprep.subr.mxu0 0.0
      %1080 = vmatpush1.msra.mxu0 0.0
      %1081 = vmatprep.subr.mxu0 0.0
      %1082 = vmatpush1.msra.mxu0 0.0
      %1083 = vmatprep.subr.mxu0 0.0
      %1084 = vmatpush1.msra.mxu0 0.0
      %1085 = vmatprep.subr.mxu0 0.0
      %1086 = vmatpush1.msra.mxu0 0.0
      %1087 = vmatprep.subr.mxu0 0.0
      %1088 = vmatpush1.msra.mxu0 0.0
      %1089 = vmatprep.subr.mxu0 0.0
      %1090 = vmatpush1.msra.mxu0 0.0
      %1091 = vmatprep.subr.mxu0 0.0
      %1092 = vmatpush1.msra.mxu0 0.0
      %1093 = vmatprep.subr.mxu0 0.0
      %1094 = vmatpush1.msra.mxu0 0.0
      %1095 = vmatprep.mubr.f32.mxu0 0.0
      %1096 = vmatmul.mubr.f32.gmra.mrb[0].mxu0 %v1023
      %v1097 = vpop.f32.mrb[0].mxu0
      %v1098 = vadd.f32 0.0, %v1097
      %v1099 = vpop.f32.mrb[0].mxu0
      %v1100 = vadd.f32 0.0, %v1099
      %1101 = vmatprep.mubr.f32.mxu0 0.0
      %1102 = vmatmul.mubr.f32.gmra.mrb[0].mxu0 %v1025
      %v1103 = vpop.f32.mrb[0].mxu0
      %v1104 = vadd.f32 0.0, %v1103
      %v1105 = vpop.f32.mrb[0].mxu0
      %v1106 = vadd.f32 0.0, %v1105
      %1107 = vmatprep.mubr.f32.mxu0 0.0
      %1108 = vmatmul.mubr.f32.gmra.mrb[0].mxu0 %v1027
      %v1109 = vpop.f32.mrb[0].mxu0
      %v1110 = vadd.f32 0.0, %v1109
      %v1111 = vpop.f32.mrb[0].mxu0
      %v1112 = vadd.f32 0.0, %v1111
      %1113 = vmatprep.mubr.f32.mxu0 0.0
      %1114 = vmatmul.mubr.f32.gmra.mrb[0].mxu0 %v1029
      %v1115 = vpop.f32.mrb[0].mxu0
      %v1116 = vadd.f32 0.0, %v1115
      %v1117 = vpop.f32.mrb[0].mxu0
      %v1118 = vadd.f32 0.0, %v1117
      %1119 = vdwg.mxu0
      %v1120 = vadd.f32 %v982, %v1098
      %v1121 = vadd.f32 %v983, %v1100
      %v1122 = vadd.f32 %v984, %v1104
      %v1123 = vadd.f32 %v985, %v1106
      %v1124 = vadd.f32 %v986, %v1110
      %v1125 = vadd.f32 %v987, %v1112
      %v1126 = vadd.f32 %v988, %v1116
      %v1127 = vadd.f32 %v989, %v1118
      %s1128 = scalar_lea.vmem %s1, 768
      %v1129 = vld [vmem:[%s1128] sm:$0xff]
      %v1130 = vld [vmem:[%s1128 + $0x8] sm:$0xff]
      %v1131 = vld [vmem:[%s1128 + $0x10] sm:$0xff]
      %v1132 = vld [vmem:[%s1128 + $0x18] sm:$0xff]
      %v1133 = vld [vmem:[%s1128 + $0x20] sm:$0xff]
      %v1134 = vld [vmem:[%s1128 + $0x28] sm:$0xff]
      %v1135 = vld [vmem:[%s1128 + $0x30] sm:$0xff]
      %v1136 = vld [vmem:[%s1128 + $0x38] sm:$0xff]
      %v1137 = vld [vmem:[%s1128 + $0x40] sm:$0xff]
      %v1138 = vld [vmem:[%s1128 + $0x48] sm:$0xff]
      %v1139 = vld [vmem:[%s1128 + $0x50] sm:$0xff]
      %v1140 = vld [vmem:[%s1128 + $0x58] sm:$0xff]
      %v1141 = vld [vmem:[%s1128 + $0x60] sm:$0xff]
      %v1142 = vld [vmem:[%s1128 + $0x68] sm:$0xff]
      %v1143 = vld [vmem:[%s1128 + $0x70] sm:$0xff]
      %v1144 = vld [vmem:[%s1128 + $0x78] sm:$0xff]
      %v1145 = vld [vmem:[%s1128 + $0x80] sm:$0xff]
      %v1146 = vld [vmem:[%s1128 + $0x88] sm:$0xff]
      %v1147 = vld [vmem:[%s1128 + $0x90] sm:$0xff]
      %v1148 = vld [vmem:[%s1128 + $0x98] sm:$0xff]
      %v1149 = vld [vmem:[%s1128 + $0xa0] sm:$0xff]
      %v1150 = vld [vmem:[%s1128 + $0xa8] sm:$0xff]
      %v1151 = vld [vmem:[%s1128 + $0xb0] sm:$0xff]
      %v1152 = vld [vmem:[%s1128 + $0xb8] sm:$0xff]
      %vm1153 = vcmask 1043456
      %v1154 = vrot.slane %v592, 4
      %v1155 = vrot.slane %v593, 4
      %v1156 = vsel %vm1153, %v1154, %v1155
      %v1157 = vrot.slane %v594, 4
      %v1158 = vsel %vm1153, %v1155, %v1157
      %v1159 = vrot.slane %v595, 4
      %v1160 = vsel %vm1153, %v1157, %v1159
      %v1161 = vsel %vm657, %v1156, 0
      %v1163 = vsel %vm657, %v1158, 0
      %v1165 = vsel %vm657, %v1160, 0
      %v1167 = vsel %vm657, %v1159, 0
      %1169 = vmatprep.subr.mxu0 %v1130
      %1170 = vmatpush1.msra.mxu0 %v1129
      %1171 = vmatprep.subr.mxu0 %v1132
      %1172 = vmatpush1.msra.mxu0 %v1131
      %1173 = vmatprep.subr.mxu0 %v1134
      %1174 = vmatpush1.msra.mxu0 %v1133
      %1175 = vmatprep.subr.mxu0 %v1136
      %1176 = vmatpush1.msra.mxu0 %v1135
      %1177 = vmatprep.subr.mxu0 %v1138
      %1178 = vmatpush1.msra.mxu0 %v1137
      %1179 = vmatprep.subr.mxu0 %v1140
      %1180 = vmatpush1.msra.mxu0 %v1139
      %1181 = vmatprep.subr.mxu0 %v1142
      %1182 = vmatpush1.msra.mxu0 %v1141
      %1183 = vmatprep.subr.mxu0 %v1144
      %1184 = vmatpush1.msra.mxu0 %v1143
      %1185 = vmatprep.subr.mxu0 %v1146
      %1186 = vmatpush1.msra.mxu0 %v1145
      %1187 = vmatprep.subr.mxu0 %v1148
      %1188 = vmatpush1.msra.mxu0 %v1147
      %1189 = vmatprep.subr.mxu0 %v1150
      %1190 = vmatpush1.msra.mxu0 %v1149
      %1191 = vmatprep.subr.mxu0 %v1152
      %1192 = vmatpush1.msra.mxu0 %v1151
      %1193 = vmatprep.subr.mxu0 0.0
      %1194 = vmatpush1.msra.mxu0 0.0
      %1195 = vmatprep.subr.mxu0 0.0
      %1196 = vmatpush1.msra.mxu0 0.0
      %1197 = vmatprep.subr.mxu0 0.0
      %1198 = vmatpush1.msra.mxu0 0.0
      %1199 = vmatprep.subr.mxu0 0.0
      %1200 = vmatpush1.msra.mxu0 0.0
      %1201 = vmatprep.subr.mxu0 0.0
      %1202 = vmatpush1.msra.mxu0 0.0
      %1203 = vmatprep.subr.mxu0 0.0
      %1204 = vmatpush1.msra.mxu0 0.0
      %1205 = vmatprep.subr.mxu0 0.0
      %1206 = vmatpush1.msra.mxu0 0.0
      %1207 = vmatprep.subr.mxu0 0.0
      %1208 = vmatpush1.msra.mxu0 0.0
      %1209 = vmatprep.subr.mxu0 0.0
      %1210 = vmatpush1.msra.mxu0 0.0
      %1211 = vmatprep.subr.mxu0 0.0
      %1212 = vmatpush1.msra.mxu0 0.0
      %1213 = vmatprep.subr.mxu0 0.0
      %1214 = vmatpush1.msra.mxu0 0.0
      %1215 = vmatprep.subr.mxu0 0.0
      %1216 = vmatpush1.msra.mxu0 0.0
      %1217 = vmatprep.subr.mxu0 0.0
      %1218 = vmatpush1.msra.mxu0 0.0
      %1219 = vmatprep.subr.mxu0 0.0
      %1220 = vmatpush1.msra.mxu0 0.0
      %1221 = vmatprep.subr.mxu0 0.0
      %1222 = vmatpush1.msra.mxu0 0.0
      %1223 = vmatprep.subr.mxu0 0.0
      %1224 = vmatpush1.msra.mxu0 0.0
      %1225 = vmatprep.subr.mxu0 0.0
      %1226 = vmatpush1.msra.mxu0 0.0
      %1227 = vmatprep.subr.mxu0 0.0
      %1228 = vmatpush1.msra.mxu0 0.0
      %1229 = vmatprep.subr.mxu0 0.0
      %1230 = vmatpush1.msra.mxu0 0.0
      %1231 = vmatprep.subr.mxu0 0.0
      %1232 = vmatpush1.msra.mxu0 0.0
      %1233 = vmatprep.mubr.f32.mxu0 0.0
      %1234 = vmatmul.mubr.f32.gmra.mrb[0].mxu0 %v1161
      %v1235 = vpop.f32.mrb[0].mxu0
      %v1236 = vadd.f32 0.0, %v1235
      %v1237 = vpop.f32.mrb[0].mxu0
      %v1238 = vadd.f32 0.0, %v1237
      %1239 = vmatprep.mubr.f32.mxu0 0.0
      %1240 = vmatmul.mubr.f32.gmra.mrb[0].mxu0 %v1163
      %v1241 = vpop.f32.mrb[0].mxu0
      %v1242 = vadd.f32 0.0, %v1241
      %v1243 = vpop.f32.mrb[0].mxu0
      %v1244 = vadd.f32 0.0, %v1243
      %1245 = vmatprep.mubr.f32.mxu0 0.0
      %1246 = vmatmul.mubr.f32.gmra.mrb[0].mxu0 %v1165
      %v1247 = vpop.f32.mrb[0].mxu0
      %v1248 = vadd.f32 0.0, %v1247
      %v1249 = vpop.f32.mrb[0].mxu0
      %v1250 = vadd.f32 0.0, %v1249
      %1251 = vmatprep.mubr.f32.mxu0 0.0
      %1252 = vmatmul.mubr.f32.gmra.mrb[0].mxu0 %v1167
      %v1253 = vpop.f32.mrb[0].mxu0
      %v1254 = vadd.f32 0.0, %v1253
      %v1255 = vpop.f32.mrb[0].mxu0
      %v1256 = vadd.f32 0.0, %v1255
      %1257 = vdwg.mxu0
      %v1258 = vadd.f32 %v1120, %v1236
      %v1259 = vadd.f32 %v1121, %v1238
      %v1260 = vadd.f32 %v1122, %v1242
      %v1261 = vadd.f32 %v1123, %v1244
      %v1262 = vadd.f32 %v1124, %v1248
      %v1263 = vadd.f32 %v1125, %v1250
      %v1264 = vadd.f32 %v1126, %v1254
      %v1265 = vadd.f32 %v1127, %v1256
      %v1267 = vlaneseq
      %v1268 = vshrl.u32 %v1267, 7
      %v1269 = vsub.s32 0, %v1268
      %v1270 = vrot.slane %v498, %v1269
      %v1271 = vlaneseq
      %v1272 = vshrl.u32 %v1271, 7
      %v1273 = vsub.s32 1, %v1272
      %v1274 = vrot.slane %v498, %v1273
      %v1277 = vadd.f32 %v1258, %v1270
      %v1278 = vadd.f32 %v1259, %v1274
      %v1279 = vadd.f32 %v1260, %v1270
      %v1280 = vadd.f32 %v1261, %v1274
      %v1281 = vadd.f32 %v1262, %v1270
      %v1282 = vadd.f32 %v1263, %v1274
      %v1283 = vadd.f32 %v1264, %v1270
      %v1284 = vadd.f32 %v1265, %v1274
      %v1285 = vmax.f32 %v1277, 0.0
      %v1286 = vmax.f32 %v1278, 0.0
      %v1287 = vmax.f32 %v1279, 0.0
      %v1288 = vmax.f32 %v1280, 0.0
      %v1289 = vmax.f32 %v1281, 0.0
      %v1290 = vmax.f32 %v1282, 0.0
      %v1291 = vmax.f32 %v1283, 0.0
      %v1292 = vmax.f32 %v1284, 0.0
      %vm1293 = vcmask 228352
      %v1295 = vsel %vm1293, %v500, 0
      %v1298 = vsel %vm1293, %v501, 0
      %v1301 = vsel %vm1153, %v1291, 0
      %v1304 = vsel %vm1153, %v1292, 0
      %1306 = vmatprep.subr.mxu0 %v1286
      %1307 = vmatpush1.msra.mxu0 %v1285
      %1308 = vmatprep.subr.mxu0 %v1288
      %1309 = vmatpush1.msra.mxu0 %v1287
      %1310 = vmatprep.subr.mxu0 %v1290
      %1311 = vmatpush1.msra.mxu0 %v1289
      %1312 = vmatprep.subr.mxu0 %v1304
      %1313 = vmatpush1.msra.mxu0 %v1301
      %1314 = vmatprep.subr.mxu0 0.0
      %1315 = vmatpush1.msra.mxu0 0.0
      %1316 = vmatprep.subr.mxu0 0.0
      %1317 = vmatpush1.msra.mxu0 0.0
      %1318 = vmatprep.subr.mxu0 0.0
      %1319 = vmatpush1.msra.mxu0 0.0
      %1320 = vmatprep.subr.mxu0 0.0
      %1321 = vmatpush1.msra.mxu0 0.0
      %1322 = vmatprep.subr.mxu0 0.0
      %1323 = vmatpush1.msra.mxu0 0.0
      %1324 = vmatprep.subr.mxu0 0.0
      %1325 = vmatpush1.msra.mxu0 0.0
      %1326 = vmatprep.subr.mxu0 0.0
      %1327 = vmatpush1.msra.mxu0 0.0
      %1328 = vmatprep.subr.mxu0 0.0
      %1329 = vmatpush1.msra.mxu0 0.0
      %1330 = vmatprep.subr.mxu0 0.0
      %1331 = vmatpush1.msra.mxu0 0.0
      %1332 = vmatprep.subr.mxu0 0.0
      %1333 = vmatpush1.msra.mxu0 0.0
      %1334 = vmatprep.subr.mxu0 0.0
      %1335 = vmatpush1.msra.mxu0 0.0
      %1336 = vmatprep.subr.mxu0 0.0
      %1337 = vmatpush1.msra.mxu0 0.0
      %1338 = vmatprep.subr.mxu0 0.0
      %1339 = vmatpush1.msra.mxu0 0.0
      %1340 = vmatprep.subr.mxu0 0.0
      %1341 = vmatpush1.msra.mxu0 0.0
      %1342 = vmatprep.subr.mxu0 0.0
      %1343 = vmatpush1.msra.mxu0 0.0
      %1344 = vmatprep.subr.mxu0 0.0
      %1345 = vmatpush1.msra.mxu0 0.0
      %1346 = vmatprep.subr.mxu0 0.0
      %1347 = vmatpush1.msra.mxu0 0.0
      %1348 = vmatprep.subr.mxu0 0.0
      %1349 = vmatpush1.msra.mxu0 0.0
      %1350 = vmatprep.subr.mxu0 0.0
      %1351 = vmatpush1.msra.mxu0 0.0
      %1352 = vmatprep.subr.mxu0 0.0
      %1353 = vmatpush1.msra.mxu0 0.0
      %1354 = vmatprep.subr.mxu0 0.0
      %1355 = vmatpush1.msra.mxu0 0.0
      %1356 = vmatprep.subr.mxu0 0.0
      %1357 = vmatpush1.msra.mxu0 0.0
      %1358 = vmatprep.subr.mxu0 0.0
      %1359 = vmatpush1.msra.mxu0 0.0
      %1360 = vmatprep.subr.mxu0 0.0
      %1361 = vmatpush1.msra.mxu0 0.0
      %1362 = vmatprep.subr.mxu0 0.0
      %1363 = vmatpush1.msra.mxu0 0.0
      %1364 = vmatprep.subr.mxu0 0.0
      %1365 = vmatpush1.msra.mxu0 0.0
      %1366 = vmatprep.subr.mxu0 0.0
      %1367 = vmatpush1.msra.mxu0 0.0
      %1368 = vmatprep.subr.mxu0 0.0
      %1369 = vmatpush1.msra.mxu0 0.0
      %1370 = vmatprep.mubr.f32.mxu0 0.0
      %1371 = vmatmul.mubr.f32.gmra.mrb[0].mxu0 %v1295
      %v1372 = vpop.f32.mrb[0].mxu0
      %v1373 = vadd.f32 0.0, %v1372
      %v1374 = vpop.f32.mrb[0].mxu0
      %v1375 = vadd.f32 0.0, %v1374
      %1376 = vmatprep.mubr.f32.mxu0 0.0
      %1377 = vmatmul.mubr.f32.gmra.mrb[0].mxu0 %v1298
      %v1378 = vpop.f32.mrb[0].mxu0
      %v1379 = vadd.f32 0.0, %v1378
      %v1380 = vpop.f32.mrb[0].mxu0
      %v1381 = vadd.f32 0.0, %v1380
      %1382 = vdwg.mxu0
      %v1384 = vsel %vm1293, %v503, 0
      %v1387 = vsel %vm1293, %v504, 0
      %1389 = vmatprep.subr.mxu0 %v1286
      %1390 = vmatpush1.msra.mxu0 %v1285
      %1391 = vmatprep.subr.mxu0 %v1288
      %1392 = vmatpush1.msra.mxu0 %v1287
      %1393 = vmatprep.subr.mxu0 %v1290
      %1394 = vmatpush1.msra.mxu0 %v1289
      %1395 = vmatprep.subr.mxu0 %v1304
      %1396 = vmatpush1.msra.mxu0 %v1301
      %1397 = vmatprep.subr.mxu0 0.0
      %1398 = vmatpush1.msra.mxu0 0.0
      %1399 = vmatprep.subr.mxu0 0.0
      %1400 = vmatpush1.msra.mxu0 0.0
      %1401 = vmatprep.subr.mxu0 0.0
      %1402 = vmatpush1.msra.mxu0 0.0
      %1403 = vmatprep.subr.mxu0 0.0
      %1404 = vmatpush1.msra.mxu0 0.0
      %1405 = vmatprep.subr.mxu0 0.0
      %1406 = vmatpush1.msra.mxu0 0.0
      %1407 = vmatprep.subr.mxu0 0.0
      %1408 = vmatpush1.msra.mxu0 0.0
      %1409 = vmatprep.subr.mxu0 0.0
      %1410 = vmatpush1.msra.mxu0 0.0
      %1411 = vmatprep.subr.mxu0 0.0
      %1412 = vmatpush1.msra.mxu0 0.0
      %1413 = vmatprep.subr.mxu0 0.0
      %1414 = vmatpush1.msra.mxu0 0.0
      %1415 = vmatprep.subr.mxu0 0.0
      %1416 = vmatpush1.msra.mxu0 0.0
      %1417 = vmatprep.subr.mxu0 0.0
      %1418 = vmatpush1.msra.mxu0 0.0
      %1419 = vmatprep.subr.mxu0 0.0
      %1420 = vmatpush1.msra.mxu0 0.0
      %1421 = vmatprep.subr.mxu0 0.0
      %1422 = vmatpush1.msra.mxu0 0.0
      %1423 = vmatprep.subr.mxu0 0.0
      %1424 = vmatpush1.msra.mxu0 0.0
      %1425 = vmatprep.subr.mxu0 0.0
      %1426 = vmatpush1.msra.mxu0 0.0
      %1427 = vmatprep.subr.mxu0 0.0
      %1428 = vmatpush1.msra.mxu0 0.0
      %1429 = vmatprep.subr.mxu0 0.0
      %1430 = vmatpush1.msra.mxu0 0.0
      %1431 = vmatprep.subr.mxu0 0.0
      %1432 = vmatpush1.msra.mxu0 0.0
      %1433 = vmatprep.subr.mxu0 0.0
      %1434 = vmatpush1.msra.mxu0 0.0
      %1435 = vmatprep.subr.mxu0 0.0
      %1436 = vmatpush1.msra.mxu0 0.0
      %1437 = vmatprep.subr.mxu0 0.0
      %1438 = vmatpush1.msra.mxu0 0.0
      %1439 = vmatprep.subr.mxu0 0.0
      %1440 = vmatpush1.msra.mxu0 0.0
      %1441 = vmatprep.subr.mxu0 0.0
      %1442 = vmatpush1.msra.mxu0 0.0
      %1443 = vmatprep.subr.mxu0 0.0
      %1444 = vmatpush1.msra.mxu0 0.0
      %1445 = vmatprep.subr.mxu0 0.0
      %1446 = vmatpush1.msra.mxu0 0.0
      %1447 = vmatprep.subr.mxu0 0.0
      %1448 = vmatpush1.msra.mxu0 0.0
      %1449 = vmatprep.subr.mxu0 0.0
      %1450 = vmatpush1.msra.mxu0 0.0
      %1451 = vmatprep.subr.mxu0 0.0
      %1452 = vmatpush1.msra.mxu0 0.0
      %1453 = vmatprep.mubr.f32.mxu0 0.0
      %1454 = vmatmul.mubr.f32.gmra.mrb[0].mxu0 %v1384
      %v1455 = vpop.f32.mrb[0].mxu0
      %v1456 = vadd.f32 0.0, %v1455
      %v1457 = vpop.f32.mrb[0].mxu0
      %v1458 = vadd.f32 0.0, %v1457
      %1459 = vmatprep.mubr.f32.mxu0 0.0
      %1460 = vmatmul.mubr.f32.gmra.mrb[0].mxu0 %v1387
      %v1461 = vpop.f32.mrb[0].mxu0
      %v1462 = vadd.f32 0.0, %v1461
      %v1463 = vpop.f32.mrb[0].mxu0
      %v1464 = vadd.f32 0.0, %v1463
      %1465 = vdwg.mxu0
      %v1466 = vmax.f32 %v1373, %v1456
      %v1467 = vmax.f32 %v1375, %v1458
      %v1468 = vmax.f32 %v1379, %v1462
      %v1469 = vmax.f32 %v1381, %v1464
      %vm1470 = vcmask 326656
      %v1472 = vsel %vm1470, %v1467, 0
      %v1475 = vsel %vm1470, %v1469, 0
      %1477 = vmatprep.subr.mxu0 0.0
      %1478 = vmatpush1.msra.mxu0 %v505
      %1479 = vmatprep.subr.mxu0 0.0
      %1480 = vmatpush1.msra.mxu0 %v506
      %1481 = vmatprep.subr.mxu0 0.0
      %1482 = vmatpush1.msra.mxu0 %v507
      %1483 = vmatprep.subr.mxu0 0.0
      %1484 = vmatpush1.msra.mxu0 %v508
      %1485 = vmatprep.subr.mxu0 0.0
      %1486 = vmatpush1.msra.mxu0 %v509
      %1487 = vmatprep.subr.mxu0 0.0
      %1488 = vmatpush1.msra.mxu0 %v510
      %1489 = vmatprep.subr.mxu0 0.0
      %1490 = vmatpush1.msra.mxu0 %v511
      %1491 = vmatprep.subr.mxu0 0.0
      %1492 = vmatpush1.msra.mxu0 %v512
      %1493 = vmatprep.subr.mxu0 0.0
      %1494 = vmatpush1.msra.mxu0 %v513
      %1495 = vmatprep.subr.mxu0 0.0
      %1496 = vmatpush1.msra.mxu0 %v514
      %1497 = vmatprep.subr.mxu0 0.0
      %1498 = vmatpush1.msra.mxu0 %v515
      %1499 = vmatprep.subr.mxu0 0.0
      %1500 = vmatpush1.msra.mxu0 %v516
      %1501 = vmatprep.subr.mxu0 0.0
      %1502 = vmatpush1.msra.mxu0 %v517
      %1503 = vmatprep.subr.mxu0 0.0
      %1504 = vmatpush1.msra.mxu0 %v518
      %1505 = vmatprep.subr.mxu0 0.0
      %1506 = vmatpush1.msra.mxu0 %v519
      %1507 = vmatprep.subr.mxu0 0.0
      %1508 = vmatpush1.msra.mxu0 %v520
      %1509 = vmatprep.subr.mxu0 0.0
      %1510 = vmatpush1.msra.mxu0 %v521
      %1511 = vmatprep.subr.mxu0 0.0
      %1512 = vmatpush1.msra.mxu0 %v522
      %1513 = vmatprep.subr.mxu0 0.0
      %1514 = vmatpush1.msra.mxu0 %v523
      %1515 = vmatprep.subr.mxu0 0.0
      %1516 = vmatpush1.msra.mxu0 %v524
      %1517 = vmatprep.subr.mxu0 0.0
      %1518 = vmatpush1.msra.mxu0 %v525
      %1519 = vmatprep.subr.mxu0 0.0
      %1520 = vmatpush1.msra.mxu0 0.0
      %1521 = vmatprep.subr.mxu0 0.0
      %1522 = vmatpush1.msra.mxu0 0.0
      %1523 = vmatprep.subr.mxu0 0.0
      %1524 = vmatpush1.msra.mxu0 0.0
      %1525 = vmatprep.subr.mxu0 0.0
      %1526 = vmatpush1.msra.mxu0 0.0
      %1527 = vmatprep.subr.mxu0 0.0
      %1528 = vmatpush1.msra.mxu0 0.0
      %1529 = vmatprep.subr.mxu0 0.0
      %1530 = vmatpush1.msra.mxu0 0.0
      %1531 = vmatprep.subr.mxu0 0.0
      %1532 = vmatpush1.msra.mxu0 0.0
      %1533 = vmatprep.subr.mxu0 0.0
      %1534 = vmatpush1.msra.mxu0 0.0
      %1535 = vmatprep.subr.mxu0 0.0
      %1536 = vmatpush1.msra.mxu0 0.0
      %1537 = vmatprep.subr.mxu0 0.0
      %1538 = vmatpush1.msra.mxu0 0.0
      %1539 = vmatprep.subr.mxu0 0.0
      %1540 = vmatpush1.msra.mxu0 0.0
      %1541 = vmatprep.mubr.f32.mxu0 %v1472
      %1542 = vmatmul.mubr.f32.gmra.mrb[0].mxu0 %v1466
      %v1543 = vpop.f32.mrb[0].mxu0
      %v1544 = vadd.f32 0.0, %v1543
      %v1545 = vpop.f32.mrb[0].mxu0
      %1546 = vmatprep.mubr.f32.mxu0 %v1475
      %1547 = vmatmul.mubr.f32.gmra.mrb[0].mxu0 %v1468
      %v1548 = vpop.f32.mrb[0].mxu0
      %v1549 = vadd.f32 0.0, %v1548
      %v1550 = vpop.f32.mrb[0].mxu0
      %1551 = vdwg.mxu0
      %1552 = vmatprep.subr.mxu0 0.0
      %1553 = vmatpush1.msra.mxu0 %v527
      %1554 = vmatprep.subr.mxu0 0.0
      %1555 = vmatpush1.msra.mxu0 %v528
      %1556 = vmatprep.subr.mxu0 0.0
      %1557 = vmatpush1.msra.mxu0 %v529
      %1558 = vmatprep.subr.mxu0 0.0
      %1559 = vmatpush1.msra.mxu0 %v530
      %1560 = vmatprep.subr.mxu0 0.0
      %1561 = vmatpush1.msra.mxu0 %v531
      %1562 = vmatprep.subr.mxu0 0.0
      %1563 = vmatpush1.msra.mxu0 %v532
      %1564 = vmatprep.subr.mxu0 0.0
      %1565 = vmatpush1.msra.mxu0 %v533
      %1566 = vmatprep.subr.mxu0 0.0
      %1567 = vmatpush1.msra.mxu0 %v534
      %1568 = vmatprep.subr.mxu0 0.0
      %1569 = vmatpush1.msra.mxu0 %v535
      %1570 = vmatprep.subr.mxu0 0.0
      %1571 = vmatpush1.msra.mxu0 %v536
      %1572 = vmatprep.subr.mxu0 0.0
      %1573 = vmatpush1.msra.mxu0 %v537
      %1574 = vmatprep.subr.mxu0 0.0
      %1575 = vmatpush1.msra.mxu0 %v538
      %1576 = vmatprep.subr.mxu0 0.0
      %1577 = vmatpush1.msra.mxu0 %v539
      %1578 = vmatprep.subr.mxu0 0.0
      %1579 = vmatpush1.msra.mxu0 %v540
      %1580 = vmatprep.subr.mxu0 0.0
      %1581 = vmatpush1.msra.mxu0 %v541
      %1582 = vmatprep.subr.mxu0 0.0
      %1583 = vmatpush1.msra.mxu0 %v542
      %1584 = vmatprep.subr.mxu0 0.0
      %1585 = vmatpush1.msra.mxu0 %v543
      %1586 = vmatprep.subr.mxu0 0.0
      %1587 = vmatpush1.msra.mxu0 %v544
      %1588 = vmatprep.subr.mxu0 0.0
      %1589 = vmatpush1.msra.mxu0 %v545
      %1590 = vmatprep.subr.mxu0 0.0
      %1591 = vmatpush1.msra.mxu0 %v546
      %1592 = vmatprep.subr.mxu0 0.0
      %1593 = vmatpush1.msra.mxu0 %v547
      %1594 = vmatprep.subr.mxu0 0.0
      %1595 = vmatpush1.msra.mxu0 0.0
      %1596 = vmatprep.subr.mxu0 0.0
      %1597 = vmatpush1.msra.mxu0 0.0
      %1598 = vmatprep.subr.mxu0 0.0
      %1599 = vmatpush1.msra.mxu0 0.0
      %1600 = vmatprep.subr.mxu0 0.0
      %1601 = vmatpush1.msra.mxu0 0.0
      %1602 = vmatprep.subr.mxu0 0.0
      %1603 = vmatpush1.msra.mxu0 0.0
      %1604 = vmatprep.subr.mxu0 0.0
      %1605 = vmatpush1.msra.mxu0 0.0
      %1606 = vmatprep.subr.mxu0 0.0
      %1607 = vmatpush1.msra.mxu0 0.0
      %1608 = vmatprep.subr.mxu0 0.0
      %1609 = vmatpush1.msra.mxu0 0.0
      %1610 = vmatprep.subr.mxu0 0.0
      %1611 = vmatpush1.msra.mxu0 0.0
      %1612 = vmatprep.subr.mxu0 0.0
      %1613 = vmatpush1.msra.mxu0 0.0
      %1614 = vmatprep.subr.mxu0 0.0
      %1615 = vmatpush1.msra.mxu0 0.0
      %1616 = vmatprep.mubr.f32.mxu0 %v1472
      %1617 = vmatmul.mubr.f32.gmra.mrb[0].mxu0 %v1466
      %v1618 = vpop.f32.mrb[0].mxu0
      %v1619 = vadd.f32 0.0, %v1618
      %v1620 = vpop.f32.mrb[0].mxu0
      %1621 = vmatprep.mubr.f32.mxu0 %v1475
      %1622 = vmatmul.mubr.f32.gmra.mrb[0].mxu0 %v1468
      %v1623 = vpop.f32.mrb[0].mxu0
      %v1624 = vadd.f32 0.0, %v1623
      %v1625 = vpop.f32.mrb[0].mxu0
      %1626 = vdwg.mxu0
      %v1627 = vmax.f32 %v1544, %v1619
      %v1628 = vmax.f32 %v1549, %v1624
      %v1629 = vld [vmem:[%s3] sm:$0xff]
      %v1630 = vld [vmem:[%s3 + $0x8] sm:$0xff]
      %v1631 = vld [vmem:[%s3 + $0x10] sm:$0xff]
      %v1632 = vld [vmem:[%s3 + $0x18] sm:$0xff]
      %v1633 = vld [vmem:[%s3 + $0x20] sm:$0xff]
      %v1634 = vld [vmem:[%s3 + $0x28] sm:$0xff]
      %v1635 = vld [vmem:[%s3 + $0x30] sm:$0xff]
      %v1636 = vld [vmem:[%s3 + $0x38] sm:$0xff]
      %v1637 = vld [vmem:[%s3 + $0x40] sm:$0xff]
      %v1638 = vld [vmem:[%s3 + $0x48] sm:$0xff]
      %v1639 = vld [vmem:[%s3 + $0x50] sm:$0xff]
      %v1640 = vld [vmem:[%s3 + $0x58] sm:$0xff]
      %v1641 = vld [vmem:[%s3 + $0x60] sm:$0xff]
      %v1642 = vld [vmem:[%s3 + $0x68] sm:$0xff]
      %v1643 = vld [vmem:[%s3 + $0x70] sm:$0xff]
      %v1644 = vld [vmem:[%s3 + $0x78] sm:$0xff]
      %v1645 = vld [vmem:[%s3 + $0x80] sm:$0xff]
      %v1646 = vld [vmem:[%s3 + $0x88] sm:$0xff]
      %v1647 = vld [vmem:[%s3 + $0x90] sm:$0xff]
      %v1648 = vld [vmem:[%s3 + $0x98] sm:$0xff]
      %v1649 = vld [vmem:[%s3 + $0xa0] sm:$0xf]
      %v1650 = vld [vmem:[%s3 + $0xa8] sm:$0xf]
      %s1651 = scalar_lea.vmem %s3, 176
      %v1652 = vld [vmem:[%s1651] sm:$0xff]
      %v1653 = vld [vmem:[%s1651 + $0x8] sm:$0xff]
      %v1654 = vld [vmem:[%s1651 + $0x10] sm:$0xff]
      %v1655 = vld [vmem:[%s1651 + $0x18] sm:$0xff]
      %v1656 = vld [vmem:[%s1651 + $0x20] sm:$0xff]
      %v1657 = vld [vmem:[%s1651 + $0x28] sm:$0xff]
      %v1658 = vld [vmem:[%s1651 + $0x30] sm:$0xff]
      %v1659 = vld [vmem:[%s1651 + $0x38] sm:$0xff]
      %v1660 = vld [vmem:[%s1651 + $0x40] sm:$0xff]
      %v1661 = vld [vmem:[%s1651 + $0x48] sm:$0xff]
      %v1662 = vld [vmem:[%s1651 + $0x50] sm:$0xff]
      %v1663 = vld [vmem:[%s1651 + $0x58] sm:$0xff]
      %v1664 = vld [vmem:[%s1651 + $0x60] sm:$0xff]
      %v1665 = vld [vmem:[%s1651 + $0x68] sm:$0xff]
      %v1666 = vld [vmem:[%s1651 + $0x70] sm:$0xff]
      %v1667 = vld [vmem:[%s1651 + $0x78] sm:$0xff]
      %v1668 = vld [vmem:[%s1651 + $0x80] sm:$0xff]
      %v1669 = vld [vmem:[%s1651 + $0x88] sm:$0xff]
      %v1670 = vld [vmem:[%s1651 + $0x90] sm:$0xff]
      %v1671 = vld [vmem:[%s1651 + $0x98] sm:$0xff]
      %v1672 = vld [vmem:[%s1651 + $0xa0] sm:$0xf]
      %v1673 = vld [vmem:[%s1651 + $0xa8] sm:$0xf]
      %v1676 = vrot.slane %v1627, 1
      %v1677 = vrot.slane %v1628, 1
      %v1678 = vsel %vm649, %v1676, %v1677
      %vm1679 = vcmask 687104
      %v1680 = vsel %vm1679, %v1678, 0
      %v1682 = vsel %vm1679, %v1677, 0
      %v1685 = vsel %vm1153, %v1672, 0
      %v1688 = vsel %vm1153, %v1673, 0
      %1690 = vmatprep.subr.mxu0 %v1653
      %1691 = vmatpush1.msra.mxu0 %v1652
      %1692 = vmatprep.subr.mxu0 %v1655
      %1693 = vmatpush1.msra.mxu0 %v1654
      %1694 = vmatprep.subr.mxu0 %v1657
      %1695 = vmatpush1.msra.mxu0 %v1656
      %1696 = vmatprep.subr.mxu0 %v1659
      %1697 = vmatpush1.msra.mxu0 %v1658
      %1698 = vmatprep.subr.mxu0 %v1661
      %1699 = vmatpush1.msra.mxu0 %v1660
      %1700 = vmatprep.subr.mxu0 %v1663
      %1701 = vmatpush1.msra.mxu0 %v1662
      %1702 = vmatprep.subr.mxu0 %v1665
      %1703 = vmatpush1.msra.mxu0 %v1664
      %1704 = vmatprep.subr.mxu0 %v1667
      %1705 = vmatpush1.msra.mxu0 %v1666
      %1706 = vmatprep.subr.mxu0 %v1669
      %1707 = vmatpush1.msra.mxu0 %v1668
      %1708 = vmatprep.subr.mxu0 %v1671
      %1709 = vmatpush1.msra.mxu0 %v1670
      %1710 = vmatprep.subr.mxu0 %v1688
      %1711 = vmatpush1.msra.mxu0 %v1685
      %1712 = vmatprep.subr.mxu0 0.0
      %1713 = vmatpush1.msra.mxu0 0.0
      %1714 = vmatprep.subr.mxu0 0.0
      %1715 = vmatpush1.msra.mxu0 0.0
      %1716 = vmatprep.subr.mxu0 0.0
      %1717 = vmatpush1.msra.mxu0 0.0
      %1718 = vmatprep.subr.mxu0 0.0
      %1719 = vmatpush1.msra.mxu0 0.0
      %1720 = vmatprep.subr.mxu0 0.0
      %1721 = vmatpush1.msra.mxu0 0.0
      %1722 = vmatprep.subr.mxu0 0.0
      %1723 = vmatpush1.msra.mxu0 0.0
      %1724 = vmatprep.subr.mxu0 0.0
      %1725 = vmatpush1.msra.mxu0 0.0
      %1726 = vmatprep.subr.mxu0 0.0
      %1727 = vmatpush1.msra.mxu0 0.0
      %1728 = vmatprep.subr.mxu0 0.0
      %1729 = vmatpush1.msra.mxu0 0.0
      %1730 = vmatprep.subr.mxu0 0.0
      %1731 = vmatpush1.msra.mxu0 0.0
      %1732 = vmatprep.subr.mxu0 0.0
      %1733 = vmatpush1.msra.mxu0 0.0
      %1734 = vmatprep.subr.mxu0 0.0
      %1735 = vmatpush1.msra.mxu0 0.0
      %1736 = vmatprep.subr.mxu0 0.0
      %1737 = vmatpush1.msra.mxu0 0.0
      %1738 = vmatprep.subr.mxu0 0.0
      %1739 = vmatpush1.msra.mxu0 0.0
      %1740 = vmatprep.subr.mxu0 0.0
      %1741 = vmatpush1.msra.mxu0 0.0
      %1742 = vmatprep.subr.mxu0 0.0
      %1743 = vmatpush1.msra.mxu0 0.0
      %1744 = vmatprep.subr.mxu0 0.0
      %1745 = vmatpush1.msra.mxu0 0.0
      %1746 = vmatprep.subr.mxu0 0.0
      %1747 = vmatpush1.msra.mxu0 0.0
      %1748 = vmatprep.subr.mxu0 0.0
      %1749 = vmatpush1.msra.mxu0 0.0
      %1750 = vmatprep.subr.mxu0 0.0
      %1751 = vmatpush1.msra.mxu0 0.0
      %1752 = vmatprep.subr.mxu0 0.0
      %1753 = vmatpush1.msra.mxu0 0.0
      %1754 = vmatprep.mubr.f32.mxu0 0.0
      %1755 = vmatmul.mubr.f32.gmra.mrb[0].mxu0 %v1680
      %v1756 = vpop.f32.mrb[0].mxu0
      %v1757 = vadd.f32 0.0, %v1756
      %v1758 = vpop.f32.mrb[0].mxu0
      %v1759 = vadd.f32 0.0, %v1758
      %1760 = vmatprep.mubr.f32.mxu0 0.0
      %1761 = vmatmul.mubr.f32.gmra.mrb[0].mxu0 %v1682
      %v1762 = vpop.f32.mrb[0].mxu0
      %v1763 = vadd.f32 0.0, %v1762
      %v1764 = vpop.f32.mrb[0].mxu0
      %v1765 = vadd.f32 0.0, %v1764
      %1766 = vdwg.mxu0
      %v1767 = vsel %vm1679, %v1627, 0
      %v1769 = vsel %vm1679, %v1628, 0
      %v1772 = vsel %vm1153, %v1649, 0
      %v1775 = vsel %vm1153, %v1650, 0
      %1777 = vmatprep.subr.mxu0 %v1630
      %1778 = vmatpush1.msra.mxu0 %v1629
      %1779 = vmatprep.subr.mxu0 %v1632
      %1780 = vmatpush1.msra.mxu0 %v1631
      %1781 = vmatprep.subr.mxu0 %v1634
      %1782 = vmatpush1.msra.mxu0 %v1633
      %1783 = vmatprep.subr.mxu0 %v1636
      %1784 = vmatpush1.msra.mxu0 %v1635
      %1785 = vmatprep.subr.mxu0 %v1638
      %1786 = vmatpush1.msra.mxu0 %v1637
      %1787 = vmatprep.subr.mxu0 %v1640
      %1788 = vmatpush1.msra.mxu0 %v1639
      %1789 = vmatprep.subr.mxu0 %v1642
      %1790 = vmatpush1.msra.mxu0 %v1641
      %1791 = vmatprep.subr.mxu0 %v1644
      %1792 = vmatpush1.msra.mxu0 %v1643
      %1793 = vmatprep.subr.mxu0 %v1646
      %1794 = vmatpush1.msra.mxu0 %v1645
      %1795 = vmatprep.subr.mxu0 %v1648
      %1796 = vmatpush1.msra.mxu0 %v1647
      %1797 = vmatprep.subr.mxu0 %v1775
      %1798 = vmatpush1.msra.mxu0 %v1772
      %1799 = vmatprep.subr.mxu0 0.0
      %1800 = vmatpush1.msra.mxu0 0.0
      %1801 = vmatprep.subr.mxu0 0.0
      %1802 = vmatpush1.msra.mxu0 0.0
      %1803 = vmatprep.subr.mxu0 0.0
      %1804 = vmatpush1.msra.mxu0 0.0
      %1805 = vmatprep.subr.mxu0 0.0
      %1806 = vmatpush1.msra.mxu0 0.0
      %1807 = vmatprep.subr.mxu0 0.0
      %1808 = vmatpush1.msra.mxu0 0.0
      %1809 = vmatprep.subr.mxu0 0.0
      %1810 = vmatpush1.msra.mxu0 0.0
      %1811 = vmatprep.subr.mxu0 0.0
      %1812 = vmatpush1.msra.mxu0 0.0
      %1813 = vmatprep.subr.mxu0 0.0
      %1814 = vmatpush1.msra.mxu0 0.0
      %1815 = vmatprep.subr.mxu0 0.0
      %1816 = vmatpush1.msra.mxu0 0.0
      %1817 = vmatprep.subr.mxu0 0.0
      %1818 = vmatpush1.msra.mxu0 0.0
      %1819 = vmatprep.subr.mxu0 0.0
      %1820 = vmatpush1.msra.mxu0 0.0
      %1821 = vmatprep.subr.mxu0 0.0
      %1822 = vmatpush1.msra.mxu0 0.0
      %1823 = vmatprep.subr.mxu0 0.0
      %1824 = vmatpush1.msra.mxu0 0.0
      %1825 = vmatprep.subr.mxu0 0.0
      %1826 = vmatpush1.msra.mxu0 0.0
      %1827 = vmatprep.subr.mxu0 0.0
      %1828 = vmatpush1.msra.mxu0 0.0
      %1829 = vmatprep.subr.mxu0 0.0
      %1830 = vmatpush1.msra.mxu0 0.0
      %1831 = vmatprep.subr.mxu0 0.0
      %1832 = vmatpush1.msra.mxu0 0.0
      %1833 = vmatprep.subr.mxu0 0.0
      %1834 = vmatpush1.msra.mxu0 0.0
      %1835 = vmatprep.subr.mxu0 0.0
      %1836 = vmatpush1.msra.mxu0 0.0
      %1837 = vmatprep.subr.mxu0 0.0
      %1838 = vmatpush1.msra.mxu0 0.0
      %1839 = vmatprep.subr.mxu0 0.0
      %1840 = vmatpush1.msra.mxu0 0.0
      %1841 = vmatprep.mubr.f32.mxu0 0.0
      %1842 = vmatmul.mubr.f32.gmra.mrb[0].mxu0 %v1767
      %v1843 = vpop.f32.mrb[0].mxu0
      %v1844 = vadd.f32 %v1757, %v1843
      %v1845 = vpop.f32.mrb[0].mxu0
      %v1846 = vadd.f32 %v1759, %v1845
      %1847 = vmatprep.mubr.f32.mxu0 0.0
      %1848 = vmatmul.mubr.f32.gmra.mrb[0].mxu0 %v1769
      %v1849 = vpop.f32.mrb[0].mxu0
      %v1850 = vadd.f32 %v1763, %v1849
      %v1851 = vpop.f32.mrb[0].mxu0
      %v1852 = vadd.f32 %v1765, %v1851
      %1853 = vdwg.mxu0
      %s1854 = scalar_lea.vmem %s3, 352
      %v1855 = vld [vmem:[%s1854] sm:$0xff]
      %v1856 = vld [vmem:[%s1854 + $0x8] sm:$0xff]
      %v1857 = vld [vmem:[%s1854 + $0x10] sm:$0xff]
      %v1858 = vld [vmem:[%s1854 + $0x18] sm:$0xff]
      %v1859 = vld [vmem:[%s1854 + $0x20] sm:$0xff]
      %v1860 = vld [vmem:[%s1854 + $0x28] sm:$0xff]
      %v1861 = vld [vmem:[%s1854 + $0x30] sm:$0xff]
      %v1862 = vld [vmem:[%s1854 + $0x38] sm:$0xff]
      %v1863 = vld [vmem:[%s1854 + $0x40] sm:$0xff]
      %v1864 = vld [vmem:[%s1854 + $0x48] sm:$0xff]
      %v1865 = vld [vmem:[%s1854 + $0x50] sm:$0xff]
      %v1866 = vld [vmem:[%s1854 + $0x58] sm:$0xff]
      %v1867 = vld [vmem:[%s1854 + $0x60] sm:$0xff]
      %v1868 = vld [vmem:[%s1854 + $0x68] sm:$0xff]
      %v1869 = vld [vmem:[%s1854 + $0x70] sm:$0xff]
      %v1870 = vld [vmem:[%s1854 + $0x78] sm:$0xff]
      %v1871 = vld [vmem:[%s1854 + $0x80] sm:$0xff]
      %v1872 = vld [vmem:[%s1854 + $0x88] sm:$0xff]
      %v1873 = vld [vmem:[%s1854 + $0x90] sm:$0xff]
      %v1874 = vld [vmem:[%s1854 + $0x98] sm:$0xff]
      %v1875 = vld [vmem:[%s1854 + $0xa0] sm:$0xf]
      %v1876 = vld [vmem:[%s1854 + $0xa8] sm:$0xf]
      %v1877 = vrot.slane %v1627, 2
      %v1878 = vrot.slane %v1628, 2
      %v1879 = vsel %vm877, %v1877, %v1878
      %v1880 = vsel %vm1679, %v1879, 0
      %v1882 = vsel %vm1679, %v1878, 0
      %v1885 = vsel %vm1153, %v1875, 0
      %v1888 = vsel %vm1153, %v1876, 0
      %1890 = vmatprep.subr.mxu0 %v1856
      %1891 = vmatpush1.msra.mxu0 %v1855
      %1892 = vmatprep.subr.mxu0 %v1858
      %1893 = vmatpush1.msra.mxu0 %v1857
      %1894 = vmatprep.subr.mxu0 %v1860
      %1895 = vmatpush1.msra.mxu0 %v1859
      %1896 = vmatprep.subr.mxu0 %v1862
      %1897 = vmatpush1.msra.mxu0 %v1861
      %1898 = vmatprep.subr.mxu0 %v1864
      %1899 = vmatpush1.msra.mxu0 %v1863
      %1900 = vmatprep.subr.mxu0 %v1866
      %1901 = vmatpush1.msra.mxu0 %v1865
      %1902 = vmatprep.subr.mxu0 %v1868
      %1903 = vmatpush1.msra.mxu0 %v1867
      %1904 = vmatprep.subr.mxu0 %v1870
      %1905 = vmatpush1.msra.mxu0 %v1869
      %1906 = vmatprep.subr.mxu0 %v1872
      %1907 = vmatpush1.msra.mxu0 %v1871
      %1908 = vmatprep.subr.mxu0 %v1874
      %1909 = vmatpush1.msra.mxu0 %v1873
      %1910 = vmatprep.subr.mxu0 %v1888
      %1911 = vmatpush1.msra.mxu0 %v1885
      %1912 = vmatprep.subr.mxu0 0.0
      %1913 = vmatpush1.msra.mxu0 0.0
      %1914 = vmatprep.subr.mxu0 0.0
      %1915 = vmatpush1.msra.mxu0 0.0
      %1916 = vmatprep.subr.mxu0 0.0
      %1917 = vmatpush1.msra.mxu0 0.0
      %1918 = vmatprep.subr.mxu0 0.0
      %1919 = vmatpush1.msra.mxu0 0.0
      %1920 = vmatprep.subr.mxu0 0.0
      %1921 = vmatpush1.msra.mxu0 0.0
      %1922 = vmatprep.subr.mxu0 0.0
      %1923 = vmatpush1.msra.mxu0 0.0
      %1924 = vmatprep.subr.mxu0 0.0
      %1925 = vmatpush1.msra.mxu0 0.0
      %1926 = vmatprep.subr.mxu0 0.0
      %1927 = vmatpush1.msra.mxu0 0.0
      %1928 = vmatprep.subr.mxu0 0.0
      %1929 = vmatpush1.msra.mxu0 0.0
      %1930 = vmatprep.subr.mxu0 0.0
      %1931 = vmatpush1.msra.mxu0 0.0
      %1932 = vmatprep.subr.mxu0 0.0
      %1933 = vmatpush1.msra.mxu0 0.0
      %1934 = vmatprep.subr.mxu0 0.0
      %1935 = vmatpush1.msra.mxu0 0.0
      %1936 = vmatprep.subr.mxu0 0.0
      %1937 = vmatpush1.msra.mxu0 0.0
      %1938 = vmatprep.subr.mxu0 0.0
      %1939 = vmatpush1.msra.mxu0 0.0
      %1940 = vmatprep.subr.mxu0 0.0
      %1941 = vmatpush1.msra.mxu0 0.0
      %1942 = vmatprep.subr.mxu0 0.0
      %1943 = vmatpush1.msra.mxu0 0.0
      %1944 = vmatprep.subr.mxu0 0.0
      %1945 = vmatpush1.msra.mxu0 0.0
      %1946 = vmatprep.subr.mxu0 0.0
      %1947 = vmatpush1.msra.mxu0 0.0
      %1948 = vmatprep.subr.mxu0 0.0
      %1949 = vmatpush1.msra.mxu0 0.0
      %1950 = vmatprep.subr.mxu0 0.0
      %1951 = vmatpush1.msra.mxu0 0.0
      %1952 = vmatprep.subr.mxu0 0.0
      %1953 = vmatpush1.msra.mxu0 0.0
      %1954 = vmatprep.mubr.f32.mxu0 0.0
      %1955 = vmatmul.mubr.f32.gmra.mrb[0].mxu0 %v1880
      %v1956 = vpop.f32.mrb[0].mxu0
      %v1957 = vadd.f32 0.0, %v1956
      %v1958 = vpop.f32.mrb[0].mxu0
      %v1959 = vadd.f32 0.0, %v1958
      %1960 = vmatprep.mubr.f32.mxu0 0.0
      %1961 = vmatmul.mubr.f32.gmra.mrb[0].mxu0 %v1882
      %v1962 = vpop.f32.mrb[0].mxu0
      %v1963 = vadd.f32 0.0, %v1962
      %v1964 = vpop.f32.mrb[0].mxu0
      %v1965 = vadd.f32 0.0, %v1964
      %1966 = vdwg.mxu0
      %v1967 = vadd.f32 %v1844, %v1957
      %v1968 = vadd.f32 %v1846, %v1959
      %v1969 = vadd.f32 %v1850, %v1963
      %v1970 = vadd.f32 %v1852, %v1965
      %s1971 = scalar_lea.vmem %s3, 528
      %v1972 = vld [vmem:[%s1971] sm:$0xff]
      %v1973 = vld [vmem:[%s1971 + $0x8] sm:$0xff]
      %v1974 = vld [vmem:[%s1971 + $0x10] sm:$0xff]
      %v1975 = vld [vmem:[%s1971 + $0x18] sm:$0xff]
      %v1976 = vld [vmem:[%s1971 + $0x20] sm:$0xff]
      %v1977 = vld [vmem:[%s1971 + $0x28] sm:$0xff]
      %v1978 = vld [vmem:[%s1971 + $0x30] sm:$0xff]
      %v1979 = vld [vmem:[%s1971 + $0x38] sm:$0xff]
      %v1980 = vld [vmem:[%s1971 + $0x40] sm:$0xff]
      %v1981 = vld [vmem:[%s1971 + $0x48] sm:$0xff]
      %v1982 = vld [vmem:[%s1971 + $0x50] sm:$0xff]
      %v1983 = vld [vmem:[%s1971 + $0x58] sm:$0xff]
      %v1984 = vld [vmem:[%s1971 + $0x60] sm:$0xff]
      %v1985 = vld [vmem:[%s1971 + $0x68] sm:$0xff]
      %v1986 = vld [vmem:[%s1971 + $0x70] sm:$0xff]
      %v1987 = vld [vmem:[%s1971 + $0x78] sm:$0xff]
      %v1988 = vld [vmem:[%s1971 + $0x80] sm:$0xff]
      %v1989 = vld [vmem:[%s1971 + $0x88] sm:$0xff]
      %v1990 = vld [vmem:[%s1971 + $0x90] sm:$0xff]
      %v1991 = vld [vmem:[%s1971 + $0x98] sm:$0xff]
      %v1992 = vld [vmem:[%s1971 + $0xa0] sm:$0xf]
      %v1993 = vld [vmem:[%s1971 + $0xa8] sm:$0xf]
      %v1994 = vrot.slane %v1627, 3
      %v1995 = vrot.slane %v1628, 3
      %v1996 = vsel %vm1015, %v1994, %v1995
      %v1997 = vsel %vm1679, %v1996, 0
      %v1999 = vsel %vm1679, %v1995, 0
      %v2002 = vsel %vm1153, %v1992, 0
      %v2005 = vsel %vm1153, %v1993, 0
      %2007 = vmatprep.subr.mxu0 %v1973
      %2008 = vmatpush1.msra.mxu0 %v1972
      %2009 = vmatprep.subr.mxu0 %v1975
      %2010 = vmatpush1.msra.mxu0 %v1974
      %2011 = vmatprep.subr.mxu0 %v1977
      %2012 = vmatpush1.msra.mxu0 %v1976
      %2013 = vmatprep.subr.mxu0 %v1979
      %2014 = vmatpush1.msra.mxu0 %v1978
      %2015 = vmatprep.subr.mxu0 %v1981
      %2016 = vmatpush1.msra.mxu0 %v1980
      %2017 = vmatprep.subr.mxu0 %v1983
      %2018 = vmatpush1.msra.mxu0 %v1982
      %2019 = vmatprep.subr.mxu0 %v1985
      %2020 = vmatpush1.msra.mxu0 %v1984
      %2021 = vmatprep.subr.mxu0 %v1987
      %2022 = vmatpush1.msra.mxu0 %v1986
      %2023 = vmatprep.subr.mxu0 %v1989
      %2024 = vmatpush1.msra.mxu0 %v1988
      %2025 = vmatprep.subr.mxu0 %v1991
      %2026 = vmatpush1.msra.mxu0 %v1990
      %2027 = vmatprep.subr.mxu0 %v2005
      %2028 = vmatpush1.msra.mxu0 %v2002
      %2029 = vmatprep.subr.mxu0 0.0
      %2030 = vmatpush1.msra.mxu0 0.0
      %2031 = vmatprep.subr.mxu0 0.0
      %2032 = vmatpush1.msra.mxu0 0.0
      %2033 = vmatprep.subr.mxu0 0.0
      %2034 = vmatpush1.msra.mxu0 0.0
      %2035 = vmatprep.subr.mxu0 0.0
      %2036 = vmatpush1.msra.mxu0 0.0
      %2037 = vmatprep.subr.mxu0 0.0
      %2038 = vmatpush1.msra.mxu0 0.0
      %2039 = vmatprep.subr.mxu0 0.0
      %2040 = vmatpush1.msra.mxu0 0.0
      %2041 = vmatprep.subr.mxu0 0.0
      %2042 = vmatpush1.msra.mxu0 0.0
      %2043 = vmatprep.subr.mxu0 0.0
      %2044 = vmatpush1.msra.mxu0 0.0
      %2045 = vmatprep.subr.mxu0 0.0
      %2046 = vmatpush1.msra.mxu0 0.0
      %2047 = vmatprep.subr.mxu0 0.0
      %2048 = vmatpush1.msra.mxu0 0.0
      %2049 = vmatprep.subr.mxu0 0.0
      %2050 = vmatpush1.msra.mxu0 0.0
      %2051 = vmatprep.subr.mxu0 0.0
      %2052 = vmatpush1.msra.mxu0 0.0
      %2053 = vmatprep.subr.mxu0 0.0
      %2054 = vmatpush1.msra.mxu0 0.0
      %2055 = vmatprep.subr.mxu0 0.0
      %2056 = vmatpush1.msra.mxu0 0.0
      %2057 = vmatprep.subr.mxu0 0.0
      %2058 = vmatpush1.msra.mxu0 0.0
      %2059 = vmatprep.subr.mxu0 0.0
      %2060 = vmatpush1.msra.mxu0 0.0
      %2061 = vmatprep.subr.mxu0 0.0
      %2062 = vmatpush1.msra.mxu0 0.0
      %2063 = vmatprep.subr.mxu0 0.0
      %2064 = vmatpush1.msra.mxu0 0.0
      %2065 = vmatprep.subr.mxu0 0.0
      %2066 = vmatpush1.msra.mxu0 0.0
      %2067 = vmatprep.subr.mxu0 0.0
      %2068 = vmatpush1.msra.mxu0 0.0
      %2069 = vmatprep.subr.mxu0 0.0
      %2070 = vmatpush1.msra.mxu0 0.0
      %2071 = vmatprep.mubr.f32.mxu0 0.0
      %2072 = vmatmul.mubr.f32.gmra.mrb[0].mxu0 %v1997
      %v2073 = vpop.f32.mrb[0].mxu0
      %v2074 = vadd.f32 0.0, %v2073
      %v2075 = vpop.f32.mrb[0].mxu0
      %v2076 = vadd.f32 0.0, %v2075
      %2077 = vmatprep.mubr.f32.mxu0 0.0
      %2078 = vmatmul.mubr.f32.gmra.mrb[0].mxu0 %v1999
      %v2079 = vpop.f32.mrb[0].mxu0
      %v2080 = vadd.f32 0.0, %v2079
      %v2081 = vpop.f32.mrb[0].mxu0
      %v2082 = vadd.f32 0.0, %v2081
      %2083 = vdwg.mxu0
      %v2084 = vadd.f32 %v1967, %v2074
      %v2085 = vadd.f32 %v1968, %v2076
      %v2086 = vadd.f32 %v1969, %v2080
      %v2087 = vadd.f32 %v1970, %v2082
      %s2088 = scalar_lea.vmem %s3, 704
      %v2089 = vld [vmem:[%s2088] sm:$0xff]
      %v2090 = vld [vmem:[%s2088 + $0x8] sm:$0xff]
      %v2091 = vld [vmem:[%s2088 + $0x10] sm:$0xff]
      %v2092 = vld [vmem:[%s2088 + $0x18] sm:$0xff]
      %v2093 = vld [vmem:[%s2088 + $0x20] sm:$0xff]
      %v2094 = vld [vmem:[%s2088 + $0x28] sm:$0xff]
      %v2095 = vld [vmem:[%s2088 + $0x30] sm:$0xff]
      %v2096 = vld [vmem:[%s2088 + $0x38] sm:$0xff]
      %v2097 = vld [vmem:[%s2088 + $0x40] sm:$0xff]
      %v2098 = vld [vmem:[%s2088 + $0x48] sm:$0xff]
      %v2099 = vld [vmem:[%s2088 + $0x50] sm:$0xff]
      %v2100 = vld [vmem:[%s2088 + $0x58] sm:$0xff]
      %v2101 = vld [vmem:[%s2088 + $0x60] sm:$0xff]
      %v2102 = vld [vmem:[%s2088 + $0x68] sm:$0xff]
      %v2103 = vld [vmem:[%s2088 + $0x70] sm:$0xff]
      %v2104 = vld [vmem:[%s2088 + $0x78] sm:$0xff]
      %v2105 = vld [vmem:[%s2088 + $0x80] sm:$0xff]
      %v2106 = vld [vmem:[%s2088 + $0x88] sm:$0xff]
      %v2107 = vld [vmem:[%s2088 + $0x90] sm:$0xff]
      %v2108 = vld [vmem:[%s2088 + $0x98] sm:$0xff]
      %v2109 = vld [vmem:[%s2088 + $0xa0] sm:$0xf]
      %v2110 = vld [vmem:[%s2088 + $0xa8] sm:$0xf]
      %v2111 = vrot.slane %v1627, 4
      %v2112 = vrot.slane %v1628, 4
      %v2113 = vsel %vm1153, %v2111, %v2112
      %v2114 = vsel %vm1679, %v2113, 0
      %v2116 = vsel %vm1679, %v2112, 0
      %v2119 = vsel %vm1153, %v2109, 0
      %v2122 = vsel %vm1153, %v2110, 0
      %2124 = vmatprep.subr.mxu0 %v2090
      %2125 = vmatpush1.msra.mxu0 %v2089
      %2126 = vmatprep.subr.mxu0 %v2092
      %2127 = vmatpush1.msra.mxu0 %v2091
      %2128 = vmatprep.subr.mxu0 %v2094
      %2129 = vmatpush1.msra.mxu0 %v2093
      %2130 = vmatprep.subr.mxu0 %v2096
      %2131 = vmatpush1.msra.mxu0 %v2095
      %2132 = vmatprep.subr.mxu0 %v2098
      %2133 = vmatpush1.msra.mxu0 %v2097
      %2134 = vmatprep.subr.mxu0 %v2100
      %2135 = vmatpush1.msra.mxu0 %v2099
      %2136 = vmatprep.subr.mxu0 %v2102
      %2137 = vmatpush1.msra.mxu0 %v2101
      %2138 = vmatprep.subr.mxu0 %v2104
      %2139 = vmatpush1.msra.mxu0 %v2103
      %2140 = vmatprep.subr.mxu0 %v2106
      %2141 = vmatpush1.msra.mxu0 %v2105
      %2142 = vmatprep.subr.mxu0 %v2108
      %2143 = vmatpush1.msra.mxu0 %v2107
      %2144 = vmatprep.subr.mxu0 %v2122
      %2145 = vmatpush1.msra.mxu0 %v2119
      %2146 = vmatprep.subr.mxu0 0.0
      %2147 = vmatpush1.msra.mxu0 0.0
      %2148 = vmatprep.subr.mxu0 0.0
      %2149 = vmatpush1.msra.mxu0 0.0
      %2150 = vmatprep.subr.mxu0 0.0
      %2151 = vmatpush1.msra.mxu0 0.0
      %2152 = vmatprep.subr.mxu0 0.0
      %2153 = vmatpush1.msra.mxu0 0.0
      %2154 = vmatprep.subr.mxu0 0.0
      %2155 = vmatpush1.msra.mxu0 0.0
      %2156 = vmatprep.subr.mxu0 0.0
      %2157 = vmatpush1.msra.mxu0 0.0
      %2158 = vmatprep.subr.mxu0 0.0
      %2159 = vmatpush1.msra.mxu0 0.0
      %2160 = vmatprep.subr.mxu0 0.0
      %2161 = vmatpush1.msra.mxu0 0.0
      %2162 = vmatprep.subr.mxu0 0.0
      %2163 = vmatpush1.msra.mxu0 0.0
      %2164 = vmatprep.subr.mxu0 0.0
      %2165 = vmatpush1.msra.mxu0 0.0
      %2166 = vmatprep.subr.mxu0 0.0
      %2167 = vmatpush1.msra.mxu0 0.0
      %2168 = vmatprep.subr.mxu0 0.0
      %2169 = vmatpush1.msra.mxu0 0.0
      %2170 = vmatprep.subr.mxu0 0.0
      %2171 = vmatpush1.msra.mxu0 0.0
      %2172 = vmatprep.subr.mxu0 0.0
      %2173 = vmatpush1.msra.mxu0 0.0
      %2174 = vmatprep.subr.mxu0 0.0
      %2175 = vmatpush1.msra.mxu0 0.0
      %2176 = vmatprep.subr.mxu0 0.0
      %2177 = vmatpush1.msra.mxu0 0.0
      %2178 = vmatprep.subr.mxu0 0.0
      %2179 = vmatpush1.msra.mxu0 0.0
      %2180 = vmatprep.subr.mxu0 0.0
      %2181 = vmatpush1.msra.mxu0 0.0
      %2182 = vmatprep.subr.mxu0 0.0
      %2183 = vmatpush1.msra.mxu0 0.0
      %2184 = vmatprep.subr.mxu0 0.0
      %2185 = vmatpush1.msra.mxu0 0.0
      %2186 = vmatprep.subr.mxu0 0.0
      %2187 = vmatpush1.msra.mxu0 0.0
      %2188 = vmatprep.mubr.f32.mxu0 0.0
      %2189 = vmatmul.mubr.f32.gmra.mrb[0].mxu0 %v2114
      %v2190 = vpop.f32.mrb[0].mxu0
      %v2191 = vadd.f32 0.0, %v2190
      %v2192 = vpop.f32.mrb[0].mxu0
      %v2193 = vadd.f32 0.0, %v2192
      %2194 = vmatprep.mubr.f32.mxu0 0.0
      %2195 = vmatmul.mubr.f32.gmra.mrb[0].mxu0 %v2116
      %v2196 = vpop.f32.mrb[0].mxu0
      %v2197 = vadd.f32 0.0, %v2196
      %v2198 = vpop.f32.mrb[0].mxu0
      %v2199 = vadd.f32 0.0, %v2198
      %2200 = vdwg.mxu0
      %v2201 = vadd.f32 %v2084, %v2191
      %v2202 = vadd.f32 %v2085, %v2193
      %v2203 = vadd.f32 %v2086, %v2197
      %v2204 = vadd.f32 %v2087, %v2199
      %v2206 = vlaneseq
      %v2207 = vshrl.u32 %v2206, 7
      %v2208 = vsub.s32 0, %v2207
      %v2209 = vrot.slane %v499, %v2208
      %v2210 = vlaneseq
      %v2211 = vshrl.u32 %v2210, 7
      %v2212 = vsub.s32 1, %v2211
      %v2213 = vrot.slane %v499, %v2212
      %v2216 = vadd.f32 %v2201, %v2209
      %v2217 = vadd.f32 %v2202, %v2213
      %v2218 = vadd.f32 %v2203, %v2209
      %v2219 = vadd.f32 %v2204, %v2213
      %v2220 = vmax.f32 %v2216, 0.0
      %v2221 = vmax.f32 %v2217, 0.0
      %v2222 = vmax.f32 %v2218, 0.0
      %v2223 = vmax.f32 %v2219, 0.0
      %vm2224 = vcmask 80896
      %v2226 = vsel %vm2224, %v548, 0
      %vm2228 = vcmask 1041408
      %v2230 = vsel %vm2228, %v2222, 0
      %v2233 = vsel %vm2228, %v2223, 0
      %2235 = vmatprep.subr.mxu0 %v2221
      %2236 = vmatpush1.msra.mxu0 %v2220
      %2237 = vmatprep.subr.mxu0 %v2233
      %2238 = vmatpush1.msra.mxu0 %v2230
      %2239 = vmatprep.subr.mxu0 0.0
      %2240 = vmatpush1.msra.mxu0 0.0
      %2241 = vmatprep.subr.mxu0 0.0
      %2242 = vmatpush1.msra.mxu0 0.0
      %2243 = vmatprep.subr.mxu0 0.0
      %2244 = vmatpush1.msra.mxu0 0.0
      %2245 = vmatprep.subr.mxu0 0.0
      %2246 = vmatpush1.msra.mxu0 0.0
      %2247 = vmatprep.subr.mxu0 0.0
      %2248 = vmatpush1.msra.mxu0 0.0
      %2249 = vmatprep.subr.mxu0 0.0
      %2250 = vmatpush1.msra.mxu0 0.0
      %2251 = vmatprep.subr.mxu0 0.0
      %2252 = vmatpush1.msra.mxu0 0.0
      %2253 = vmatprep.subr.mxu0 0.0
      %2254 = vmatpush1.msra.mxu0 0.0
      %2255 = vmatprep.subr.mxu0 0.0
      %2256 = vmatpush1.msra.mxu0 0.0
      %2257 = vmatprep.subr.mxu0 0.0
      %2258 = vmatpush1.msra.mxu0 0.0
      %2259 = vmatprep.subr.mxu0 0.0
      %2260 = vmatpush1.msra.mxu0 0.0
      %2261 = vmatprep.subr.mxu0 0.0
      %2262 = vmatpush1.msra.mxu0 0.0
      %2263 = vmatprep.subr.mxu0 0.0
      %2264 = vmatpush1.msra.mxu0 0.0
      %2265 = vmatprep.subr.mxu0 0.0
      %2266 = vmatpush1.msra.mxu0 0.0
      %2267 = vmatprep.subr.mxu0 0.0
      %2268 = vmatpush1.msra.mxu0 0.0
      %2269 = vmatprep.subr.mxu0 0.0
      %2270 = vmatpush1.msra.mxu0 0.0
      %2271 = vmatprep.subr.mxu0 0.0
      %2272 = vmatpush1.msra.mxu0 0.0
      %2273 = vmatprep.subr.mxu0 0.0
      %2274 = vmatpush1.msra.mxu0 0.0
      %2275 = vmatprep.subr.mxu0 0.0
      %2276 = vmatpush1.msra.mxu0 0.0
      %2277 = vmatprep.subr.mxu0 0.0
      %2278 = vmatpush1.msra.mxu0 0.0
      %2279 = vmatprep.subr.mxu0 0.0
      %2280 = vmatpush1.msra.mxu0 0.0
      %2281 = vmatprep.subr.mxu0 0.0
      %2282 = vmatpush1.msra.mxu0 0.0
      %2283 = vmatprep.subr.mxu0 0.0
      %2284 = vmatpush1.msra.mxu0 0.0
      %2285 = vmatprep.subr.mxu0 0.0
      %2286 = vmatpush1.msra.mxu0 0.0
      %2287 = vmatprep.subr.mxu0 0.0
      %2288 = vmatpush1.msra.mxu0 0.0
      %2289 = vmatprep.subr.mxu0 0.0
      %2290 = vmatpush1.msra.mxu0 0.0
      %2291 = vmatprep.subr.mxu0 0.0
      %2292 = vmatpush1.msra.mxu0 0.0
      %2293 = vmatprep.subr.mxu0 0.0
      %2294 = vmatpush1.msra.mxu0 0.0
      %2295 = vmatprep.subr.mxu0 0.0
      %2296 = vmatpush1.msra.mxu0 0.0
      %2297 = vmatprep.subr.mxu0 0.0
      %2298 = vmatpush1.msra.mxu0 0.0
      %2299 = vmatprep.mubr.f32.mxu0 0.0
      %2300 = vmatmul.mubr.f32.gmra.mrb[0].mxu0 %v2226
      %v2301 = vpop.f32.mrb[0].mxu0
      %v2302 = vadd.f32 0.0, %v2301
      %v2303 = vpop.f32.mrb[0].mxu0
      %v2304 = vadd.f32 0.0, %v2303
      %2305 = vdwg.mxu0
      %v2307 = vsel %vm2224, %v550, 0
      %2309 = vmatprep.subr.mxu0 %v2221
      %2310 = vmatpush1.msra.mxu0 %v2220
      %2311 = vmatprep.subr.mxu0 %v2233
      %2312 = vmatpush1.msra.mxu0 %v2230
      %2313 = vmatprep.subr.mxu0 0.0
      %2314 = vmatpush1.msra.mxu0 0.0
      %2315 = vmatprep.subr.mxu0 0.0
      %2316 = vmatpush1.msra.mxu0 0.0
      %2317 = vmatprep.subr.mxu0 0.0
      %2318 = vmatpush1.msra.mxu0 0.0
      %2319 = vmatprep.subr.mxu0 0.0
      %2320 = vmatpush1.msra.mxu0 0.0
      %2321 = vmatprep.subr.mxu0 0.0
      %2322 = vmatpush1.msra.mxu0 0.0
      %2323 = vmatprep.subr.mxu0 0.0
      %2324 = vmatpush1.msra.mxu0 0.0
      %2325 = vmatprep.subr.mxu0 0.0
      %2326 = vmatpush1.msra.mxu0 0.0
      %2327 = vmatprep.subr.mxu0 0.0
      %2328 = vmatpush1.msra.mxu0 0.0
      %2329 = vmatprep.subr.mxu0 0.0
      %2330 = vmatpush1.msra.mxu0 0.0
      %2331 = vmatprep.subr.mxu0 0.0
      %2332 = vmatpush1.msra.mxu0 0.0
      %2333 = vmatprep.subr.mxu0 0.0
      %2334 = vmatpush1.msra.mxu0 0.0
      %2335 = vmatprep.subr.mxu0 0.0
      %2336 = vmatpush1.msra.mxu0 0.0
      %2337 = vmatprep.subr.mxu0 0.0
      %2338 = vmatpush1.msra.mxu0 0.0
      %2339 = vmatprep.subr.mxu0 0.0
      %2340 = vmatpush1.msra.mxu0 0.0
      %2341 = vmatprep.subr.mxu0 0.0
      %2342 = vmatpush1.msra.mxu0 0.0
      %2343 = vmatprep.subr.mxu0 0.0
      %2344 = vmatpush1.msra.mxu0 0.0
      %2345 = vmatprep.subr.mxu0 0.0
      %2346 = vmatpush1.msra.mxu0 0.0
      %2347 = vmatprep.subr.mxu0 0.0
      %2348 = vmatpush1.msra.mxu0 0.0
      %2349 = vmatprep.subr.mxu0 0.0
      %2350 = vmatpush1.msra.mxu0 0.0
      %2351 = vmatprep.subr.mxu0 0.0
      %2352 = vmatpush1.msra.mxu0 0.0
      %2353 = vmatprep.subr.mxu0 0.0
      %2354 = vmatpush1.msra.mxu0 0.0
      %2355 = vmatprep.subr.mxu0 0.0
      %2356 = vmatpush1.msra.mxu0 0.0
      %2357 = vmatprep.subr.mxu0 0.0
      %2358 = vmatpush1.msra.mxu0 0.0
      %2359 = vmatprep.subr.mxu0 0.0
      %2360 = vmatpush1.msra.mxu0 0.0
      %2361 = vmatprep.subr.mxu0 0.0
      %2362 = vmatpush1.msra.mxu0 0.0
      %2363 = vmatprep.subr.mxu0 0.0
      %2364 = vmatpush1.msra.mxu0 0.0
      %2365 = vmatprep.subr.mxu0 0.0
      %2366 = vmatpush1.msra.mxu0 0.0
      %2367 = vmatprep.subr.mxu0 0.0
      %2368 = vmatpush1.msra.mxu0 0.0
      %2369 = vmatprep.subr.mxu0 0.0
      %2370 = vmatpush1.msra.mxu0 0.0
      %2371 = vmatprep.subr.mxu0 0.0
      %2372 = vmatpush1.msra.mxu0 0.0
      %2373 = vmatprep.mubr.f32.mxu0 0.0
      %2374 = vmatmul.mubr.f32.gmra.mrb[0].mxu0 %v2307
      %v2375 = vpop.f32.mrb[0].mxu0
      %v2376 = vadd.f32 0.0, %v2375
      %v2377 = vpop.f32.mrb[0].mxu0
      %v2378 = vadd.f32 0.0, %v2377
      %2379 = vdwg.mxu0
      %v2380 = vmax.f32 %v2302, %v2376
      %v2381 = vmax.f32 %v2304, %v2378
      %vm2382 = vcmask 261120
      %v2384 = vsel %vm2382, %v2381, 0
      %2386 = vmatprep.subr.mxu0 0.0
      %2387 = vmatpush1.msra.mxu0 %v551
      %2388 = vmatprep.subr.mxu0 0.0
      %2389 = vmatpush1.msra.mxu0 %v552
      %2390 = vmatprep.subr.mxu0 0.0
      %2391 = vmatpush1.msra.mxu0 %v553
      %2392 = vmatprep.subr.mxu0 0.0
      %2393 = vmatpush1.msra.mxu0 %v554
      %2394 = vmatprep.subr.mxu0 0.0
      %2395 = vmatpush1.msra.mxu0 %v555
      %2396 = vmatprep.subr.mxu0 0.0
      %2397 = vmatpush1.msra.mxu0 %v556
      %2398 = vmatprep.subr.mxu0 0.0
      %2399 = vmatpush1.msra.mxu0 %v557
      %2400 = vmatprep.subr.mxu0 0.0
      %2401 = vmatpush1.msra.mxu0 %v558
      %2402 = vmatprep.subr.mxu0 0.0
      %2403 = vmatpush1.msra.mxu0 %v559
      %2404 = vmatprep.subr.mxu0 0.0
      %2405 = vmatpush1.msra.mxu0 %v560
      %2406 = vmatprep.subr.mxu0 0.0
      %2407 = vmatpush1.msra.mxu0 %v561
      %2408 = vmatprep.subr.mxu0 0.0
      %2409 = vmatpush1.msra.mxu0 %v562
      %2410 = vmatprep.subr.mxu0 0.0
      %2411 = vmatpush1.msra.mxu0 %v563
      %2412 = vmatprep.subr.mxu0 0.0
      %2413 = vmatpush1.msra.mxu0 %v564
      %2414 = vmatprep.subr.mxu0 0.0
      %2415 = vmatpush1.msra.mxu0 %v565
      %2416 = vmatprep.subr.mxu0 0.0
      %2417 = vmatpush1.msra.mxu0 %v566
      %2418 = vmatprep.subr.mxu0 0.0
      %2419 = vmatpush1.msra.mxu0 %v567
      %2420 = vmatprep.subr.mxu0 0.0
      %2421 = vmatpush1.msra.mxu0 %v568
      %2422 = vmatprep.subr.mxu0 0.0
      %2423 = vmatpush1.msra.mxu0 %v569
      %2424 = vmatprep.subr.mxu0 0.0
      %2425 = vmatpush1.msra.mxu0 %v570
      %2426 = vmatprep.subr.mxu0 0.0
      %2427 = vmatpush1.msra.mxu0 0.0
      %2428 = vmatprep.subr.mxu0 0.0
      %2429 = vmatpush1.msra.mxu0 0.0
      %2430 = vmatprep.subr.mxu0 0.0
      %2431 = vmatpush1.msra.mxu0 0.0
      %2432 = vmatprep.subr.mxu0 0.0
      %2433 = vmatpush1.msra.mxu0 0.0
      %2434 = vmatprep.subr.mxu0 0.0
      %2435 = vmatpush1.msra.mxu0 0.0
      %2436 = vmatprep.subr.mxu0 0.0
      %2437 = vmatpush1.msra.mxu0 0.0
      %2438 = vmatprep.subr.mxu0 0.0
      %2439 = vmatpush1.msra.mxu0 0.0
      %2440 = vmatprep.subr.mxu0 0.0
      %2441 = vmatpush1.msra.mxu0 0.0
      %2442 = vmatprep.subr.mxu0 0.0
      %2443 = vmatpush1.msra.mxu0 0.0
      %2444 = vmatprep.subr.mxu0 0.0
      %2445 = vmatpush1.msra.mxu0 0.0
      %2446 = vmatprep.subr.mxu0 0.0
      %2447 = vmatpush1.msra.mxu0 0.0
      %2448 = vmatprep.subr.mxu0 0.0
      %2449 = vmatpush1.msra.mxu0 0.0
      %2450 = vmatprep.mubr.f32.mxu0 %v2384
      %2451 = vmatmul.mubr.f32.gmra.mrb[0].mxu0 %v2380
      %v2452 = vpop.f32.mrb[0].mxu0
      %v2453 = vadd.f32 0.0, %v2452
      %v2454 = vpop.f32.mrb[0].mxu0
      %2455 = vdwg.mxu0
      %2456 = vmatprep.subr.mxu0 0.0
      %2457 = vmatpush1.msra.mxu0 %v572
      %2458 = vmatprep.subr.mxu0 0.0
      %2459 = vmatpush1.msra.mxu0 %v573
      %2460 = vmatprep.subr.mxu0 0.0
      %2461 = vmatpush1.msra.mxu0 %v574
      %2462 = vmatprep.subr.mxu0 0.0
      %2463 = vmatpush1.msra.mxu0 %v575
      %2464 = vmatprep.subr.mxu0 0.0
      %2465 = vmatpush1.msra.mxu0 %v576
      %2466 = vmatprep.subr.mxu0 0.0
      %2467 = vmatpush1.msra.mxu0 %v577
      %2468 = vmatprep.subr.mxu0 0.0
      %2469 = vmatpush1.msra.mxu0 %v578
      %2470 = vmatprep.subr.mxu0 0.0
      %2471 = vmatpush1.msra.mxu0 %v579
      %2472 = vmatprep.subr.mxu0 0.0
      %2473 = vmatpush1.msra.mxu0 %v580
      %2474 = vmatprep.subr.mxu0 0.0
      %2475 = vmatpush1.msra.mxu0 %v581
      %2476 = vmatprep.subr.mxu0 0.0
      %2477 = vmatpush1.msra.mxu0 %v582
      %2478 = vmatprep.subr.mxu0 0.0
      %2479 = vmatpush1.msra.mxu0 %v583
      %2480 = vmatprep.subr.mxu0 0.0
      %2481 = vmatpush1.msra.mxu0 %v584
      %2482 = vmatprep.subr.mxu0 0.0
      %2483 = vmatpush1.msra.mxu0 %v585
      %2484 = vmatprep.subr.mxu0 0.0
      %2485 = vmatpush1.msra.mxu0 %v586
      %2486 = vmatprep.subr.mxu0 0.0
      %2487 = vmatpush1.msra.mxu0 %v587
      %2488 = vmatprep.subr.mxu0 0.0
      %2489 = vmatpush1.msra.mxu0 %v588
      %2490 = vmatprep.subr.mxu0 0.0
      %2491 = vmatpush1.msra.mxu0 %v589
      %2492 = vmatprep.subr.mxu0 0.0
      %2493 = vmatpush1.msra.mxu0 %v590
      %2494 = vmatprep.subr.mxu0 0.0
      %2495 = vmatpush1.msra.mxu0 %v591
      %2496 = vmatprep.subr.mxu0 0.0
      %2497 = vmatpush1.msra.mxu0 0.0
      %2498 = vmatprep.subr.mxu0 0.0
      %2499 = vmatpush1.msra.mxu0 0.0
      %2500 = vmatprep.subr.mxu0 0.0
      %2501 = vmatpush1.msra.mxu0 0.0
      %2502 = vmatprep.subr.mxu0 0.0
      %2503 = vmatpush1.msra.mxu0 0.0
      %2504 = vmatprep.subr.mxu0 0.0
      %2505 = vmatpush1.msra.mxu0 0.0
      %2506 = vmatprep.subr.mxu0 0.0
      %2507 = vmatpush1.msra.mxu0 0.0
      %2508 = vmatprep.subr.mxu0 0.0
      %2509 = vmatpush1.msra.mxu0 0.0
      %2510 = vmatprep.subr.mxu0 0.0
      %2511 = vmatpush1.msra.mxu0 0.0
      %2512 = vmatprep.subr.mxu0 0.0
      %2513 = vmatpush1.msra.mxu0 0.0
      %2514 = vmatprep.subr.mxu0 0.0
      %2515 = vmatpush1.msra.mxu0 0.0
      %2516 = vmatprep.subr.mxu0 0.0
      %2517 = vmatpush1.msra.mxu0 0.0
      %2518 = vmatprep.subr.mxu0 0.0
      %2519 = vmatpush1.msra.mxu0 0.0
      %2520 = vmatprep.mubr.f32.mxu0 %v2384
      %2521 = vmatmul.mubr.f32.gmra.mrb[0].mxu0 %v2380
      %v2522 = vpop.f32.mrb[0].mxu0
      %v2523 = vadd.f32 0.0, %v2522
      %v2524 = vpop.f32.mrb[0].mxu0
      %2525 = vdwg.mxu0
      %v2526 = vmax.f32 %v2453, %v2523
      %vm2527 = vcmask 647168
      %2528 = vst.msk [vmem:[#allocation2] sm:$0x1] %vm2527, %v2526
      %v2531 = vunpack.c.l.s4 1983009808
      %v2532 = vunpack.c.0.s8 %v2531
      %v2533 = vlaneseq
      %v2534 = vshrl.u32 %v2533, 7
      %v2535 = vsub.s32 %v2532, %v2534
      %v2536 = vrot.slane %v2526, %v2535
      %v2537 = vrot.slane %v2536, 7
      %v2538 = vrot.slane %v2537, 2
      %2539 = vrot.lane.b32.xlu0 %v2538, 80
      %v2540 = vpop.permute.xlu0 %2539
      %v2541 = vrot.slane %v2540, 6
      %vm2542 = vcmask 654336
      %v2543 = vsel %vm2542, %v2541, %v2540
      %vm2545 = vcmask 1041024
      %vm2546 = vcmask 256002
      %vm2547 = vmor %vm2546, %vm2545
      %2548 = vst.msk [vmem:[#allocation2] sm:$0x5] %vm2547, %v2543
      %v2549 = vcombine.high %v2536, %v2536
      %2550 = vrot.lane.b32.xlu0 %v2549, 32
      %v2551 = vpop.permute.xlu0 %2550
      %vm2553 = vcmask 909568
      %2554 = vst.msk [vmem:[#allocation2 + $0x2] sm:$0x1] %vm2553, %v2551
      %v2555 = vrot.slane %v2549, 7
      %v2556 = vrot.slane %v2555, 2
      %2557 = vrot.lane.b32.xlu0 %v2556, 112
      %v2558 = vpop.permute.xlu0 %2557
      %v2559 = vrot.slane %v2558, 6
      %vm2560 = vcmask 916480
      %v2561 = vsel %vm2560, %v2559, %v2558
      %vm2563 = vcmask 1041280
      %vm2564 = vcmask 518146
      %vm2565 = vmor %vm2564, %vm2563
      %2566 = vst.msk [vmem:[#allocation2 + $0x2] sm:$0x5] %vm2565, %v2561
      %v2567 = vcombine.high %v2526, %v2526
      %v2569 = vunpack.c.l.s4 1983009808
      %v2570 = vunpack.c.0.s8 %v2569
      %v2571 = vlaneseq
      %v2572 = vshrl.u32 %v2571, 7
      %v2573 = vsub.s32 %v2570, %v2572
      %v2574 = vrot.slane %v2567, %v2573
      %2575 = vrot.lane.b32.xlu0 %v2574, 64
      %v2576 = vpop.permute.xlu0 %2575
      %v2577 = vrot.slane %v2576, 6
      %vm2578 = vcmask 523264
      %v2579 = vsel %vm2578, %v2577, %v2576
      %vm2581 = vcmask 1040896
      %vm2582 = vcmask 124930
      %vm2583 = vmor %vm2582, %vm2581
      %2584 = vst.msk [vmem:[#allocation2 + $0x4] sm:$0x5] %vm2583, %v2579
      %s2585 = scalar_lea.vmem %s492, 32
      %v2586 = vld [vmem:[%s2585] sm:$0xff]
      %v2587 = vld [vmem:[%s2585 + $0x8] sm:$0xff]
      %v2588 = vld [vmem:[%s2585 + $0x10] sm:$0xff]
      %v2589 = vld [vmem:[%s2585 + $0x18] sm:$0xff]
      %v2590 = vld [vmem:[%s1] sm:$0xff]
      %v2591 = vld [vmem:[%s1 + $0x8] sm:$0xff]
      %v2592 = vld [vmem:[%s1 + $0x10] sm:$0xff]
      %v2593 = vld [vmem:[%s1 + $0x18] sm:$0xff]
      %v2594 = vld [vmem:[%s1 + $0x20] sm:$0xff]
      %v2595 = vld [vmem:[%s1 + $0x28] sm:$0xff]
      %v2596 = vld [vmem:[%s1 + $0x30] sm:$0xff]
      %v2597 = vld [vmem:[%s1 + $0x38] sm:$0xff]
      %v2598 = vld [vmem:[%s1 + $0x40] sm:$0xff]
      %v2599 = vld [vmem:[%s1 + $0x48] sm:$0xff]
      %v2600 = vld [vmem:[%s1 + $0x50] sm:$0xff]
      %v2601 = vld [vmem:[%s1 + $0x58] sm:$0xff]
      %v2602 = vld [vmem:[%s1 + $0x60] sm:$0xff]
      %v2603 = vld [vmem:[%s1 + $0x68] sm:$0xff]
      %v2604 = vld [vmem:[%s1 + $0x70] sm:$0xff]
      %v2605 = vld [vmem:[%s1 + $0x78] sm:$0xff]
      %v2606 = vld [vmem:[%s1 + $0x80] sm:$0xff]
      %v2607 = vld [vmem:[%s1 + $0x88] sm:$0xff]
      %v2608 = vld [vmem:[%s1 + $0x90] sm:$0xff]
      %v2609 = vld [vmem:[%s1 + $0x98] sm:$0xff]
      %v2610 = vld [vmem:[%s1 + $0xa0] sm:$0xff]
      %v2611 = vld [vmem:[%s1 + $0xa8] sm:$0xff]
      %v2612 = vld [vmem:[%s1 + $0xb0] sm:$0xff]
      %v2613 = vld [vmem:[%s1 + $0xb8] sm:$0xff]
      %v2614 = vld [vmem:[%s620] sm:$0xff]
      %v2615 = vld [vmem:[%s620 + $0x8] sm:$0xff]
      %v2616 = vld [vmem:[%s620 + $0x10] sm:$0xff]
      %v2617 = vld [vmem:[%s620 + $0x18] sm:$0xff]
      %v2618 = vld [vmem:[%s620 + $0x20] sm:$0xff]
      %v2619 = vld [vmem:[%s620 + $0x28] sm:$0xff]
      %v2620 = vld [vmem:[%s620 + $0x30] sm:$0xff]
      %v2621 = vld [vmem:[%s620 + $0x38] sm:$0xff]
      %v2622 = vld [vmem:[%s620 + $0x40] sm:$0xff]
      %v2623 = vld [vmem:[%s620 + $0x48] sm:$0xff]
      %v2624 = vld [vmem:[%s620 + $0x50] sm:$0xff]
      %v2625 = vld [vmem:[%s620 + $0x58] sm:$0xff]
      %v2626 = vld [vmem:[%s620 + $0x60] sm:$0xff]
      %v2627 = vld [vmem:[%s620 + $0x68] sm:$0xff]
      %v2628 = vld [vmem:[%s620 + $0x70] sm:$0xff]
      %v2629 = vld [vmem:[%s620 + $0x78] sm:$0xff]
      %v2630 = vld [vmem:[%s620 + $0x80] sm:$0xff]
      %v2631 = vld [vmem:[%s620 + $0x88] sm:$0xff]
      %v2632 = vld [vmem:[%s620 + $0x90] sm:$0xff]
      %v2633 = vld [vmem:[%s620 + $0x98] sm:$0xff]
      %v2634 = vld [vmem:[%s620 + $0xa0] sm:$0xff]
      %v2635 = vld [vmem:[%s620 + $0xa8] sm:$0xff]
      %v2636 = vld [vmem:[%s620 + $0xb0] sm:$0xff]
      %v2637 = vld [vmem:[%s620 + $0xb8] sm:$0xff]
      %v2642 = vrot.slane %v2586, 1
      %v2643 = vrot.slane %v2587, 1
      %v2644 = vsel %vm649, %v2642, %v2643
      %v2645 = vrot.slane %v2588, 1
      %v2646 = vsel %vm649, %v2643, %v2645
      %v2647 = vrot.slane %v2589, 1
      %v2648 = vsel %vm649, %v2645, %v2647
      %v2649 = vsel %vm657, %v2644, 0
      %v2651 = vsel %vm657, %v2646, 0
      %v2653 = vsel %vm657, %v2648, 0
      %v2655 = vsel %vm657, %v2647, 0
      %2657 = vmatprep.subr.mxu0 %v2615
      %2658 = vmatpush1.msra.mxu0 %v2614
      %2659 = vmatprep.subr.mxu0 %v2617
      %2660 = vmatpush1.msra.mxu0 %v2616
      %2661 = vmatprep.subr.mxu0 %v2619
      %2662 = vmatpush1.msra.mxu0 %v2618
      %2663 = vmatprep.subr.mxu0 %v2621
      %2664 = vmatpush1.msra.mxu0 %v2620
      %2665 = vmatprep.subr.mxu0 %v2623
      %2666 = vmatpush1.msra.mxu0 %v2622
      %2667 = vmatprep.subr.mxu0 %v2625
      %2668 = vmatpush1.msra.mxu0 %v2624
      %2669 = vmatprep.subr.mxu0 %v2627
      %2670 = vmatpush1.msra.mxu0 %v2626
      %2671 = vmatprep.subr.mxu0 %v2629
      %2672 = vmatpush1.msra.mxu0 %v2628
      %2673 = vmatprep.subr.mxu0 %v2631
      %2674 = vmatpush1.msra.mxu0 %v2630
      %2675 = vmatprep.subr.mxu0 %v2633
      %2676 = vmatpush1.msra.mxu0 %v2632
      %2677 = vmatprep.subr.mxu0 %v2635
      %2678 = vmatpush1.msra.mxu0 %v2634
      %2679 = vmatprep.subr.mxu0 %v2637
      %2680 = vmatpush1.msra.mxu0 %v2636
      %2681 = vmatprep.subr.mxu0 0.0
      %2682 = vmatpush1.msra.mxu0 0.0
      %2683 = vmatprep.subr.mxu0 0.0
      %2684 = vmatpush1.msra.mxu0 0.0
      %2685 = vmatprep.subr.mxu0 0.0
      %2686 = vmatpush1.msra.mxu0 0.0
      %2687 = vmatprep.subr.mxu0 0.0
      %2688 = vmatpush1.msra.mxu0 0.0
      %2689 = vmatprep.subr.mxu0 0.0
      %2690 = vmatpush1.msra.mxu0 0.0
      %2691 = vmatprep.subr.mxu0 0.0
      %2692 = vmatpush1.msra.mxu0 0.0
      %2693 = vmatprep.subr.mxu0 0.0
      %2694 = vmatpush1.msra.mxu0 0.0
      %2695 = vmatprep.subr.mxu0 0.0
      %2696 = vmatpush1.msra.mxu0 0.0
      %2697 = vmatprep.subr.mxu0 0.0
      %2698 = vmatpush1.msra.mxu0 0.0
      %2699 = vmatprep.subr.mxu0 0.0
      %2700 = vmatpush1.msra.mxu0 0.0
      %2701 = vmatprep.subr.mxu0 0.0
      %2702 = vmatpush1.msra.mxu0 0.0
      %2703 = vmatprep.subr.mxu0 0.0
      %2704 = vmatpush1.msra.mxu0 0.0
      %2705 = vmatprep.subr.mxu0 0.0
      %2706 = vmatpush1.msra.mxu0 0.0
      %2707 = vmatprep.subr.mxu0 0.0
      %2708 = vmatpush1.msra.mxu0 0.0
      %2709 = vmatprep.subr.mxu0 0.0
      %2710 = vmatpush1.msra.mxu0 0.0
      %2711 = vmatprep.subr.mxu0 0.0
      %2712 = vmatpush1.msra.mxu0 0.0
      %2713 = vmatprep.subr.mxu0 0.0
      %2714 = vmatpush1.msra.mxu0 0.0
      %2715 = vmatprep.subr.mxu0 0.0
      %2716 = vmatpush1.msra.mxu0 0.0
      %2717 = vmatprep.subr.mxu0 0.0
      %2718 = vmatpush1.msra.mxu0 0.0
      %2719 = vmatprep.subr.mxu0 0.0
      %2720 = vmatpush1.msra.mxu0 0.0
      %2721 = vmatprep.mubr.f32.mxu0 0.0
      %2722 = vmatmul.mubr.f32.gmra.mrb[0].mxu0 %v2649
      %v2723 = vpop.f32.mrb[0].mxu0
      %v2724 = vadd.f32 0.0, %v2723
      %v2725 = vpop.f32.mrb[0].mxu0
      %v2726 = vadd.f32 0.0, %v2725
      %2727 = vmatprep.mubr.f32.mxu0 0.0
      %2728 = vmatmul.mubr.f32.gmra.mrb[0].mxu0 %v2651
      %v2729 = vpop.f32.mrb[0].mxu0
      %v2730 = vadd.f32 0.0, %v2729
      %v2731 = vpop.f32.mrb[0].mxu0
      %v2732 = vadd.f32 0.0, %v2731
      %2733 = vmatprep.mubr.f32.mxu0 0.0
      %2734 = vmatmul.mubr.f32.gmra.mrb[0].mxu0 %v2653
      %v2735 = vpop.f32.mrb[0].mxu0
      %v2736 = vadd.f32 0.0, %v2735
      %v2737 = vpop.f32.mrb[0].mxu0
      %v2738 = vadd.f32 0.0, %v2737
      %2739 = vmatprep.mubr.f32.mxu0 0.0
      %2740 = vmatmul.mubr.f32.gmra.mrb[0].mxu0 %v2655
      %v2741 = vpop.f32.mrb[0].mxu0
      %v2742 = vadd.f32 0.0, %v2741
      %v2743 = vpop.f32.mrb[0].mxu0
      %v2744 = vadd.f32 0.0, %v2743
      %2745 = vdwg.mxu0
      %v2746 = vsel %vm657, %v2586, 0
      %v2748 = vsel %vm657, %v2587, 0
      %v2750 = vsel %vm657, %v2588, 0
      %v2752 = vsel %vm657, %v2589, 0
      %2754 = vmatprep.subr.mxu0 %v2591
      %2755 = vmatpush1.msra.mxu0 %v2590
      %2756 = vmatprep.subr.mxu0 %v2593
      %2757 = vmatpush1.msra.mxu0 %v2592
      %2758 = vmatprep.subr.mxu0 %v2595
      %2759 = vmatpush1.msra.mxu0 %v2594
      %2760 = vmatprep.subr.mxu0 %v2597
      %2761 = vmatpush1.msra.mxu0 %v2596
      %2762 = vmatprep.subr.mxu0 %v2599
      %2763 = vmatpush1.msra.mxu0 %v2598
      %2764 = vmatprep.subr.mxu0 %v2601
      %2765 = vmatpush1.msra.mxu0 %v2600
      %2766 = vmatprep.subr.mxu0 %v2603
      %2767 = vmatpush1.msra.mxu0 %v2602
      %2768 = vmatprep.subr.mxu0 %v2605
      %2769 = vmatpush1.msra.mxu0 %v2604
      %2770 = vmatprep.subr.mxu0 %v2607
      %2771 = vmatpush1.msra.mxu0 %v2606
      %2772 = vmatprep.subr.mxu0 %v2609
      %2773 = vmatpush1.msra.mxu0 %v2608
      %2774 = vmatprep.subr.mxu0 %v2611
      %2775 = vmatpush1.msra.mxu0 %v2610
      %2776 = vmatprep.subr.mxu0 %v2613
      %2777 = vmatpush1.msra.mxu0 %v2612
      %2778 = vmatprep.subr.mxu0 0.0
      %2779 = vmatpush1.msra.mxu0 0.0
      %2780 = vmatprep.subr.mxu0 0.0
      %2781 = vmatpush1.msra.mxu0 0.0
      %2782 = vmatprep.subr.mxu0 0.0
      %2783 = vmatpush1.msra.mxu0 0.0
      %2784 = vmatprep.subr.mxu0 0.0
      %2785 = vmatpush1.msra.mxu0 0.0
      %2786 = vmatprep.subr.mxu0 0.0
      %2787 = vmatpush1.msra.mxu0 0.0
      %2788 = vmatprep.subr.mxu0 0.0
      %2789 = vmatpush1.msra.mxu0 0.0
      %2790 = vmatprep.subr.mxu0 0.0
      %2791 = vmatpush1.msra.mxu0 0.0
      %2792 = vmatprep.subr.mxu0 0.0
      %2793 = vmatpush1.msra.mxu0 0.0
      %2794 = vmatprep.subr.mxu0 0.0
      %2795 = vmatpush1.msra.mxu0 0.0
      %2796 = vmatprep.subr.mxu0 0.0
      %2797 = vmatpush1.msra.mxu0 0.0
      %2798 = vmatprep.subr.mxu0 0.0
      %2799 = vmatpush1.msra.mxu0 0.0
      %2800 = vmatprep.subr.mxu0 0.0
      %2801 = vmatpush1.msra.mxu0 0.0
      %2802 = vmatprep.subr.mxu0 0.0
      %2803 = vmatpush1.msra.mxu0 0.0
      %2804 = vmatprep.subr.mxu0 0.0
      %2805 = vmatpush1.msra.mxu0 0.0
      %2806 = vmatprep.subr.mxu0 0.0
      %2807 = vmatpush1.msra.mxu0 0.0
      %2808 = vmatprep.subr.mxu0 0.0
      %2809 = vmatpush1.msra.mxu0 0.0
      %2810 = vmatprep.subr.mxu0 0.0
      %2811 = vmatpush1.msra.mxu0 0.0
      %2812 = vmatprep.subr.mxu0 0.0
      %2813 = vmatpush1.msra.mxu0 0.0
      %2814 = vmatprep.subr.mxu0 0.0
      %2815 = vmatpush1.msra.mxu0 0.0
      %2816 = vmatprep.subr.mxu0 0.0
      %2817 = vmatpush1.msra.mxu0 0.0
      %2818 = vmatprep.mubr.f32.mxu0 0.0
      %2819 = vmatmul.mubr.f32.gmra.mrb[0].mxu0 %v2746
      %v2820 = vpop.f32.mrb[0].mxu0
      %v2821 = vadd.f32 %v2724, %v2820
      %v2822 = vpop.f32.mrb[0].mxu0
      %v2823 = vadd.f32 %v2726, %v2822
      %2824 = vmatprep.mubr.f32.mxu0 0.0
      %2825 = vmatmul.mubr.f32.gmra.mrb[0].mxu0 %v2748
      %v2826 = vpop.f32.mrb[0].mxu0
      %v2827 = vadd.f32 %v2730, %v2826
      %v2828 = vpop.f32.mrb[0].mxu0
      %v2829 = vadd.f32 %v2732, %v2828
      %2830 = vmatprep.mubr.f32.mxu0 0.0
      %2831 = vmatmul.mubr.f32.gmra.mrb[0].mxu0 %v2750
      %v2832 = vpop.f32.mrb[0].mxu0
      %v2833 = vadd.f32 %v2736, %v2832
      %v2834 = vpop.f32.mrb[0].mxu0
      %v2835 = vadd.f32 %v2738, %v2834
      %2836 = vmatprep.mubr.f32.mxu0 0.0
      %2837 = vmatmul.mubr.f32.gmra.mrb[0].mxu0 %v2752
      %v2838 = vpop.f32.mrb[0].mxu0
      %v2839 = vadd.f32 %v2742, %v2838
      %v2840 = vpop.f32.mrb[0].mxu0
      %v2841 = vadd.f32 %v2744, %v2840
      %2842 = vdwg.mxu0
      %v2843 = vld [vmem:[%s852] sm:$0xff]
      %v2844 = vld [vmem:[%s852 + $0x8] sm:$0xff]
      %v2845 = vld [vmem:[%s852 + $0x10] sm:$0xff]
      %v2846 = vld [vmem:[%s852 + $0x18] sm:$0xff]
      %v2847 = vld [vmem:[%s852 + $0x20] sm:$0xff]
      %v2848 = vld [vmem:[%s852 + $0x28] sm:$0xff]
      %v2849 = vld [vmem:[%s852 + $0x30] sm:$0xff]
      %v2850 = vld [vmem:[%s852 + $0x38] sm:$0xff]
      %v2851 = vld [vmem:[%s852 + $0x40] sm:$0xff]
      %v2852 = vld [vmem:[%s852 + $0x48] sm:$0xff]
      %v2853 = vld [vmem:[%s852 + $0x50] sm:$0xff]
      %v2854 = vld [vmem:[%s852 + $0x58] sm:$0xff]
      %v2855 = vld [vmem:[%s852 + $0x60] sm:$0xff]
      %v2856 = vld [vmem:[%s852 + $0x68] sm:$0xff]
      %v2857 = vld [vmem:[%s852 + $0x70] sm:$0xff]
      %v2858 = vld [vmem:[%s852 + $0x78] sm:$0xff]
      %v2859 = vld [vmem:[%s852 + $0x80] sm:$0xff]
      %v2860 = vld [vmem:[%s852 + $0x88] sm:$0xff]
      %v2861 = vld [vmem:[%s852 + $0x90] sm:$0xff]
      %v2862 = vld [vmem:[%s852 + $0x98] sm:$0xff]
      %v2863 = vld [vmem:[%s852 + $0xa0] sm:$0xff]
      %v2864 = vld [vmem:[%s852 + $0xa8] sm:$0xff]
      %v2865 = vld [vmem:[%s852 + $0xb0] sm:$0xff]
      %v2866 = vld [vmem:[%s852 + $0xb8] sm:$0xff]
      %v2867 = vrot.slane %v2586, 2
      %v2868 = vrot.slane %v2587, 2
      %v2869 = vsel %vm877, %v2867, %v2868
      %v2870 = vrot.slane %v2588, 2
      %v2871 = vsel %vm877, %v2868, %v2870
      %v2872 = vrot.slane %v2589, 2
      %v2873 = vsel %vm877, %v2870, %v2872
      %v2874 = vsel %vm657, %v2869, 0
      %v2876 = vsel %vm657, %v2871, 0
      %v2878 = vsel %vm657, %v2873, 0
      %v2880 = vsel %vm657, %v2872, 0
      %2882 = vmatprep.subr.mxu0 %v2844
      %2883 = vmatpush1.msra.mxu0 %v2843
      %2884 = vmatprep.subr.mxu0 %v2846
      %2885 = vmatpush1.msra.mxu0 %v2845
      %2886 = vmatprep.subr.mxu0 %v2848
      %2887 = vmatpush1.msra.mxu0 %v2847
      %2888 = vmatprep.subr.mxu0 %v2850
      %2889 = vmatpush1.msra.mxu0 %v2849
      %2890 = vmatprep.subr.mxu0 %v2852
      %2891 = vmatpush1.msra.mxu0 %v2851
      %2892 = vmatprep.subr.mxu0 %v2854
      %2893 = vmatpush1.msra.mxu0 %v2853
      %2894 = vmatprep.subr.mxu0 %v2856
      %2895 = vmatpush1.msra.mxu0 %v2855
      %2896 = vmatprep.subr.mxu0 %v2858
      %2897 = vmatpush1.msra.mxu0 %v2857
      %2898 = vmatprep.subr.mxu0 %v2860
      %2899 = vmatpush1.msra.mxu0 %v2859
      %2900 = vmatprep.subr.mxu0 %v2862
      %2901 = vmatpush1.msra.mxu0 %v2861
      %2902 = vmatprep.subr.mxu0 %v2864
      %2903 = vmatpush1.msra.mxu0 %v2863
      %2904 = vmatprep.subr.mxu0 %v2866
      %2905 = vmatpush1.msra.mxu0 %v2865
      %2906 = vmatprep.subr.mxu0 0.0
      %2907 = vmatpush1.msra.mxu0 0.0
      %2908 = vmatprep.subr.mxu0 0.0
      %2909 = vmatpush1.msra.mxu0 0.0
      %2910 = vmatprep.subr.mxu0 0.0
      %2911 = vmatpush1.msra.mxu0 0.0
      %2912 = vmatprep.subr.mxu0 0.0
      %2913 = vmatpush1.msra.mxu0 0.0
      %2914 = vmatprep.subr.mxu0 0.0
      %2915 = vmatpush1.msra.mxu0 0.0
      %2916 = vmatprep.subr.mxu0 0.0
      %2917 = vmatpush1.msra.mxu0 0.0
      %2918 = vmatprep.subr.mxu0 0.0
      %2919 = vmatpush1.msra.mxu0 0.0
      %2920 = vmatprep.subr.mxu0 0.0
      %2921 = vmatpush1.msra.mxu0 0.0
      %2922 = vmatprep.subr.mxu0 0.0
      %2923 = vmatpush1.msra.mxu0 0.0
      %2924 = vmatprep.subr.mxu0 0.0
      %2925 = vmatpush1.msra.mxu0 0.0
      %2926 = vmatprep.subr.mxu0 0.0
      %2927 = vmatpush1.msra.mxu0 0.0
      %2928 = vmatprep.subr.mxu0 0.0
      %2929 = vmatpush1.msra.mxu0 0.0
      %2930 = vmatprep.subr.mxu0 0.0
      %2931 = vmatpush1.msra.mxu0 0.0
      %2932 = vmatprep.subr.mxu0 0.0
      %2933 = vmatpush1.msra.mxu0 0.0
      %2934 = vmatprep.subr.mxu0 0.0
      %2935 = vmatpush1.msra.mxu0 0.0
      %2936 = vmatprep.subr.mxu0 0.0
      %2937 = vmatpush1.msra.mxu0 0.0
      %2938 = vmatprep.subr.mxu0 0.0
      %2939 = vmatpush1.msra.mxu0 0.0
      %2940 = vmatprep.subr.mxu0 0.0
      %2941 = vmatpush1.msra.mxu0 0.0
      %2942 = vmatprep.subr.mxu0 0.0
      %2943 = vmatpush1.msra.mxu0 0.0
      %2944 = vmatprep.subr.mxu0 0.0
      %2945 = vmatpush1.msra.mxu0 0.0
      %2946 = vmatprep.mubr.f32.mxu0 0.0
      %2947 = vmatmul.mubr.f32.gmra.mrb[0].mxu0 %v2874
      %v2948 = vpop.f32.mrb[0].mxu0
      %v2949 = vadd.f32 0.0, %v2948
      %v2950 = vpop.f32.mrb[0].mxu0
      %v2951 = vadd.f32 0.0, %v2950
      %2952 = vmatprep.mubr.f32.mxu0 0.0
      %2953 = vmatmul.mubr.f32.gmra.mrb[0].mxu0 %v2876
      %v2954 = vpop.f32.mrb[0].mxu0
      %v2955 = vadd.f32 0.0, %v2954
      %v2956 = vpop.f32.mrb[0].mxu0
      %v2957 = vadd.f32 0.0, %v2956
      %2958 = vmatprep.mubr.f32.mxu0 0.0
      %2959 = vmatmul.mubr.f32.gmra.mrb[0].mxu0 %v2878
      %v2960 = vpop.f32.mrb[0].mxu0
      %v2961 = vadd.f32 0.0, %v2960
      %v2962 = vpop.f32.mrb[0].mxu0
      %v2963 = vadd.f32 0.0, %v2962
      %2964 = vmatprep.mubr.f32.mxu0 0.0
      %2965 = vmatmul.mubr.f32.gmra.mrb[0].mxu0 %v2880
      %v2966 = vpop.f32.mrb[0].mxu0
      %v2967 = vadd.f32 0.0, %v2966
      %v2968 = vpop.f32.mrb[0].mxu0
      %v2969 = vadd.f32 0.0, %v2968
      %2970 = vdwg.mxu0
      %v2971 = vadd.f32 %v2821, %v2949
      %v2972 = vadd.f32 %v2823, %v2951
      %v2973 = vadd.f32 %v2827, %v2955
      %v2974 = vadd.f32 %v2829, %v2957
      %v2975 = vadd.f32 %v2833, %v2961
      %v2976 = vadd.f32 %v2835, %v2963
      %v2977 = vadd.f32 %v2839, %v2967
      %v2978 = vadd.f32 %v2841, %v2969
      %v2979 = vld [vmem:[%s990] sm:$0xff]
      %v2980 = vld [vmem:[%s990 + $0x8] sm:$0xff]
      %v2981 = vld [vmem:[%s990 + $0x10] sm:$0xff]
      %v2982 = vld [vmem:[%s990 + $0x18] sm:$0xff]
      %v2983 = vld [vmem:[%s990 + $0x20] sm:$0xff]
      %v2984 = vld [vmem:[%s990 + $0x28] sm:$0xff]
      %v2985 = vld [vmem:[%s990 + $0x30] sm:$0xff]
      %v2986 = vld [vmem:[%s990 + $0x38] sm:$0xff]
      %v2987 = vld [vmem:[%s990 + $0x40] sm:$0xff]
      %v2988 = vld [vmem:[%s990 + $0x48] sm:$0xff]
      %v2989 = vld [vmem:[%s990 + $0x50] sm:$0xff]
      %v2990 = vld [vmem:[%s990 + $0x58] sm:$0xff]
      %v2991 = vld [vmem:[%s990 + $0x60] sm:$0xff]
      %v2992 = vld [vmem:[%s990 + $0x68] sm:$0xff]
      %v2993 = vld [vmem:[%s990 + $0x70] sm:$0xff]
      %v2994 = vld [vmem:[%s990 + $0x78] sm:$0xff]
      %v2995 = vld [vmem:[%s990 + $0x80] sm:$0xff]
      %v2996 = vld [vmem:[%s990 + $0x88] sm:$0xff]
      %v2997 = vld [vmem:[%s990 + $0x90] sm:$0xff]
      %v2998 = vld [vmem:[%s990 + $0x98] sm:$0xff]
      %v2999 = vld [vmem:[%s990 + $0xa0] sm:$0xff]
      %v3000 = vld [vmem:[%s990 + $0xa8] sm:$0xff]
      %v3001 = vld [vmem:[%s990 + $0xb0] sm:$0xff]
      %v3002 = vld [vmem:[%s990 + $0xb8] sm:$0xff]
      %v3003 = vrot.slane %v2586, 3
      %v3004 = vrot.slane %v2587, 3
      %v3005 = vsel %vm1015, %v3003, %v3004
      %v3006 = vrot.slane %v2588, 3
      %v3007 = vsel %vm1015, %v3004, %v3006
      %v3008 = vrot.slane %v2589, 3
      %v3009 = vsel %vm1015, %v3006, %v3008
      %v3010 = vsel %vm657, %v3005, 0
      %v3012 = vsel %vm657, %v3007, 0
      %v3014 = vsel %vm657, %v3009, 0
      %v3016 = vsel %vm657, %v3008, 0
      %3018 = vmatprep.subr.mxu0 %v2980
      %3019 = vmatpush1.msra.mxu0 %v2979
      %3020 = vmatprep.subr.mxu0 %v2982
      %3021 = vmatpush1.msra.mxu0 %v2981
      %3022 = vmatprep.subr.mxu0 %v2984
      %3023 = vmatpush1.msra.mxu0 %v2983
      %3024 = vmatprep.subr.mxu0 %v2986
      %3025 = vmatpush1.msra.mxu0 %v2985
      %3026 = vmatprep.subr.mxu0 %v2988
      %3027 = vmatpush1.msra.mxu0 %v2987
      %3028 = vmatprep.subr.mxu0 %v2990
      %3029 = vmatpush1.msra.mxu0 %v2989
      %3030 = vmatprep.subr.mxu0 %v2992
      %3031 = vmatpush1.msra.mxu0 %v2991
      %3032 = vmatprep.subr.mxu0 %v2994
      %3033 = vmatpush1.msra.mxu0 %v2993
      %3034 = vmatprep.subr.mxu0 %v2996
      %3035 = vmatpush1.msra.mxu0 %v2995
      %3036 = vmatprep.subr.mxu0 %v2998
      %3037 = vmatpush1.msra.mxu0 %v2997
      %3038 = vmatprep.subr.mxu0 %v3000
      %3039 = vmatpush1.msra.mxu0 %v2999
      %3040 = vmatprep.subr.mxu0 %v3002
      %3041 = vmatpush1.msra.mxu0 %v3001
      %3042 = vmatprep.subr.mxu0 0.0
      %3043 = vmatpush1.msra.mxu0 0.0
      %3044 = vmatprep.subr.mxu0 0.0
      %3045 = vmatpush1.msra.mxu0 0.0
      %3046 = vmatprep.subr.mxu0 0.0
      %3047 = vmatpush1.msra.mxu0 0.0
      %3048 = vmatprep.subr.mxu0 0.0
      %3049 = vmatpush1.msra.mxu0 0.0
      %3050 = vmatprep.subr.mxu0 0.0
      %3051 = vmatpush1.msra.mxu0 0.0
      %3052 = vmatprep.subr.mxu0 0.0
      %3053 = vmatpush1.msra.mxu0 0.0
      %3054 = vmatprep.subr.mxu0 0.0
      %3055 = vmatpush1.msra.mxu0 0.0
      %3056 = vmatprep.subr.mxu0 0.0
      %3057 = vmatpush1.msra.mxu0 0.0
      %3058 = vmatprep.subr.mxu0 0.0
      %3059 = vmatpush1.msra.mxu0 0.0
      %3060 = vmatprep.subr.mxu0 0.0
      %3061 = vmatpush1.msra.mxu0 0.0
      %3062 = vmatprep.subr.mxu0 0.0
      %3063 = vmatpush1.msra.mxu0 0.0
      %3064 = vmatprep.subr.mxu0 0.0
      %3065 = vmatpush1.msra.mxu0 0.0
      %3066 = vmatprep.subr.mxu0 0.0
      %3067 = vmatpush1.msra.mxu0 0.0
      %3068 = vmatprep.subr.mxu0 0.0
      %3069 = vmatpush1.msra.mxu0 0.0
      %3070 = vmatprep.subr.mxu0 0.0
      %3071 = vmatpush1.msra.mxu0 0.0
      %3072 = vmatprep.subr.mxu0 0.0
      %3073 = vmatpush1.msra.mxu0 0.0
      %3074 = vmatprep.subr.mxu0 0.0
      %3075 = vmatpush1.msra.mxu0 0.0
      %3076 = vmatprep.subr.mxu0 0.0
      %3077 = vmatpush1.msra.mxu0 0.0
      %3078 = vmatprep.subr.mxu0 0.0
      %3079 = vmatpush1.msra.mxu0 0.0
      %3080 = vmatprep.subr.mxu0 0.0
      %3081 = vmatpush1.msra.mxu0 0.0
      %3082 = vmatprep.mubr.f32.mxu0 0.0
      %3083 = vmatmul.mubr.f32.gmra.mrb[0].mxu0 %v3010
      %v3084 = vpop.f32.mrb[0].mxu0
      %v3085 = vadd.f32 0.0, %v3084
      %v3086 = vpop.f32.mrb[0].mxu0
      %v3087 = vadd.f32 0.0, %v3086
      %3088 = vmatprep.mubr.f32.mxu0 0.0
      %3089 = vmatmul.mubr.f32.gmra.mrb[0].mxu0 %v3012
      %v3090 = vpop.f32.mrb[0].mxu0
      %v3091 = vadd.f32 0.0, %v3090
      %v3092 = vpop.f32.mrb[0].mxu0
      %v3093 = vadd.f32 0.0, %v3092
      %3094 = vmatprep.mubr.f32.mxu0 0.0
      %3095 = vmatmul.mubr.f32.gmra.mrb[0].mxu0 %v3014
      %v3096 = vpop.f32.mrb[0].mxu0
      %v3097 = vadd.f32 0.0, %v3096
      %v3098 = vpop.f32.mrb[0].mxu0
      %v3099 = vadd.f32 0.0, %v3098
      %3100 = vmatprep.mubr.f32.mxu0 0.0
      %3101 = vmatmul.mubr.f32.gmra.mrb[0].mxu0 %v3016
      %v3102 = vpop.f32.mrb[0].mxu0
      %v3103 = vadd.f32 0.0, %v3102
      %v3104 = vpop.f32.mrb[0].mxu0
      %v3105 = vadd.f32 0.0, %v3104
      %3106 = vdwg.mxu0
      %v3107 = vadd.f32 %v2971, %v3085
      %v3108 = vadd.f32 %v2972, %v3087
      %v3109 = vadd.f32 %v2973, %v3091
      %v3110 = vadd.f32 %v2974, %v3093
      %v3111 = vadd.f32 %v2975, %v3097
      %v3112 = vadd.f32 %v2976, %v3099
      %v3113 = vadd.f32 %v2977, %v3103
      %v3114 = vadd.f32 %v2978, %v3105
      %v3115 = vld [vmem:[%s1128] sm:$0xff]
      %v3116 = vld [vmem:[%s1128 + $0x8] sm:$0xff]
      %v3117 = vld [vmem:[%s1128 + $0x10] sm:$0xff]
      %v3118 = vld [vmem:[%s1128 + $0x18] sm:$0xff]
      %v3119 = vld [vmem:[%s1128 + $0x20] sm:$0xff]
      %v3120 = vld [vmem:[%s1128 + $0x28] sm:$0xff]
      %v3121 = vld [vmem:[%s1128 + $0x30] sm:$0xff]
      %v3122 = vld [vmem:[%s1128 + $0x38] sm:$0xff]
      %v3123 = vld [vmem:[%s1128 + $0x40] sm:$0xff]
      %v3124 = vld [vmem:[%s1128 + $0x48] sm:$0xff]
      %v3125 = vld [vmem:[%s1128 + $0x50] sm:$0xff]
      %v3126 = vld [vmem:[%s1128 + $0x58] sm:$0xff]
      %v3127 = vld [vmem:[%s1128 + $0x60] sm:$0xff]
      %v3128 = vld [vmem:[%s1128 + $0x68] sm:$0xff]
      %v3129 = vld [vmem:[%s1128 + $0x70] sm:$0xff]
      %v3130 = vld [vmem:[%s1128 + $0x78] sm:$0xff]
      %v3131 = vld [vmem:[%s1128 + $0x80] sm:$0xff]
      %v3132 = vld [vmem:[%s1128 + $0x88] sm:$0xff]
      %v3133 = vld [vmem:[%s1128 + $0x90] sm:$0xff]
      %v3134 = vld [vmem:[%s1128 + $0x98] sm:$0xff]
      %v3135 = vld [vmem:[%s1128 + $0xa0] sm:$0xff]
      %v3136 = vld [vmem:[%s1128 + $0xa8] sm:$0xff]
      %v3137 = vld [vmem:[%s1128 + $0xb0] sm:$0xff]
      %v3138 = vld [vmem:[%s1128 + $0xb8] sm:$0xff]
      %v3139 = vrot.slane %v2586, 4
      %v3140 = vrot.slane %v2587, 4
      %v3141 = vsel %vm1153, %v3139, %v3140
      %v3142 = vrot.slane %v2588, 4
      %v3143 = vsel %vm1153, %v3140, %v3142
      %v3144 = vrot.slane %v2589, 4
      %v3145 = vsel %vm1153, %v3142, %v3144
      %v3146 = vsel %vm657, %v3141, 0
      %v3148 = vsel %vm657, %v3143, 0
      %v3150 = vsel %vm657, %v3145, 0
      %v3152 = vsel %vm657, %v3144, 0
      %3154 = vmatprep.subr.mxu0 %v3116
      %3155 = vmatpush1.msra.mxu0 %v3115
      %3156 = vmatprep.subr.mxu0 %v3118
      %3157 = vmatpush1.msra.mxu0 %v3117
      %3158 = vmatprep.subr.mxu0 %v3120
      %3159 = vmatpush1.msra.mxu0 %v3119
      %3160 = vmatprep.subr.mxu0 %v3122
      %3161 = vmatpush1.msra.mxu0 %v3121
      %3162 = vmatprep.subr.mxu0 %v3124
      %3163 = vmatpush1.msra.mxu0 %v3123
      %3164 = vmatprep.subr.mxu0 %v3126
      %3165 = vmatpush1.msra.mxu0 %v3125
      %3166 = vmatprep.subr.mxu0 %v3128
      %3167 = vmatpush1.msra.mxu0 %v3127
      %3168 = vmatprep.subr.mxu0 %v3130
      %3169 = vmatpush1.msra.mxu0 %v3129
      %3170 = vmatprep.subr.mxu0 %v3132
      %3171 = vmatpush1.msra.mxu0 %v3131
      %3172 = vmatprep.subr.mxu0 %v3134
      %3173 = vmatpush1.msra.mxu0 %v3133
      %3174 = vmatprep.subr.mxu0 %v3136
      %3175 = vmatpush1.msra.mxu0 %v3135
      %3176 = vmatprep.subr.mxu0 %v3138
      %3177 = vmatpush1.msra.mxu0 %v3137
      %3178 = vmatprep.subr.mxu0 0.0
      %3179 = vmatpush1.msra.mxu0 0.0
      %3180 = vmatprep.subr.mxu0 0.0
      %3181 = vmatpush1.msra.mxu0 0.0
      %3182 = vmatprep.subr.mxu0 0.0
      %3183 = vmatpush1.msra.mxu0 0.0
      %3184 = vmatprep.subr.mxu0 0.0
      %3185 = vmatpush1.msra.mxu0 0.0
      %3186 = vmatprep.subr.mxu0 0.0
      %3187 = vmatpush1.msra.mxu0 0.0
      %3188 = vmatprep.subr.mxu0 0.0
      %3189 = vmatpush1.msra.mxu0 0.0
      %3190 = vmatprep.subr.mxu0 0.0
      %3191 = vmatpush1.msra.mxu0 0.0
      %3192 = vmatprep.subr.mxu0 0.0
      %3193 = vmatpush1.msra.mxu0 0.0
      %3194 = vmatprep.subr.mxu0 0.0
      %3195 = vmatpush1.msra.mxu0 0.0
      %3196 = vmatprep.subr.mxu0 0.0
      %3197 = vmatpush1.msra.mxu0 0.0
      %3198 = vmatprep.subr.mxu0 0.0
      %3199 = vmatpush1.msra.mxu0 0.0
      %3200 = vmatprep.subr.mxu0 0.0
      %3201 = vmatpush1.msra.mxu0 0.0
      %3202 = vmatprep.subr.mxu0 0.0
      %3203 = vmatpush1.msra.mxu0 0.0
      %3204 = vmatprep.subr.mxu0 0.0
      %3205 = vmatpush1.msra.mxu0 0.0
      %3206 = vmatprep.subr.mxu0 0.0
      %3207 = vmatpush1.msra.mxu0 0.0
      %3208 = vmatprep.subr.mxu0 0.0
      %3209 = vmatpush1.msra.mxu0 0.0
      %3210 = vmatprep.subr.mxu0 0.0
      %3211 = vmatpush1.msra.mxu0 0.0
      %3212 = vmatprep.subr.mxu0 0.0
      %3213 = vmatpush1.msra.mxu0 0.0
      %3214 = vmatprep.subr.mxu0 0.0
      %3215 = vmatpush1.msra.mxu0 0.0
      %3216 = vmatprep.subr.mxu0 0.0
      %3217 = vmatpush1.msra.mxu0 0.0
      %3218 = vmatprep.mubr.f32.mxu0 0.0
      %3219 = vmatmul.mubr.f32.gmra.mrb[0].mxu0 %v3146
      %v3220 = vpop.f32.mrb[0].mxu0
      %v3221 = vadd.f32 0.0, %v3220
      %v3222 = vpop.f32.mrb[0].mxu0
      %v3223 = vadd.f32 0.0, %v3222
      %3224 = vmatprep.mubr.f32.mxu0 0.0
      %3225 = vmatmul.mubr.f32.gmra.mrb[0].mxu0 %v3148
      %v3226 = vpop.f32.mrb[0].mxu0
      %v3227 = vadd.f32 0.0, %v3226
      %v3228 = vpop.f32.mrb[0].mxu0
      %v3229 = vadd.f32 0.0, %v3228
      %3230 = vmatprep.mubr.f32.mxu0 0.0
      %3231 = vmatmul.mubr.f32.gmra.mrb[0].mxu0 %v3150
      %v3232 = vpop.f32.mrb[0].mxu0
      %v3233 = vadd.f32 0.0, %v3232
      %v3234 = vpop.f32.mrb[0].mxu0
      %v3235 = vadd.f32 0.0, %v3234
      %3236 = vmatprep.mubr.f32.mxu0 0.0
      %3237 = vmatmul.mubr.f32.gmra.mrb[0].mxu0 %v3152
      %v3238 = vpop.f32.mrb[0].mxu0
      %v3239 = vadd.f32 0.0, %v3238
      %v3240 = vpop.f32.mrb[0].mxu0
      %v3241 = vadd.f32 0.0, %v3240
      %3242 = vdwg.mxu0
      %v3243 = vadd.f32 %v3107, %v3221
      %v3244 = vadd.f32 %v3108, %v3223
      %v3245 = vadd.f32 %v3109, %v3227
      %v3246 = vadd.f32 %v3110, %v3229
      %v3247 = vadd.f32 %v3111, %v3233
      %v3248 = vadd.f32 %v3112, %v3235
      %v3249 = vadd.f32 %v3113, %v3239
      %v3250 = vadd.f32 %v3114, %v3241
      %v3251 = vadd.f32 %v3243, %v1270
      %v3252 = vadd.f32 %v3244, %v1274
      %v3253 = vadd.f32 %v3245, %v1270
      %v3254 = vadd.f32 %v3246, %v1274
      %v3255 = vadd.f32 %v3247, %v1270
      %v3256 = vadd.f32 %v3248, %v1274
      %v3257 = vadd.f32 %v3249, %v1270
      %v3258 = vadd.f32 %v3250, %v1274
      %v3259 = vmax.f32 %v3251, 0.0
      %v3260 = vmax.f32 %v3252, 0.0
      %v3261 = vmax.f32 %v3253, 0.0
      %v3262 = vmax.f32 %v3254, 0.0
      %v3263 = vmax.f32 %v3255, 0.0
      %v3264 = vmax.f32 %v3256, 0.0
      %v3265 = vmax.f32 %v3257, 0.0
      %v3266 = vmax.f32 %v3258, 0.0
      %v3268 = vsel %vm1153, %v3265, 0
      %v3271 = vsel %vm1153, %v3266, 0
      %3273 = vmatprep.subr.mxu0 %v3260
      %3274 = vmatpush1.msra.mxu0 %v3259
      %3275 = vmatprep.subr.mxu0 %v3262
      %3276 = vmatpush1.msra.mxu0 %v3261
      %3277 = vmatprep.subr.mxu0 %v3264
      %3278 = vmatpush1.msra.mxu0 %v3263
      %3279 = vmatprep.subr.mxu0 %v3271
      %3280 = vmatpush1.msra.mxu0 %v3268
      %3281 = vmatprep.subr.mxu0 0.0
      %3282 = vmatpush1.msra.mxu0 0.0
      %3283 = vmatprep.subr.mxu0 0.0
      %3284 = vmatpush1.msra.mxu0 0.0
      %3285 = vmatprep.subr.mxu0 0.0
      %3286 = vmatpush1.msra.mxu0 0.0
      %3287 = vmatprep.subr.mxu0 0.0
      %3288 = vmatpush1.msra.mxu0 0.0
      %3289 = vmatprep.subr.mxu0 0.0
      %3290 = vmatpush1.msra.mxu0 0.0
      %3291 = vmatprep.subr.mxu0 0.0
      %3292 = vmatpush1.msra.mxu0 0.0
      %3293 = vmatprep.subr.mxu0 0.0
      %3294 = vmatpush1.msra.mxu0 0.0
      %3295 = vmatprep.subr.mxu0 0.0
      %3296 = vmatpush1.msra.mxu0 0.0
      %3297 = vmatprep.subr.mxu0 0.0
      %3298 = vmatpush1.msra.mxu0 0.0
      %3299 = vmatprep.subr.mxu0 0.0
      %3300 = vmatpush1.msra.mxu0 0.0
      %3301 = vmatprep.subr.mxu0 0.0
      %3302 = vmatpush1.msra.mxu0 0.0
      %3303 = vmatprep.subr.mxu0 0.0
      %3304 = vmatpush1.msra.mxu0 0.0
      %3305 = vmatprep.subr.mxu0 0.0
      %3306 = vmatpush1.msra.mxu0 0.0
      %3307 = vmatprep.subr.mxu0 0.0
      %3308 = vmatpush1.msra.mxu0 0.0
      %3309 = vmatprep.subr.mxu0 0.0
      %3310 = vmatpush1.msra.mxu0 0.0
      %3311 = vmatprep.subr.mxu0 0.0
      %3312 = vmatpush1.msra.mxu0 0.0
      %3313 = vmatprep.subr.mxu0 0.0
      %3314 = vmatpush1.msra.mxu0 0.0
      %3315 = vmatprep.subr.mxu0 0.0
      %3316 = vmatpush1.msra.mxu0 0.0
      %3317 = vmatprep.subr.mxu0 0.0
      %3318 = vmatpush1.msra.mxu0 0.0
      %3319 = vmatprep.subr.mxu0 0.0
      %3320 = vmatpush1.msra.mxu0 0.0
      %3321 = vmatprep.subr.mxu0 0.0
      %3322 = vmatpush1.msra.mxu0 0.0
      %3323 = vmatprep.subr.mxu0 0.0
      %3324 = vmatpush1.msra.mxu0 0.0
      %3325 = vmatprep.subr.mxu0 0.0
      %3326 = vmatpush1.msra.mxu0 0.0
      %3327 = vmatprep.subr.mxu0 0.0
      %3328 = vmatpush1.msra.mxu0 0.0
      %3329 = vmatprep.subr.mxu0 0.0
      %3330 = vmatpush1.msra.mxu0 0.0
      %3331 = vmatprep.subr.mxu0 0.0
      %3332 = vmatpush1.msra.mxu0 0.0
      %3333 = vmatprep.subr.mxu0 0.0
      %3334 = vmatpush1.msra.mxu0 0.0
      %3335 = vmatprep.subr.mxu0 0.0
      %3336 = vmatpush1.msra.mxu0 0.0
      %3337 = vmatprep.mubr.f32.mxu0 0.0
      %3338 = vmatmul.mubr.f32.gmra.mrb[0].mxu0 %v1295
      %v3339 = vpop.f32.mrb[0].mxu0
      %v3340 = vadd.f32 0.0, %v3339
      %v3341 = vpop.f32.mrb[0].mxu0
      %v3342 = vadd.f32 0.0, %v3341
      %3343 = vmatprep.mubr.f32.mxu0 0.0
      %3344 = vmatmul.mubr.f32.gmra.mrb[0].mxu0 %v1298
      %v3345 = vpop.f32.mrb[0].mxu0
      %v3346 = vadd.f32 0.0, %v3345
      %v3347 = vpop.f32.mrb[0].mxu0
      %v3348 = vadd.f32 0.0, %v3347
      %3349 = vdwg.mxu0
      %3350 = vmatprep.subr.mxu0 %v3260
      %3351 = vmatpush1.msra.mxu0 %v3259
      %3352 = vmatprep.subr.mxu0 %v3262
      %3353 = vmatpush1.msra.mxu0 %v3261
      %3354 = vmatprep.subr.mxu0 %v3264
      %3355 = vmatpush1.msra.mxu0 %v3263
      %3356 = vmatprep.subr.mxu0 %v3271
      %3357 = vmatpush1.msra.mxu0 %v3268
      %3358 = vmatprep.subr.mxu0 0.0
      %3359 = vmatpush1.msra.mxu0 0.0
      %3360 = vmatprep.subr.mxu0 0.0
      %3361 = vmatpush1.msra.mxu0 0.0
      %3362 = vmatprep.subr.mxu0 0.0
      %3363 = vmatpush1.msra.mxu0 0.0
      %3364 = vmatprep.subr.mxu0 0.0
      %3365 = vmatpush1.msra.mxu0 0.0
      %3366 = vmatprep.subr.mxu0 0.0
      %3367 = vmatpush1.msra.mxu0 0.0
      %3368 = vmatprep.subr.mxu0 0.0
      %3369 = vmatpush1.msra.mxu0 0.0
      %3370 = vmatprep.subr.mxu0 0.0
      %3371 = vmatpush1.msra.mxu0 0.0
      %3372 = vmatprep.subr.mxu0 0.0
      %3373 = vmatpush1.msra.mxu0 0.0
      %3374 = vmatprep.subr.mxu0 0.0
      %3375 = vmatpush1.msra.mxu0 0.0
      %3376 = vmatprep.subr.mxu0 0.0
      %3377 = vmatpush1.msra.mxu0 0.0
      %3378 = vmatprep.subr.mxu0 0.0
      %3379 = vmatpush1.msra.mxu0 0.0
      %3380 = vmatprep.subr.mxu0 0.0
      %3381 = vmatpush1.msra.mxu0 0.0
      %3382 = vmatprep.subr.mxu0 0.0
      %3383 = vmatpush1.msra.mxu0 0.0
      %3384 = vmatprep.subr.mxu0 0.0
      %3385 = vmatpush1.msra.mxu0 0.0
      %3386 = vmatprep.subr.mxu0 0.0
      %3387 = vmatpush1.msra.mxu0 0.0
      %3388 = vmatprep.subr.mxu0 0.0
      %3389 = vmatpush1.msra.mxu0 0.0
      %3390 = vmatprep.subr.mxu0 0.0
      %3391 = vmatpush1.msra.mxu0 0.0
      %3392 = vmatprep.subr.mxu0 0.0
      %3393 = vmatpush1.msra.mxu0 0.0
      %3394 = vmatprep.subr.mxu0 0.0
      %3395 = vmatpush1.msra.mxu0 0.0
      %3396 = vmatprep.subr.mxu0 0.0
      %3397 = vmatpush1.msra.mxu0 0.0
      %3398 = vmatprep.subr.mxu0 0.0
      %3399 = vmatpush1.msra.mxu0 0.0
      %3400 = vmatprep.subr.mxu0 0.0
      %3401 = vmatpush1.msra.mxu0 0.0
      %3402 = vmatprep.subr.mxu0 0.0
      %3403 = vmatpush1.msra.mxu0 0.0
      %3404 = vmatprep.subr.mxu0 0.0
      %3405 = vmatpush1.msra.mxu0 0.0
      %3406 = vmatprep.subr.mxu0 0.0
      %3407 = vmatpush1.msra.mxu0 0.0
      %3408 = vmatprep.subr.mxu0 0.0
      %3409 = vmatpush1.msra.mxu0 0.0
      %3410 = vmatprep.subr.mxu0 0.0
      %3411 = vmatpush1.msra.mxu0 0.0
      %3412 = vmatprep.subr.mxu0 0.0
      %3413 = vmatpush1.msra.mxu0 0.0
      %3414 = vmatprep.mubr.f32.mxu0 0.0
      %3415 = vmatmul.mubr.f32.gmra.mrb[0].mxu0 %v1384
      %v3416 = vpop.f32.mrb[0].mxu0
      %v3417 = vadd.f32 0.0, %v3416
      %v3418 = vpop.f32.mrb[0].mxu0
      %v3419 = vadd.f32 0.0, %v3418
      %3420 = vmatprep.mubr.f32.mxu0 0.0
      %3421 = vmatmul.mubr.f32.gmra.mrb[0].mxu0 %v1387
      %v3422 = vpop.f32.mrb[0].mxu0
      %v3423 = vadd.f32 0.0, %v3422
      %v3424 = vpop.f32.mrb[0].mxu0
      %v3425 = vadd.f32 0.0, %v3424
      %3426 = vdwg.mxu0
      %v3427 = vmax.f32 %v3340, %v3417
      %v3428 = vmax.f32 %v3342, %v3419
      %v3429 = vmax.f32 %v3346, %v3423
      %v3430 = vmax.f32 %v3348, %v3425
      %v3432 = vsel %vm1470, %v3428, 0
      %v3435 = vsel %vm1470, %v3430, 0
      %3437 = vmatprep.subr.mxu0 0.0
      %3438 = vmatpush1.msra.mxu0 %v505
      %3439 = vmatprep.subr.mxu0 0.0
      %3440 = vmatpush1.msra.mxu0 %v506
      %3441 = vmatprep.subr.mxu0 0.0
      %3442 = vmatpush1.msra.mxu0 %v507
      %3443 = vmatprep.subr.mxu0 0.0
      %3444 = vmatpush1.msra.mxu0 %v508
      %3445 = vmatprep.subr.mxu0 0.0
      %3446 = vmatpush1.msra.mxu0 %v509
      %3447 = vmatprep.subr.mxu0 0.0
      %3448 = vmatpush1.msra.mxu0 %v510
      %3449 = vmatprep.subr.mxu0 0.0
      %3450 = vmatpush1.msra.mxu0 %v511
      %3451 = vmatprep.subr.mxu0 0.0
      %3452 = vmatpush1.msra.mxu0 %v512
      %3453 = vmatprep.subr.mxu0 0.0
      %3454 = vmatpush1.msra.mxu0 %v513
      %3455 = vmatprep.subr.mxu0 0.0
      %3456 = vmatpush1.msra.mxu0 %v514
      %3457 = vmatprep.subr.mxu0 0.0
      %3458 = vmatpush1.msra.mxu0 %v515
      %3459 = vmatprep.subr.mxu0 0.0
      %3460 = vmatpush1.msra.mxu0 %v516
      %3461 = vmatprep.subr.mxu0 0.0
      %3462 = vmatpush1.msra.mxu0 %v517
      %3463 = vmatprep.subr.mxu0 0.0
      %3464 = vmatpush1.msra.mxu0 %v518
      %3465 = vmatprep.subr.mxu0 0.0
      %3466 = vmatpush1.msra.mxu0 %v519
      %3467 = vmatprep.subr.mxu0 0.0
      %3468 = vmatpush1.msra.mxu0 %v520
      %3469 = vmatprep.subr.mxu0 0.0
      %3470 = vmatpush1.msra.mxu0 %v521
      %3471 = vmatprep.subr.mxu0 0.0
      %3472 = vmatpush1.msra.mxu0 %v522
      %3473 = vmatprep.subr.mxu0 0.0
      %3474 = vmatpush1.msra.mxu0 %v523
      %3475 = vmatprep.subr.mxu0 0.0
      %3476 = vmatpush1.msra.mxu0 %v524
      %3477 = vmatprep.subr.mxu0 0.0
      %3478 = vmatpush1.msra.mxu0 %v525
      %3479 = vmatprep.subr.mxu0 0.0
      %3480 = vmatpush1.msra.mxu0 0.0
      %3481 = vmatprep.subr.mxu0 0.0
      %3482 = vmatpush1.msra.mxu0 0.0
      %3483 = vmatprep.subr.mxu0 0.0
      %3484 = vmatpush1.msra.mxu0 0.0
      %3485 = vmatprep.subr.mxu0 0.0
      %3486 = vmatpush1.msra.mxu0 0.0
      %3487 = vmatprep.subr.mxu0 0.0
      %3488 = vmatpush1.msra.mxu0 0.0
      %3489 = vmatprep.subr.mxu0 0.0
      %3490 = vmatpush1.msra.mxu0 0.0
      %3491 = vmatprep.subr.mxu0 0.0
      %3492 = vmatpush1.msra.mxu0 0.0
      %3493 = vmatprep.subr.mxu0 0.0
      %3494 = vmatpush1.msra.mxu0 0.0
      %3495 = vmatprep.subr.mxu0 0.0
      %3496 = vmatpush1.msra.mxu0 0.0
      %3497 = vmatprep.subr.mxu0 0.0
      %3498 = vmatpush1.msra.mxu0 0.0
      %3499 = vmatprep.subr.mxu0 0.0
      %3500 = vmatpush1.msra.mxu0 0.0
      %3501 = vmatprep.mubr.f32.mxu0 %v3432
      %3502 = vmatmul.mubr.f32.gmra.mrb[0].mxu0 %v3427
      %v3503 = vpop.f32.mrb[0].mxu0
      %v3504 = vadd.f32 0.0, %v3503
      %v3505 = vpop.f32.mrb[0].mxu0
      %3506 = vmatprep.mubr.f32.mxu0 %v3435
      %3507 = vmatmul.mubr.f32.gmra.mrb[0].mxu0 %v3429
      %v3508 = vpop.f32.mrb[0].mxu0
      %v3509 = vadd.f32 0.0, %v3508
      %v3510 = vpop.f32.mrb[0].mxu0
      %3511 = vdwg.mxu0
      %3512 = vmatprep.subr.mxu0 0.0
      %3513 = vmatpush1.msra.mxu0 %v527
      %3514 = vmatprep.subr.mxu0 0.0
      %3515 = vmatpush1.msra.mxu0 %v528
      %3516 = vmatprep.subr.mxu0 0.0
      %3517 = vmatpush1.msra.mxu0 %v529
      %3518 = vmatprep.subr.mxu0 0.0
      %3519 = vmatpush1.msra.mxu0 %v530
      %3520 = vmatprep.subr.mxu0 0.0
      %3521 = vmatpush1.msra.mxu0 %v531
      %3522 = vmatprep.subr.mxu0 0.0
      %3523 = vmatpush1.msra.mxu0 %v532
      %3524 = vmatprep.subr.mxu0 0.0
      %3525 = vmatpush1.msra.mxu0 %v533
      %3526 = vmatprep.subr.mxu0 0.0
      %3527 = vmatpush1.msra.mxu0 %v534
      %3528 = vmatprep.subr.mxu0 0.0
      %3529 = vmatpush1.msra.mxu0 %v535
      %3530 = vmatprep.subr.mxu0 0.0
      %3531 = vmatpush1.msra.mxu0 %v536
      %3532 = vmatprep.subr.mxu0 0.0
      %3533 = vmatpush1.msra.mxu0 %v537
      %3534 = vmatprep.subr.mxu0 0.0
      %3535 = vmatpush1.msra.mxu0 %v538
      %3536 = vmatprep.subr.mxu0 0.0
      %3537 = vmatpush1.msra.mxu0 %v539
      %3538 = vmatprep.subr.mxu0 0.0
      %3539 = vmatpush1.msra.mxu0 %v540
      %3540 = vmatprep.subr.mxu0 0.0
      %3541 = vmatpush1.msra.mxu0 %v541
      %3542 = vmatprep.subr.mxu0 0.0
      %3543 = vmatpush1.msra.mxu0 %v542
      %3544 = vmatprep.subr.mxu0 0.0
      %3545 = vmatpush1.msra.mxu0 %v543
      %3546 = vmatprep.subr.mxu0 0.0
      %3547 = vmatpush1.msra.mxu0 %v544
      %3548 = vmatprep.subr.mxu0 0.0
      %3549 = vmatpush1.msra.mxu0 %v545
      %3550 = vmatprep.subr.mxu0 0.0
      %3551 = vmatpush1.msra.mxu0 %v546
      %3552 = vmatprep.subr.mxu0 0.0
      %3553 = vmatpush1.msra.mxu0 %v547
      %3554 = vmatprep.subr.mxu0 0.0
      %3555 = vmatpush1.msra.mxu0 0.0
      %3556 = vmatprep.subr.mxu0 0.0
      %3557 = vmatpush1.msra.mxu0 0.0
      %3558 = vmatprep.subr.mxu0 0.0
      %3559 = vmatpush1.msra.mxu0 0.0
      %3560 = vmatprep.subr.mxu0 0.0
      %3561 = vmatpush1.msra.mxu0 0.0
      %3562 = vmatprep.subr.mxu0 0.0
      %3563 = vmatpush1.msra.mxu0 0.0
      %3564 = vmatprep.subr.mxu0 0.0
      %3565 = vmatpush1.msra.mxu0 0.0
      %3566 = vmatprep.subr.mxu0 0.0
      %3567 = vmatpush1.msra.mxu0 0.0
      %3568 = vmatprep.subr.mxu0 0.0
      %3569 = vmatpush1.msra.mxu0 0.0
      %3570 = vmatprep.subr.mxu0 0.0
      %3571 = vmatpush1.msra.mxu0 0.0
      %3572 = vmatprep.subr.mxu0 0.0
      %3573 = vmatpush1.msra.mxu0 0.0
      %3574 = vmatprep.subr.mxu0 0.0
      %3575 = vmatpush1.msra.mxu0 0.0
      %3576 = vmatprep.mubr.f32.mxu0 %v3432
      %3577 = vmatmul.mubr.f32.gmra.mrb[0].mxu0 %v3427
      %v3578 = vpop.f32.mrb[0].mxu0
      %v3579 = vadd.f32 0.0, %v3578
      %v3580 = vpop.f32.mrb[0].mxu0
      %3581 = vmatprep.mubr.f32.mxu0 %v3435
      %3582 = vmatmul.mubr.f32.gmra.mrb[0].mxu0 %v3429
      %v3583 = vpop.f32.mrb[0].mxu0
      %v3584 = vadd.f32 0.0, %v3583
      %v3585 = vpop.f32.mrb[0].mxu0
      %3586 = vdwg.mxu0
      %v3587 = vmax.f32 %v3504, %v3579
      %v3588 = vmax.f32 %v3509, %v3584
      %v3589 = vld [vmem:[%s3] sm:$0xff]
      %v3590 = vld [vmem:[%s3 + $0x8] sm:$0xff]
      %v3591 = vld [vmem:[%s3 + $0x10] sm:$0xff]
      %v3592 = vld [vmem:[%s3 + $0x18] sm:$0xff]
      %v3593 = vld [vmem:[%s3 + $0x20] sm:$0xff]
      %v3594 = vld [vmem:[%s3 + $0x28] sm:$0xff]
      %v3595 = vld [vmem:[%s3 + $0x30] sm:$0xff]
      %v3596 = vld [vmem:[%s3 + $0x38] sm:$0xff]
      %v3597 = vld [vmem:[%s3 + $0x40] sm:$0xff]
      %v3598 = vld [vmem:[%s3 + $0x48] sm:$0xff]
      %v3599 = vld [vmem:[%s3 + $0x50] sm:$0xff]
      %v3600 = vld [vmem:[%s3 + $0x58] sm:$0xff]
      %v3601 = vld [vmem:[%s3 + $0x60] sm:$0xff]
      %v3602 = vld [vmem:[%s3 + $0x68] sm:$0xff]
      %v3603 = vld [vmem:[%s3 + $0x70] sm:$0xff]
      %v3604 = vld [vmem:[%s3 + $0x78] sm:$0xff]
      %v3605 = vld [vmem:[%s3 + $0x80] sm:$0xff]
      %v3606 = vld [vmem:[%s3 + $0x88] sm:$0xff]
      %v3607 = vld [vmem:[%s3 + $0x90] sm:$0xff]
      %v3608 = vld [vmem:[%s3 + $0x98] sm:$0xff]
      %v3609 = vld [vmem:[%s3 + $0xa0] sm:$0xf]
      %v3610 = vld [vmem:[%s3 + $0xa8] sm:$0xf]
      %v3611 = vld [vmem:[%s1651] sm:$0xff]
      %v3612 = vld [vmem:[%s1651 + $0x8] sm:$0xff]
      %v3613 = vld [vmem:[%s1651 + $0x10] sm:$0xff]
      %v3614 = vld [vmem:[%s1651 + $0x18] sm:$0xff]
      %v3615 = vld [vmem:[%s1651 + $0x20] sm:$0xff]
      %v3616 = vld [vmem:[%s1651 + $0x28] sm:$0xff]
      %v3617 = vld [vmem:[%s1651 + $0x30] sm:$0xff]
      %v3618 = vld [vmem:[%s1651 + $0x38] sm:$0xff]
      %v3619 = vld [vmem:[%s1651 + $0x40] sm:$0xff]
      %v3620 = vld [vmem:[%s1651 + $0x48] sm:$0xff]
      %v3621 = vld [vmem:[%s1651 + $0x50] sm:$0xff]
      %v3622 = vld [vmem:[%s1651 + $0x58] sm:$0xff]
      %v3623 = vld [vmem:[%s1651 + $0x60] sm:$0xff]
      %v3624 = vld [vmem:[%s1651 + $0x68] sm:$0xff]
      %v3625 = vld [vmem:[%s1651 + $0x70] sm:$0xff]
      %v3626 = vld [vmem:[%s1651 + $0x78] sm:$0xff]
      %v3627 = vld [vmem:[%s1651 + $0x80] sm:$0xff]
      %v3628 = vld [vmem:[%s1651 + $0x88] sm:$0xff]
      %v3629 = vld [vmem:[%s1651 + $0x90] sm:$0xff]
      %v3630 = vld [vmem:[%s1651 + $0x98] sm:$0xff]
      %v3631 = vld [vmem:[%s1651 + $0xa0] sm:$0xf]
      %v3632 = vld [vmem:[%s1651 + $0xa8] sm:$0xf]
      %v3635 = vrot.slane %v3587, 1
      %v3636 = vrot.slane %v3588, 1
      %v3637 = vsel %vm649, %v3635, %v3636
      %v3638 = vsel %vm1679, %v3637, 0
      %v3640 = vsel %vm1679, %v3636, 0
      %v3643 = vsel %vm1153, %v3631, 0
      %v3646 = vsel %vm1153, %v3632, 0
      %3648 = vmatprep.subr.mxu0 %v3612
      %3649 = vmatpush1.msra.mxu0 %v3611
      %3650 = vmatprep.subr.mxu0 %v3614
      %3651 = vmatpush1.msra.mxu0 %v3613
      %3652 = vmatprep.subr.mxu0 %v3616
      %3653 = vmatpush1.msra.mxu0 %v3615
      %3654 = vmatprep.subr.mxu0 %v3618
      %3655 = vmatpush1.msra.mxu0 %v3617
      %3656 = vmatprep.subr.mxu0 %v3620
      %3657 = vmatpush1.msra.mxu0 %v3619
      %3658 = vmatprep.subr.mxu0 %v3622
      %3659 = vmatpush1.msra.mxu0 %v3621
      %3660 = vmatprep.subr.mxu0 %v3624
      %3661 = vmatpush1.msra.mxu0 %v3623
      %3662 = vmatprep.subr.mxu0 %v3626
      %3663 = vmatpush1.msra.mxu0 %v3625
      %3664 = vmatprep.subr.mxu0 %v3628
      %3665 = vmatpush1.msra.mxu0 %v3627
      %3666 = vmatprep.subr.mxu0 %v3630
      %3667 = vmatpush1.msra.mxu0 %v3629
      %3668 = vmatprep.subr.mxu0 %v3646
      %3669 = vmatpush1.msra.mxu0 %v3643
      %3670 = vmatprep.subr.mxu0 0.0
      %3671 = vmatpush1.msra.mxu0 0.0
      %3672 = vmatprep.subr.mxu0 0.0
      %3673 = vmatpush1.msra.mxu0 0.0
      %3674 = vmatprep.subr.mxu0 0.0
      %3675 = vmatpush1.msra.mxu0 0.0
      %3676 = vmatprep.subr.mxu0 0.0
      %3677 = vmatpush1.msra.mxu0 0.0
      %3678 = vmatprep.subr.mxu0 0.0
      %3679 = vmatpush1.msra.mxu0 0.0
      %3680 = vmatprep.subr.mxu0 0.0
      %3681 = vmatpush1.msra.mxu0 0.0
      %3682 = vmatprep.subr.mxu0 0.0
      %3683 = vmatpush1.msra.mxu0 0.0
      %3684 = vmatprep.subr.mxu0 0.0
      %3685 = vmatpush1.msra.mxu0 0.0
      %3686 = vmatprep.subr.mxu0 0.0
      %3687 = vmatpush1.msra.mxu0 0.0
      %3688 = vmatprep.subr.mxu0 0.0
      %3689 = vmatpush1.msra.mxu0 0.0
      %3690 = vmatprep.subr.mxu0 0.0
      %3691 = vmatpush1.msra.mxu0 0.0
      %3692 = vmatprep.subr.mxu0 0.0
      %3693 = vmatpush1.msra.mxu0 0.0
      %3694 = vmatprep.subr.mxu0 0.0
      %3695 = vmatpush1.msra.mxu0 0.0
      %3696 = vmatprep.subr.mxu0 0.0
      %3697 = vmatpush1.msra.mxu0 0.0
      %3698 = vmatprep.subr.mxu0 0.0
      %3699 = vmatpush1.msra.mxu0 0.0
      %3700 = vmatprep.subr.mxu0 0.0
      %3701 = vmatpush1.msra.mxu0 0.0
      %3702 = vmatprep.subr.mxu0 0.0
      %3703 = vmatpush1.msra.mxu0 0.0
      %3704 = vmatprep.subr.mxu0 0.0
      %3705 = vmatpush1.msra.mxu0 0.0
      %3706 = vmatprep.subr.mxu0 0.0
      %3707 = vmatpush1.msra.mxu0 0.0
      %3708 = vmatprep.subr.mxu0 0.0
      %3709 = vmatpush1.msra.mxu0 0.0
      %3710 = vmatprep.subr.mxu0 0.0
      %3711 = vmatpush1.msra.mxu0 0.0
      %3712 = vmatprep.mubr.f32.mxu0 0.0
      %3713 = vmatmul.mubr.f32.gmra.mrb[0].mxu0 %v3638
      %v3714 = vpop.f32.mrb[0].mxu0
      %v3715 = vadd.f32 0.0, %v3714
      %v3716 = vpop.f32.mrb[0].mxu0
      %v3717 = vadd.f32 0.0, %v3716
      %3718 = vmatprep.mubr.f32.mxu0 0.0
      %3719 = vmatmul.mubr.f32.gmra.mrb[0].mxu0 %v3640
      %v3720 = vpop.f32.mrb[0].mxu0
      %v3721 = vadd.f32 0.0, %v3720
      %v3722 = vpop.f32.mrb[0].mxu0
      %v3723 = vadd.f32 0.0, %v3722
      %3724 = vdwg.mxu0
      %v3725 = vsel %vm1679, %v3587, 0
      %v3727 = vsel %vm1679, %v3588, 0
      %v3730 = vsel %vm1153, %v3609, 0
      %v3733 = vsel %vm1153, %v3610, 0
      %3735 = vmatprep.subr.mxu0 %v3590
      %3736 = vmatpush1.msra.mxu0 %v3589
      %3737 = vmatprep.subr.mxu0 %v3592
      %3738 = vmatpush1.msra.mxu0 %v3591
      %3739 = vmatprep.subr.mxu0 %v3594
      %3740 = vmatpush1.msra.mxu0 %v3593
      %3741 = vmatprep.subr.mxu0 %v3596
      %3742 = vmatpush1.msra.mxu0 %v3595
      %3743 = vmatprep.subr.mxu0 %v3598
      %3744 = vmatpush1.msra.mxu0 %v3597
      %3745 = vmatprep.subr.mxu0 %v3600
      %3746 = vmatpush1.msra.mxu0 %v3599
      %3747 = vmatprep.subr.mxu0 %v3602
      %3748 = vmatpush1.msra.mxu0 %v3601
      %3749 = vmatprep.subr.mxu0 %v3604
      %3750 = vmatpush1.msra.mxu0 %v3603
      %3751 = vmatprep.subr.mxu0 %v3606
      %3752 = vmatpush1.msra.mxu0 %v3605
      %3753 = vmatprep.subr.mxu0 %v3608
      %3754 = vmatpush1.msra.mxu0 %v3607
      %3755 = vmatprep.subr.mxu0 %v3733
      %3756 = vmatpush1.msra.mxu0 %v3730
      %3757 = vmatprep.subr.mxu0 0.0
      %3758 = vmatpush1.msra.mxu0 0.0
      %3759 = vmatprep.subr.mxu0 0.0
      %3760 = vmatpush1.msra.mxu0 0.0
      %3761 = vmatprep.subr.mxu0 0.0
      %3762 = vmatpush1.msra.mxu0 0.0
      %3763 = vmatprep.subr.mxu0 0.0
      %3764 = vmatpush1.msra.mxu0 0.0
      %3765 = vmatprep.subr.mxu0 0.0
      %3766 = vmatpush1.msra.mxu0 0.0
      %3767 = vmatprep.subr.mxu0 0.0
      %3768 = vmatpush1.msra.mxu0 0.0
      %3769 = vmatprep.subr.mxu0 0.0
      %3770 = vmatpush1.msra.mxu0 0.0
      %3771 = vmatprep.subr.mxu0 0.0
      %3772 = vmatpush1.msra.mxu0 0.0
      %3773 = vmatprep.subr.mxu0 0.0
      %3774 = vmatpush1.msra.mxu0 0.0
      %3775 = vmatprep.subr.mxu0 0.0
      %3776 = vmatpush1.msra.mxu0 0.0
      %3777 = vmatprep.subr.mxu0 0.0
      %3778 = vmatpush1.msra.mxu0 0.0
      %3779 = vmatprep.subr.mxu0 0.0
      %3780 = vmatpush1.msra.mxu0 0.0
      %3781 = vmatprep.subr.mxu0 0.0
      %3782 = vmatpush1.msra.mxu0 0.0
      %3783 = vmatprep.subr.mxu0 0.0
      %3784 = vmatpush1.msra.mxu0 0.0
      %3785 = vmatprep.subr.mxu0 0.0
      %3786 = vmatpush1.msra.mxu0 0.0
      %3787 = vmatprep.subr.mxu0 0.0
      %3788 = vmatpush1.msra.mxu0 0.0
      %3789 = vmatprep.subr.mxu0 0.0
      %3790 = vmatpush1.msra.mxu0 0.0
      %3791 = vmatprep.subr.mxu0 0.0
      %3792 = vmatpush1.msra.mxu0 0.0
      %3793 = vmatprep.subr.mxu0 0.0
      %3794 = vmatpush1.msra.mxu0 0.0
      %3795 = vmatprep.subr.mxu0 0.0
      %3796 = vmatpush1.msra.mxu0 0.0
      %3797 = vmatprep.subr.mxu0 0.0
      %3798 = vmatpush1.msra.mxu0 0.0
      %3799 = vmatprep.mubr.f32.mxu0 0.0
      %3800 = vmatmul.mubr.f32.gmra.mrb[0].mxu0 %v3725
      %v3801 = vpop.f32.mrb[0].mxu0
      %v3802 = vadd.f32 %v3715, %v3801
      %v3803 = vpop.f32.mrb[0].mxu0
      %v3804 = vadd.f32 %v3717, %v3803
      %3805 = vmatprep.mubr.f32.mxu0 0.0
      %3806 = vmatmul.mubr.f32.gmra.mrb[0].mxu0 %v3727
      %v3807 = vpop.f32.mrb[0].mxu0
      %v3808 = vadd.f32 %v3721, %v3807
      %v3809 = vpop.f32.mrb[0].mxu0
      %v3810 = vadd.f32 %v3723, %v3809
      %3811 = vdwg.mxu0
      %v3812 = vld [vmem:[%s1854] sm:$0xff]
      %v3813 = vld [vmem:[%s1854 + $0x8] sm:$0xff]
      %v3814 = vld [vmem:[%s1854 + $0x10] sm:$0xff]
      %v3815 = vld [vmem:[%s1854 + $0x18] sm:$0xff]
      %v3816 = vld [vmem:[%s1854 + $0x20] sm:$0xff]
      %v3817 = vld [vmem:[%s1854 + $0x28] sm:$0xff]
      %v3818 = vld [vmem:[%s1854 + $0x30] sm:$0xff]
      %v3819 = vld [vmem:[%s1854 + $0x38] sm:$0xff]
      %v3820 = vld [vmem:[%s1854 + $0x40] sm:$0xff]
      %v3821 = vld [vmem:[%s1854 + $0x48] sm:$0xff]
      %v3822 = vld [vmem:[%s1854 + $0x50] sm:$0xff]
      %v3823 = vld [vmem:[%s1854 + $0x58] sm:$0xff]
      %v3824 = vld [vmem:[%s1854 + $0x60] sm:$0xff]
      %v3825 = vld [vmem:[%s1854 + $0x68] sm:$0xff]
      %v3826 = vld [vmem:[%s1854 + $0x70] sm:$0xff]
      %v3827 = vld [vmem:[%s1854 + $0x78] sm:$0xff]
      %v3828 = vld [vmem:[%s1854 + $0x80] sm:$0xff]
      %v3829 = vld [vmem:[%s1854 + $0x88] sm:$0xff]
      %v3830 = vld [vmem:[%s1854 + $0x90] sm:$0xff]
      %v3831 = vld [vmem:[%s1854 + $0x98] sm:$0xff]
      %v3832 = vld [vmem:[%s1854 + $0xa0] sm:$0xf]
      %v3833 = vld [vmem:[%s1854 + $0xa8] sm:$0xf]
      %v3834 = vrot.slane %v3587, 2
      %v3835 = vrot.slane %v3588, 2
      %v3836 = vsel %vm877, %v3834, %v3835
      %v3837 = vsel %vm1679, %v3836, 0
      %v3839 = vsel %vm1679, %v3835, 0
      %v3842 = vsel %vm1153, %v3832, 0
      %v3845 = vsel %vm1153, %v3833, 0
      %3847 = vmatprep.subr.mxu0 %v3813
      %3848 = vmatpush1.msra.mxu0 %v3812
      %3849 = vmatprep.subr.mxu0 %v3815
      %3850 = vmatpush1.msra.mxu0 %v3814
      %3851 = vmatprep.subr.mxu0 %v3817
      %3852 = vmatpush1.msra.mxu0 %v3816
      %3853 = vmatprep.subr.mxu0 %v3819
      %3854 = vmatpush1.msra.mxu0 %v3818
      %3855 = vmatprep.subr.mxu0 %v3821
      %3856 = vmatpush1.msra.mxu0 %v3820
      %3857 = vmatprep.subr.mxu0 %v3823
      %3858 = vmatpush1.msra.mxu0 %v3822
      %3859 = vmatprep.subr.mxu0 %v3825
      %3860 = vmatpush1.msra.mxu0 %v3824
      %3861 = vmatprep.subr.mxu0 %v3827
      %3862 = vmatpush1.msra.mxu0 %v3826
      %3863 = vmatprep.subr.mxu0 %v3829
      %3864 = vmatpush1.msra.mxu0 %v3828
      %3865 = vmatprep.subr.mxu0 %v3831
      %3866 = vmatpush1.msra.mxu0 %v3830
      %3867 = vmatprep.subr.mxu0 %v3845
      %3868 = vmatpush1.msra.mxu0 %v3842
      %3869 = vmatprep.subr.mxu0 0.0
      %3870 = vmatpush1.msra.mxu0 0.0
      %3871 = vmatprep.subr.mxu0 0.0
      %3872 = vmatpush1.msra.mxu0 0.0
      %3873 = vmatprep.subr.mxu0 0.0
      %3874 = vmatpush1.msra.mxu0 0.0
      %3875 = vmatprep.subr.mxu0 0.0
      %3876 = vmatpush1.msra.mxu0 0.0
      %3877 = vmatprep.subr.mxu0 0.0
      %3878 = vmatpush1.msra.mxu0 0.0
      %3879 = vmatprep.subr.mxu0 0.0
      %3880 = vmatpush1.msra.mxu0 0.0
      %3881 = vmatprep.subr.mxu0 0.0
      %3882 = vmatpush1.msra.mxu0 0.0
      %3883 = vmatprep.subr.mxu0 0.0
      %3884 = vmatpush1.msra.mxu0 0.0
      %3885 = vmatprep.subr.mxu0 0.0
      %3886 = vmatpush1.msra.mxu0 0.0
      %3887 = vmatprep.subr.mxu0 0.0
      %3888 = vmatpush1.msra.mxu0 0.0
      %3889 = vmatprep.subr.mxu0 0.0
      %3890 = vmatpush1.msra.mxu0 0.0
      %3891 = vmatprep.subr.mxu0 0.0
      %3892 = vmatpush1.msra.mxu0 0.0
      %3893 = vmatprep.subr.mxu0 0.0
      %3894 = vmatpush1.msra.mxu0 0.0
      %3895 = vmatprep.subr.mxu0 0.0
      %3896 = vmatpush1.msra.mxu0 0.0
      %3897 = vmatprep.subr.mxu0 0.0
      %3898 = vmatpush1.msra.mxu0 0.0
      %3899 = vmatprep.subr.mxu0 0.0
      %3900 = vmatpush1.msra.mxu0 0.0
      %3901 = vmatprep.subr.mxu0 0.0
      %3902 = vmatpush1.msra.mxu0 0.0
      %3903 = vmatprep.subr.mxu0 0.0
      %3904 = vmatpush1.msra.mxu0 0.0
      %3905 = vmatprep.subr.mxu0 0.0
      %3906 = vmatpush1.msra.mxu0 0.0
      %3907 = vmatprep.subr.mxu0 0.0
      %3908 = vmatpush1.msra.mxu0 0.0
      %3909 = vmatprep.subr.mxu0 0.0
      %3910 = vmatpush1.msra.mxu0 0.0
      %3911 = vmatprep.mubr.f32.mxu0 0.0
      %3912 = vmatmul.mubr.f32.gmra.mrb[0].mxu0 %v3837
      %v3913 = vpop.f32.mrb[0].mxu0
      %v3914 = vadd.f32 0.0, %v3913
      %v3915 = vpop.f32.mrb[0].mxu0
      %v3916 = vadd.f32 0.0, %v3915
      %3917 = vmatprep.mubr.f32.mxu0 0.0
      %3918 = vmatmul.mubr.f32.gmra.mrb[0].mxu0 %v3839
      %v3919 = vpop.f32.mrb[0].mxu0
      %v3920 = vadd.f32 0.0, %v3919
      %v3921 = vpop.f32.mrb[0].mxu0
      %v3922 = vadd.f32 0.0, %v3921
      %3923 = vdwg.mxu0
      %v3924 = vadd.f32 %v3802, %v3914
      %v3925 = vadd.f32 %v3804, %v3916
      %v3926 = vadd.f32 %v3808, %v3920
      %v3927 = vadd.f32 %v3810, %v3922
      %v3928 = vld [vmem:[%s1971] sm:$0xff]
      %v3929 = vld [vmem:[%s1971 + $0x8] sm:$0xff]
      %v3930 = vld [vmem:[%s1971 + $0x10] sm:$0xff]
      %v3931 = vld [vmem:[%s1971 + $0x18] sm:$0xff]
      %v3932 = vld [vmem:[%s1971 + $0x20] sm:$0xff]
      %v3933 = vld [vmem:[%s1971 + $0x28] sm:$0xff]
      %v3934 = vld [vmem:[%s1971 + $0x30] sm:$0xff]
      %v3935 = vld [vmem:[%s1971 + $0x38] sm:$0xff]
      %v3936 = vld [vmem:[%s1971 + $0x40] sm:$0xff]
      %v3937 = vld [vmem:[%s1971 + $0x48] sm:$0xff]
      %v3938 = vld [vmem:[%s1971 + $0x50] sm:$0xff]
      %v3939 = vld [vmem:[%s1971 + $0x58] sm:$0xff]
      %v3940 = vld [vmem:[%s1971 + $0x60] sm:$0xff]
      %v3941 = vld [vmem:[%s1971 + $0x68] sm:$0xff]
      %v3942 = vld [vmem:[%s1971 + $0x70] sm:$0xff]
      %v3943 = vld [vmem:[%s1971 + $0x78] sm:$0xff]
      %v3944 = vld [vmem:[%s1971 + $0x80] sm:$0xff]
      %v3945 = vld [vmem:[%s1971 + $0x88] sm:$0xff]
      %v3946 = vld [vmem:[%s1971 + $0x90] sm:$0xff]
      %v3947 = vld [vmem:[%s1971 + $0x98] sm:$0xff]
      %v3948 = vld [vmem:[%s1971 + $0xa0] sm:$0xf]
      %v3949 = vld [vmem:[%s1971 + $0xa8] sm:$0xf]
      %v3950 = vrot.slane %v3587, 3
      %v3951 = vrot.slane %v3588, 3
      %v3952 = vsel %vm1015, %v3950, %v3951
      %v3953 = vsel %vm1679, %v3952, 0
      %v3955 = vsel %vm1679, %v3951, 0
      %v3958 = vsel %vm1153, %v3948, 0
      %v3961 = vsel %vm1153, %v3949, 0
      %3963 = vmatprep.subr.mxu0 %v3929
      %3964 = vmatpush1.msra.mxu0 %v3928
      %3965 = vmatprep.subr.mxu0 %v3931
      %3966 = vmatpush1.msra.mxu0 %v3930
      %3967 = vmatprep.subr.mxu0 %v3933
      %3968 = vmatpush1.msra.mxu0 %v3932
      %3969 = vmatprep.subr.mxu0 %v3935
      %3970 = vmatpush1.msra.mxu0 %v3934
      %3971 = vmatprep.subr.mxu0 %v3937
      %3972 = vmatpush1.msra.mxu0 %v3936
      %3973 = vmatprep.subr.mxu0 %v3939
      %3974 = vmatpush1.msra.mxu0 %v3938
      %3975 = vmatprep.subr.mxu0 %v3941
      %3976 = vmatpush1.msra.mxu0 %v3940
      %3977 = vmatprep.subr.mxu0 %v3943
      %3978 = vmatpush1.msra.mxu0 %v3942
      %3979 = vmatprep.subr.mxu0 %v3945
      %3980 = vmatpush1.msra.mxu0 %v3944
      %3981 = vmatprep.subr.mxu0 %v3947
      %3982 = vmatpush1.msra.mxu0 %v3946
      %3983 = vmatprep.subr.mxu0 %v3961
      %3984 = vmatpush1.msra.mxu0 %v3958
      %3985 = vmatprep.subr.mxu0 0.0
      %3986 = vmatpush1.msra.mxu0 0.0
      %3987 = vmatprep.subr.mxu0 0.0
      %3988 = vmatpush1.msra.mxu0 0.0
      %3989 = vmatprep.subr.mxu0 0.0
      %3990 = vmatpush1.msra.mxu0 0.0
      %3991 = vmatprep.subr.mxu0 0.0
      %3992 = vmatpush1.msra.mxu0 0.0
      %3993 = vmatprep.subr.mxu0 0.0
      %3994 = vmatpush1.msra.mxu0 0.0
      %3995 = vmatprep.subr.mxu0 0.0
      %3996 = vmatpush1.msra.mxu0 0.0
      %3997 = vmatprep.subr.mxu0 0.0
      %3998 = vmatpush1.msra.mxu0 0.0
      %3999 = vmatprep.subr.mxu0 0.0
      %4000 = vmatpush1.msra.mxu0 0.0
      %4001 = vmatprep.subr.mxu0 0.0
      %4002 = vmatpush1.msra.mxu0 0.0
      %4003 = vmatprep.subr.mxu0 0.0
      %4004 = vmatpush1.msra.mxu0 0.0
      %4005 = vmatprep.subr.mxu0 0.0
      %4006 = vmatpush1.msra.mxu0 0.0
      %4007 = vmatprep.subr.mxu0 0.0
      %4008 = vmatpush1.msra.mxu0 0.0
      %4009 = vmatprep.subr.mxu0 0.0
      %4010 = vmatpush1.msra.mxu0 0.0
      %4011 = vmatprep.subr.mxu0 0.0
      %4012 = vmatpush1.msra.mxu0 0.0
      %4013 = vmatprep.subr.mxu0 0.0
      %4014 = vmatpush1.msra.mxu0 0.0
      %4015 = vmatprep.subr.mxu0 0.0
      %4016 = vmatpush1.msra.mxu0 0.0
      %4017 = vmatprep.subr.mxu0 0.0
      %4018 = vmatpush1.msra.mxu0 0.0
      %4019 = vmatprep.subr.mxu0 0.0
      %4020 = vmatpush1.msra.mxu0 0.0
      %4021 = vmatprep.subr.mxu0 0.0
      %4022 = vmatpush1.msra.mxu0 0.0
      %4023 = vmatprep.subr.mxu0 0.0
      %4024 = vmatpush1.msra.mxu0 0.0
      %4025 = vmatprep.subr.mxu0 0.0
      %4026 = vmatpush1.msra.mxu0 0.0
      %4027 = vmatprep.mubr.f32.mxu0 0.0
      %4028 = vmatmul.mubr.f32.gmra.mrb[0].mxu0 %v3953
      %v4029 = vpop.f32.mrb[0].mxu0
      %v4030 = vadd.f32 0.0, %v4029
      %v4031 = vpop.f32.mrb[0].mxu0
      %v4032 = vadd.f32 0.0, %v4031
      %4033 = vmatprep.mubr.f32.mxu0 0.0
      %4034 = vmatmul.mubr.f32.gmra.mrb[0].mxu0 %v3955
      %v4035 = vpop.f32.mrb[0].mxu0
      %v4036 = vadd.f32 0.0, %v4035
      %v4037 = vpop.f32.mrb[0].mxu0
      %v4038 = vadd.f32 0.0, %v4037
      %4039 = vdwg.mxu0
      %v4040 = vadd.f32 %v3924, %v4030
      %v4041 = vadd.f32 %v3925, %v4032
      %v4042 = vadd.f32 %v3926, %v4036
      %v4043 = vadd.f32 %v3927, %v4038
      %v4044 = vld [vmem:[%s2088] sm:$0xff]
      %v4045 = vld [vmem:[%s2088 + $0x8] sm:$0xff]
      %v4046 = vld [vmem:[%s2088 + $0x10] sm:$0xff]
      %v4047 = vld [vmem:[%s2088 + $0x18] sm:$0xff]
      %v4048 = vld [vmem:[%s2088 + $0x20] sm:$0xff]
      %v4049 = vld [vmem:[%s2088 + $0x28] sm:$0xff]
      %v4050 = vld [vmem:[%s2088 + $0x30] sm:$0xff]
      %v4051 = vld [vmem:[%s2088 + $0x38] sm:$0xff]
      %v4052 = vld [vmem:[%s2088 + $0x40] sm:$0xff]
      %v4053 = vld [vmem:[%s2088 + $0x48] sm:$0xff]
      %v4054 = vld [vmem:[%s2088 + $0x50] sm:$0xff]
      %v4055 = vld [vmem:[%s2088 + $0x58] sm:$0xff]
      %v4056 = vld [vmem:[%s2088 + $0x60] sm:$0xff]
      %v4057 = vld [vmem:[%s2088 + $0x68] sm:$0xff]
      %v4058 = vld [vmem:[%s2088 + $0x70] sm:$0xff]
      %v4059 = vld [vmem:[%s2088 + $0x78] sm:$0xff]
      %v4060 = vld [vmem:[%s2088 + $0x80] sm:$0xff]
      %v4061 = vld [vmem:[%s2088 + $0x88] sm:$0xff]
      %v4062 = vld [vmem:[%s2088 + $0x90] sm:$0xff]
      %v4063 = vld [vmem:[%s2088 + $0x98] sm:$0xff]
      %v4064 = vld [vmem:[%s2088 + $0xa0] sm:$0xf]
      %v4065 = vld [vmem:[%s2088 + $0xa8] sm:$0xf]
      %v4066 = vrot.slane %v3587, 4
      %v4067 = vrot.slane %v3588, 4
      %v4068 = vsel %vm1153, %v4066, %v4067
      %v4069 = vsel %vm1679, %v4068, 0
      %v4071 = vsel %vm1679, %v4067, 0
      %v4074 = vsel %vm1153, %v4064, 0
      %v4077 = vsel %vm1153, %v4065, 0
      %4079 = vmatprep.subr.mxu0 %v4045
      %4080 = vmatpush1.msra.mxu0 %v4044
      %4081 = vmatprep.subr.mxu0 %v4047
      %4082 = vmatpush1.msra.mxu0 %v4046
      %4083 = vmatprep.subr.mxu0 %v4049
      %4084 = vmatpush1.msra.mxu0 %v4048
      %4085 = vmatprep.subr.mxu0 %v4051
      %4086 = vmatpush1.msra.mxu0 %v4050
      %4087 = vmatprep.subr.mxu0 %v4053
      %4088 = vmatpush1.msra.mxu0 %v4052
      %4089 = vmatprep.subr.mxu0 %v4055
      %4090 = vmatpush1.msra.mxu0 %v4054
      %4091 = vmatprep.subr.mxu0 %v4057
      %4092 = vmatpush1.msra.mxu0 %v4056
      %4093 = vmatprep.subr.mxu0 %v4059
      %4094 = vmatpush1.msra.mxu0 %v4058
      %4095 = vmatprep.subr.mxu0 %v4061
      %4096 = vmatpush1.msra.mxu0 %v4060
      %4097 = vmatprep.subr.mxu0 %v4063
      %4098 = vmatpush1.msra.mxu0 %v4062
      %4099 = vmatprep.subr.mxu0 %v4077
      %4100 = vmatpush1.msra.mxu0 %v4074
      %4101 = vmatprep.subr.mxu0 0.0
      %4102 = vmatpush1.msra.mxu0 0.0
      %4103 = vmatprep.subr.mxu0 0.0
      %4104 = vmatpush1.msra.mxu0 0.0
      %4105 = vmatprep.subr.mxu0 0.0
      %4106 = vmatpush1.msra.mxu0 0.0
      %4107 = vmatprep.subr.mxu0 0.0
      %4108 = vmatpush1.msra.mxu0 0.0
      %4109 = vmatprep.subr.mxu0 0.0
      %4110 = vmatpush1.msra.mxu0 0.0
      %4111 = vmatprep.subr.mxu0 0.0
      %4112 = vmatpush1.msra.mxu0 0.0
      %4113 = vmatprep.subr.mxu0 0.0
      %4114 = vmatpush1.msra.mxu0 0.0
      %4115 = vmatprep.subr.mxu0 0.0
      %4116 = vmatpush1.msra.mxu0 0.0
      %4117 = vmatprep.subr.mxu0 0.0
      %4118 = vmatpush1.msra.mxu0 0.0
      %4119 = vmatprep.subr.mxu0 0.0
      %4120 = vmatpush1.msra.mxu0 0.0
      %4121 = vmatprep.subr.mxu0 0.0
      %4122 = vmatpush1.msra.mxu0 0.0
      %4123 = vmatprep.subr.mxu0 0.0
      %4124 = vmatpush1.msra.mxu0 0.0
      %4125 = vmatprep.subr.mxu0 0.0
      %4126 = vmatpush1.msra.mxu0 0.0
      %4127 = vmatprep.subr.mxu0 0.0
      %4128 = vmatpush1.msra.mxu0 0.0
      %4129 = vmatprep.subr.mxu0 0.0
      %4130 = vmatpush1.msra.mxu0 0.0
      %4131 = vmatprep.subr.mxu0 0.0
      %4132 = vmatpush1.msra.mxu0 0.0
      %4133 = vmatprep.subr.mxu0 0.0
      %4134 = vmatpush1.msra.mxu0 0.0
      %4135 = vmatprep.subr.mxu0 0.0
      %4136 = vmatpush1.msra.mxu0 0.0
      %4137 = vmatprep.subr.mxu0 0.0
      %4138 = vmatpush1.msra.mxu0 0.0
      %4139 = vmatprep.subr.mxu0 0.0
      %4140 = vmatpush1.msra.mxu0 0.0
      %4141 = vmatprep.subr.mxu0 0.0
      %4142 = vmatpush1.msra.mxu0 0.0
      %4143 = vmatprep.mubr.f32.mxu0 0.0
      %4144 = vmatmul.mubr.f32.gmra.mrb[0].mxu0 %v4069
      %v4145 = vpop.f32.mrb[0].mxu0
      %v4146 = vadd.f32 0.0, %v4145
      %v4147 = vpop.f32.mrb[0].mxu0
      %v4148 = vadd.f32 0.0, %v4147
      %4149 = vmatprep.mubr.f32.mxu0 0.0
      %4150 = vmatmul.mubr.f32.gmra.mrb[0].mxu0 %v4071
      %v4151 = vpop.f32.mrb[0].mxu0
      %v4152 = vadd.f32 0.0, %v4151
      %v4153 = vpop.f32.mrb[0].mxu0
      %v4154 = vadd.f32 0.0, %v4153
      %4155 = vdwg.mxu0
      %v4156 = vadd.f32 %v4040, %v4146
      %v4157 = vadd.f32 %v4041, %v4148
      %v4158 = vadd.f32 %v4042, %v4152
      %v4159 = vadd.f32 %v4043, %v4154
      %v4160 = vadd.f32 %v4156, %v2209
      %v4161 = vadd.f32 %v4157, %v2213
      %v4162 = vadd.f32 %v4158, %v2209
      %v4163 = vadd.f32 %v4159, %v2213
      %v4164 = vmax.f32 %v4160, 0.0
      %v4165 = vmax.f32 %v4161, 0.0
      %v4166 = vmax.f32 %v4162, 0.0
      %v4167 = vmax.f32 %v4163, 0.0
      %v4169 = vsel %vm2228, %v4166, 0
      %v4172 = vsel %vm2228, %v4167, 0
      %4174 = vmatprep.subr.mxu0 %v4165
      %4175 = vmatpush1.msra.mxu0 %v4164
      %4176 = vmatprep.subr.mxu0 %v4172
      %4177 = vmatpush1.msra.mxu0 %v4169
      %4178 = vmatprep.subr.mxu0 0.0
      %4179 = vmatpush1.msra.mxu0 0.0
      %4180 = vmatprep.subr.mxu0 0.0
      %4181 = vmatpush1.msra.mxu0 0.0
      %4182 = vmatprep.subr.mxu0 0.0
      %4183 = vmatpush1.msra.mxu0 0.0
      %4184 = vmatprep.subr.mxu0 0.0
      %4185 = vmatpush1.msra.mxu0 0.0
      %4186 = vmatprep.subr.mxu0 0.0
      %4187 = vmatpush1.msra.mxu0 0.0
      %4188 = vmatprep.subr.mxu0 0.0
      %4189 = vmatpush1.msra.mxu0 0.0
      %4190 = vmatprep.subr.mxu0 0.0
      %4191 = vmatpush1.msra.mxu0 0.0
      %4192 = vmatprep.subr.mxu0 0.0
      %4193 = vmatpush1.msra.mxu0 0.0
      %4194 = vmatprep.subr.mxu0 0.0
      %4195 = vmatpush1.msra.mxu0 0.0
      %4196 = vmatprep.subr.mxu0 0.0
      %4197 = vmatpush1.msra.mxu0 0.0
      %4198 = vmatprep.subr.mxu0 0.0
      %4199 = vmatpush1.msra.mxu0 0.0
      %4200 = vmatprep.subr.mxu0 0.0
      %4201 = vmatpush1.msra.mxu0 0.0
      %4202 = vmatprep.subr.mxu0 0.0
      %4203 = vmatpush1.msra.mxu0 0.0
      %4204 = vmatprep.subr.mxu0 0.0
      %4205 = vmatpush1.msra.mxu0 0.0
      %4206 = vmatprep.subr.mxu0 0.0
      %4207 = vmatpush1.msra.mxu0 0.0
      %4208 = vmatprep.subr.mxu0 0.0
      %4209 = vmatpush1.msra.mxu0 0.0
      %4210 = vmatprep.subr.mxu0 0.0
      %4211 = vmatpush1.msra.mxu0 0.0
      %4212 = vmatprep.subr.mxu0 0.0
      %4213 = vmatpush1.msra.mxu0 0.0
      %4214 = vmatprep.subr.mxu0 0.0
      %4215 = vmatpush1.msra.mxu0 0.0
      %4216 = vmatprep.subr.mxu0 0.0
      %4217 = vmatpush1.msra.mxu0 0.0
      %4218 = vmatprep.subr.mxu0 0.0
      %4219 = vmatpush1.msra.mxu0 0.0
      %4220 = vmatprep.subr.mxu0 0.0
      %4221 = vmatpush1.msra.mxu0 0.0
      %4222 = vmatprep.subr.mxu0 0.0
      %4223 = vmatpush1.msra.mxu0 0.0
      %4224 = vmatprep.subr.mxu0 0.0
      %4225 = vmatpush1.msra.mxu0 0.0
      %4226 = vmatprep.subr.mxu0 0.0
      %4227 = vmatpush1.msra.mxu0 0.0
      %4228 = vmatprep.subr.mxu0 0.0
      %4229 = vmatpush1.msra.mxu0 0.0
      %4230 = vmatprep.subr.mxu0 0.0
      %4231 = vmatpush1.msra.mxu0 0.0
      %4232 = vmatprep.subr.mxu0 0.0
      %4233 = vmatpush1.msra.mxu0 0.0
      %4234 = vmatprep.subr.mxu0 0.0
      %4235 = vmatpush1.msra.mxu0 0.0
      %4236 = vmatprep.subr.mxu0 0.0
      %4237 = vmatpush1.msra.mxu0 0.0
      %4238 = vmatprep.mubr.f32.mxu0 0.0
      %4239 = vmatmul.mubr.f32.gmra.mrb[0].mxu0 %v2226
      %v4240 = vpop.f32.mrb[0].mxu0
      %v4241 = vadd.f32 0.0, %v4240
      %v4242 = vpop.f32.mrb[0].mxu0
      %v4243 = vadd.f32 0.0, %v4242
      %4244 = vdwg.mxu0
      %4245 = vmatprep.subr.mxu0 %v4165
      %4246 = vmatpush1.msra.mxu0 %v4164
      %4247 = vmatprep.subr.mxu0 %v4172
      %4248 = vmatpush1.msra.mxu0 %v4169
      %4249 = vmatprep.subr.mxu0 0.0
      %4250 = vmatpush1.msra.mxu0 0.0
      %4251 = vmatprep.subr.mxu0 0.0
      %4252 = vmatpush1.msra.mxu0 0.0
      %4253 = vmatprep.subr.mxu0 0.0
      %4254 = vmatpush1.msra.mxu0 0.0
      %4255 = vmatprep.subr.mxu0 0.0
      %4256 = vmatpush1.msra.mxu0 0.0
      %4257 = vmatprep.subr.mxu0 0.0
      %4258 = vmatpush1.msra.mxu0 0.0
      %4259 = vmatprep.subr.mxu0 0.0
      %4260 = vmatpush1.msra.mxu0 0.0
      %4261 = vmatprep.subr.mxu0 0.0
      %4262 = vmatpush1.msra.mxu0 0.0
      %4263 = vmatprep.subr.mxu0 0.0
      %4264 = vmatpush1.msra.mxu0 0.0
      %4265 = vmatprep.subr.mxu0 0.0
      %4266 = vmatpush1.msra.mxu0 0.0
      %4267 = vmatprep.subr.mxu0 0.0
      %4268 = vmatpush1.msra.mxu0 0.0
      %4269 = vmatprep.subr.mxu0 0.0
      %4270 = vmatpush1.msra.mxu0 0.0
      %4271 = vmatprep.subr.mxu0 0.0
      %4272 = vmatpush1.msra.mxu0 0.0
      %4273 = vmatprep.subr.mxu0 0.0
      %4274 = vmatpush1.msra.mxu0 0.0
      %4275 = vmatprep.subr.mxu0 0.0
      %4276 = vmatpush1.msra.mxu0 0.0
      %4277 = vmatprep.subr.mxu0 0.0
      %4278 = vmatpush1.msra.mxu0 0.0
      %4279 = vmatprep.subr.mxu0 0.0
      %4280 = vmatpush1.msra.mxu0 0.0
      %4281 = vmatprep.subr.mxu0 0.0
      %4282 = vmatpush1.msra.mxu0 0.0
      %4283 = vmatprep.subr.mxu0 0.0
      %4284 = vmatpush1.msra.mxu0 0.0
      %4285 = vmatprep.subr.mxu0 0.0
      %4286 = vmatpush1.msra.mxu0 0.0
      %4287 = vmatprep.subr.mxu0 0.0
      %4288 = vmatpush1.msra.mxu0 0.0
      %4289 = vmatprep.subr.mxu0 0.0
      %4290 = vmatpush1.msra.mxu0 0.0
      %4291 = vmatprep.subr.mxu0 0.0
      %4292 = vmatpush1.msra.mxu0 0.0
      %4293 = vmatprep.subr.mxu0 0.0
      %4294 = vmatpush1.msra.mxu0 0.0
      %4295 = vmatprep.subr.mxu0 0.0
      %4296 = vmatpush1.msra.mxu0 0.0
      %4297 = vmatprep.subr.mxu0 0.0
      %4298 = vmatpush1.msra.mxu0 0.0
      %4299 = vmatprep.subr.mxu0 0.0
      %4300 = vmatpush1.msra.mxu0 0.0
      %4301 = vmatprep.subr.mxu0 0.0
      %4302 = vmatpush1.msra.mxu0 0.0
      %4303 = vmatprep.subr.mxu0 0.0
      %4304 = vmatpush1.msra.mxu0 0.0
      %4305 = vmatprep.subr.mxu0 0.0
      %4306 = vmatpush1.msra.mxu0 0.0
      %4307 = vmatprep.subr.mxu0 0.0
      %4308 = vmatpush1.msra.mxu0 0.0
      %4309 = vmatprep.mubr.f32.mxu0 0.0
      %4310 = vmatmul.mubr.f32.gmra.mrb[0].mxu0 %v2307
      %v4311 = vpop.f32.mrb[0].mxu0
      %v4312 = vadd.f32 0.0, %v4311
      %v4313 = vpop.f32.mrb[0].mxu0
      %v4314 = vadd.f32 0.0, %v4313
      %4315 = vdwg.mxu0
      %v4316 = vmax.f32 %v4241, %v4312
      %v4317 = vmax.f32 %v4243, %v4314
      %v4319 = vsel %vm2382, %v4317, 0
      %4321 = vmatprep.subr.mxu0 0.0
      %4322 = vmatpush1.msra.mxu0 %v551
      %4323 = vmatprep.subr.mxu0 0.0
      %4324 = vmatpush1.msra.mxu0 %v552
      %4325 = vmatprep.subr.mxu0 0.0
      %4326 = vmatpush1.msra.mxu0 %v553
      %4327 = vmatprep.subr.mxu0 0.0
      %4328 = vmatpush1.msra.mxu0 %v554
      %4329 = vmatprep.subr.mxu0 0.0
      %4330 = vmatpush1.msra.mxu0 %v555
      %4331 = vmatprep.subr.mxu0 0.0
      %4332 = vmatpush1.msra.mxu0 %v556
      %4333 = vmatprep.subr.mxu0 0.0
      %4334 = vmatpush1.msra.mxu0 %v557
      %4335 = vmatprep.subr.mxu0 0.0
      %4336 = vmatpush1.msra.mxu0 %v558
      %4337 = vmatprep.subr.mxu0 0.0
      %4338 = vmatpush1.msra.mxu0 %v559
      %4339 = vmatprep.subr.mxu0 0.0
      %4340 = vmatpush1.msra.mxu0 %v560
      %4341 = vmatprep.subr.mxu0 0.0
      %4342 = vmatpush1.msra.mxu0 %v561
      %4343 = vmatprep.subr.mxu0 0.0
      %4344 = vmatpush1.msra.mxu0 %v562
      %4345 = vmatprep.subr.mxu0 0.0
      %4346 = vmatpush1.msra.mxu0 %v563
      %4347 = vmatprep.subr.mxu0 0.0
      %4348 = vmatpush1.msra.mxu0 %v564
      %4349 = vmatprep.subr.mxu0 0.0
      %4350 = vmatpush1.msra.mxu0 %v565
      %4351 = vmatprep.subr.mxu0 0.0
      %4352 = vmatpush1.msra.mxu0 %v566
      %4353 = vmatprep.subr.mxu0 0.0
      %4354 = vmatpush1.msra.mxu0 %v567
      %4355 = vmatprep.subr.mxu0 0.0
      %4356 = vmatpush1.msra.mxu0 %v568
      %4357 = vmatprep.subr.mxu0 0.0
      %4358 = vmatpush1.msra.mxu0 %v569
      %4359 = vmatprep.subr.mxu0 0.0
      %4360 = vmatpush1.msra.mxu0 %v570
      %4361 = vmatprep.subr.mxu0 0.0
      %4362 = vmatpush1.msra.mxu0 0.0
      %4363 = vmatprep.subr.mxu0 0.0
      %4364 = vmatpush1.msra.mxu0 0.0
      %4365 = vmatprep.subr.mxu0 0.0
      %4366 = vmatpush1.msra.mxu0 0.0
      %4367 = vmatprep.subr.mxu0 0.0
      %4368 = vmatpush1.msra.mxu0 0.0
      %4369 = vmatprep.subr.mxu0 0.0
      %4370 = vmatpush1.msra.mxu0 0.0
      %4371 = vmatprep.subr.mxu0 0.0
      %4372 = vmatpush1.msra.mxu0 0.0
      %4373 = vmatprep.subr.mxu0 0.0
      %4374 = vmatpush1.msra.mxu0 0.0
      %4375 = vmatprep.subr.mxu0 0.0
      %4376 = vmatpush1.msra.mxu0 0.0
      %4377 = vmatprep.subr.mxu0 0.0
      %4378 = vmatpush1.msra.mxu0 0.0
      %4379 = vmatprep.subr.mxu0 0.0
      %4380 = vmatpush1.msra.mxu0 0.0
      %4381 = vmatprep.subr.mxu0 0.0
      %4382 = vmatpush1.msra.mxu0 0.0
      %4383 = vmatprep.subr.mxu0 0.0
      %4384 = vmatpush1.msra.mxu0 0.0
      %4385 = vmatprep.mubr.f32.mxu0 %v4319
      %4386 = vmatmul.mubr.f32.gmra.mrb[0].mxu0 %v4316
      %v4387 = vpop.f32.mrb[0].mxu0
      %v4388 = vadd.f32 0.0, %v4387
      %v4389 = vpop.f32.mrb[0].mxu0
      %4390 = vdwg.mxu0
      %4391 = vmatprep.subr.mxu0 0.0
      %4392 = vmatpush1.msra.mxu0 %v572
      %4393 = vmatprep.subr.mxu0 0.0
      %4394 = vmatpush1.msra.mxu0 %v573
      %4395 = vmatprep.subr.mxu0 0.0
      %4396 = vmatpush1.msra.mxu0 %v574
      %4397 = vmatprep.subr.mxu0 0.0
      %4398 = vmatpush1.msra.mxu0 %v575
      %4399 = vmatprep.subr.mxu0 0.0
      %4400 = vmatpush1.msra.mxu0 %v576
      %4401 = vmatprep.subr.mxu0 0.0
      %4402 = vmatpush1.msra.mxu0 %v577
      %4403 = vmatprep.subr.mxu0 0.0
      %4404 = vmatpush1.msra.mxu0 %v578
      %4405 = vmatprep.subr.mxu0 0.0
      %4406 = vmatpush1.msra.mxu0 %v579
      %4407 = vmatprep.subr.mxu0 0.0
      %4408 = vmatpush1.msra.mxu0 %v580
      %4409 = vmatprep.subr.mxu0 0.0
      %4410 = vmatpush1.msra.mxu0 %v581
      %4411 = vmatprep.subr.mxu0 0.0
      %4412 = vmatpush1.msra.mxu0 %v582
      %4413 = vmatprep.subr.mxu0 0.0
      %4414 = vmatpush1.msra.mxu0 %v583
      %4415 = vmatprep.subr.mxu0 0.0
      %4416 = vmatpush1.msra.mxu0 %v584
      %4417 = vmatprep.subr.mxu0 0.0
      %4418 = vmatpush1.msra.mxu0 %v585
      %4419 = vmatprep.subr.mxu0 0.0
      %4420 = vmatpush1.msra.mxu0 %v586
      %4421 = vmatprep.subr.mxu0 0.0
      %4422 = vmatpush1.msra.mxu0 %v587
      %4423 = vmatprep.subr.mxu0 0.0
      %4424 = vmatpush1.msra.mxu0 %v588
      %4425 = vmatprep.subr.mxu0 0.0
      %4426 = vmatpush1.msra.mxu0 %v589
      %4427 = vmatprep.subr.mxu0 0.0
      %4428 = vmatpush1.msra.mxu0 %v590
      %4429 = vmatprep.subr.mxu0 0.0
      %4430 = vmatpush1.msra.mxu0 %v591
      %4431 = vmatprep.subr.mxu0 0.0
      %4432 = vmatpush1.msra.mxu0 0.0
      %4433 = vmatprep.subr.mxu0 0.0
      %4434 = vmatpush1.msra.mxu0 0.0
      %4435 = vmatprep.subr.mxu0 0.0
      %4436 = vmatpush1.msra.mxu0 0.0
      %4437 = vmatprep.subr.mxu0 0.0
      %4438 = vmatpush1.msra.mxu0 0.0
      %4439 = vmatprep.subr.mxu0 0.0
      %4440 = vmatpush1.msra.mxu0 0.0
      %4441 = vmatprep.subr.mxu0 0.0
      %4442 = vmatpush1.msra.mxu0 0.0
      %4443 = vmatprep.subr.mxu0 0.0
      %4444 = vmatpush1.msra.mxu0 0.0
      %4445 = vmatprep.subr.mxu0 0.0
      %4446 = vmatpush1.msra.mxu0 0.0
      %4447 = vmatprep.subr.mxu0 0.0
      %4448 = vmatpush1.msra.mxu0 0.0
      %4449 = vmatprep.subr.mxu0 0.0
      %4450 = vmatpush1.msra.mxu0 0.0
      %4451 = vmatprep.subr.mxu0 0.0
      %4452 = vmatpush1.msra.mxu0 0.0
      %4453 = vmatprep.subr.mxu0 0.0
      %4454 = vmatpush1.msra.mxu0 0.0
      %4455 = vmatprep.mubr.f32.mxu0 %v4319
      %4456 = vmatmul.mubr.f32.gmra.mrb[0].mxu0 %v4316
      %v4457 = vpop.f32.mrb[0].mxu0
      %v4458 = vadd.f32 0.0, %v4457
      %v4459 = vpop.f32.mrb[0].mxu0
      %4460 = vdwg.mxu0
      %v4461 = vmax.f32 %v4388, %v4458
      %4462 = vst.msk [vmem:[#allocation2 + $0x1] sm:$0x1] %vm2527, %v4461
      %v4465 = vunpack.c.l.s4 1983009808
      %v4466 = vunpack.c.0.s8 %v4465
      %v4467 = vlaneseq
      %v4468 = vshrl.u32 %v4467, 7
      %v4469 = vsub.s32 %v4466, %v4468
      %v4470 = vrot.slane %v4461, %v4469
      %v4471 = vrot.slane %v4470, 7
      %v4472 = vrot.slane %v4471, 2
      %4473 = vrot.lane.b32.xlu0 %v4472, 80
      %v4474 = vpop.permute.xlu0 %4473
      %v4475 = vrot.slane %v4474, 6
      %v4476 = vsel %vm2542, %v4475, %v4474
      %4478 = vst.msk [vmem:[#allocation2 + $0x1] sm:$0x5] %vm2547, %v4476
      %v4479 = vcombine.high %v4470, %v4470
      %4480 = vrot.lane.b32.xlu0 %v4479, 32
      %v4481 = vpop.permute.xlu0 %4480
      %4483 = vst.msk [vmem:[#allocation2 + $0x3] sm:$0x1] %vm2553, %v4481
      %v4484 = vrot.slane %v4479, 7
      %v4485 = vrot.slane %v4484, 2
      %4486 = vrot.lane.b32.xlu0 %v4485, 112
      %v4487 = vpop.permute.xlu0 %4486
      %v4488 = vrot.slane %v4487, 6
      %v4489 = vsel %vm2560, %v4488, %v4487
      %4491 = vst.msk [vmem:[#allocation2 + $0x3] sm:$0x5] %vm2565, %v4489
      %v4492 = vcombine.high %v4461, %v4461
      %v4494 = vunpack.c.l.s4 1983009808
      %v4495 = vunpack.c.0.s8 %v4494
      %v4496 = vlaneseq
      %v4497 = vshrl.u32 %v4496, 7
      %v4498 = vsub.s32 %v4495, %v4497
      %v4499 = vrot.slane %v4492, %v4498
      %4500 = vrot.lane.b32.xlu0 %v4499, 64
      %v4501 = vpop.permute.xlu0 %4500
      %v4502 = vrot.slane %v4501, 6
      %v4503 = vsel %vm2578, %v4502, %v4501
      %4505 = vst.msk [vmem:[#allocation2 + $0x5] sm:$0x5] %vm2583, %v4503
      %v4506 = vld [vmem:[#allocation2] sm:$0xff]
      %v4507 = vld [vmem:[%s9] sm:$0xff]
      %v4508 = vld [vmem:[%s9 + $0x8] sm:$0xff]
      %v4509 = vld [vmem:[%s9 + $0x10] sm:$0xff]
      %v4510 = vld [vmem:[%s9 + $0x18] sm:$0xff]
      %v4511 = vld [vmem:[%s9 + $0x20] sm:$0xff]
      %v4512 = vld [vmem:[%s9 + $0x28] sm:$0xff]
      %v4513 = vld [vmem:[%s9 + $0x30] sm:$0xff]
      %v4514 = vld [vmem:[%s9 + $0x38] sm:$0xff]
      %v4515 = vld [vmem:[%s9 + $0x40] sm:$0xff]
      %v4516 = vld [vmem:[%s9 + $0x48] sm:$0xff]
      %v4517 = vld [vmem:[%s9 + $0x50] sm:$0xff]
      %v4518 = vld [vmem:[%s9 + $0x58] sm:$0xff]
      %v4519 = vld [vmem:[%s9 + $0x60] sm:$0xff]
      %v4520 = vld [vmem:[%s9 + $0x68] sm:$0xff]
      %v4521 = vld [vmem:[%s9 + $0x70] sm:$0xff]
      %v4522 = vld [vmem:[%s9 + $0x78] sm:$0xff]
      %v4523 = vld [vmem:[%s9 + $0x80] sm:$0xff]
      %v4524 = vld [vmem:[%s9 + $0x88] sm:$0xff]
      %v4525 = vld [vmem:[%s9 + $0x90] sm:$0xff]
      %v4526 = vld [vmem:[%s9 + $0x98] sm:$0xff]
      %v4527 = vld [vmem:[%s9 + $0xa0] sm:$0xff]
      %v4528 = vld [vmem:[%s9 + $0xa8] sm:$0xff]
      %v4529 = vld [vmem:[%s9 + $0xb0] sm:$0xff]
      %v4530 = vld [vmem:[%s9 + $0xb8] sm:$0xff]
      %v4531 = vld [vmem:[%s9 + $0xc0] sm:$0xff]
      %v4532 = vld [vmem:[%s9 + $0xc8] sm:$0xff]
      %v4533 = vld [vmem:[%s9 + $0xd0] sm:$0xff]
      %v4534 = vld [vmem:[%s9 + $0xd8] sm:$0xff]
      %v4535 = vld [vmem:[%s9 + $0xe0] sm:$0xff]
      %v4536 = vld [vmem:[%s9 + $0xe8] sm:$0xff]
      %v4537 = vld [vmem:[%s9 + $0xf0] sm:$0xff]
      %v4538 = vld [vmem:[%s9 + $0xf8] sm:$0xff]
      %v4539 = vld [vmem:[%s9 + $0x100] sm:$0xff]
      %v4540 = vld [vmem:[%s9 + $0x108] sm:$0xff]
      %v4541 = vld [vmem:[%s9 + $0x110] sm:$0xff]
      %v4542 = vld [vmem:[%s9 + $0x118] sm:$0xff]
      %v4543 = vld [vmem:[%s9 + $0x120] sm:$0xff]
      %v4544 = vld [vmem:[%s9 + $0x128] sm:$0xff]
      %v4545 = vld [vmem:[%s9 + $0x130] sm:$0xff]
      %v4546 = vld [vmem:[%s9 + $0x138] sm:$0xff]
      %v4547 = vld [vmem:[%s9 + $0x140] sm:$0xff]
      %v4548 = vld [vmem:[%s9 + $0x148] sm:$0xff]
      %v4549 = vld [vmem:[%s9 + $0x150] sm:$0xff]
      %v4550 = vld [vmem:[%s9 + $0x158] sm:$0xff]
      %v4551 = vld [vmem:[%s9 + $0x160] sm:$0xff]
      %v4552 = vld [vmem:[%s9 + $0x168] sm:$0xff]
      %v4553 = vld [vmem:[%s9 + $0x170] sm:$0xff]
      %v4554 = vld [vmem:[%s9 + $0x178] sm:$0xff]
      %v4555 = vld [vmem:[%s9 + $0x180] sm:$0xff]
      %v4556 = vld [vmem:[%s9 + $0x188] sm:$0xff]
      %v4557 = vld [vmem:[%s10] sm:$0x1]
      %v4559 = vlaneseq
      %v4560 = vshrl.u32 %v4559, 7
      %v4561 = vsub.s32 0, %v4560
      %v4562 = vrot.slane %v4557, %v4561
      %v4565 = vcombine.high %v4506, %v4506
      %v4567 = vunpack.c.l.s4 1983009808
      %v4568 = vunpack.c.0.s8 %v4567
      %v4569 = vlaneseq
      %v4570 = vshrl.u32 %v4569, 7
      %v4571 = vsub.s32 %v4568, %v4570
      %v4572 = vrot.slane %v4506, %v4571
      %v4574 = vunpack.c.l.s4 1983009808
      %v4575 = vunpack.c.0.s8 %v4574
      %v4576 = vlaneseq
      %v4577 = vshrl.u32 %v4576, 7
      %v4578 = vsub.s32 %v4575, %v4577
      %v4579 = vrot.slane %v4565, %v4578
      %v4580 = vcombine.high %v4572, %v4572
      %v4581 = vcombine.high %v4579, %v4579
      %vm4585 = vcmask 130048
      %v4586 = vsel %vm4585, %v4581, 0
      %4588 = vmatprep.subr.mxu0 0.0
      %4589 = vmatpush1.msra.mxu0 %v4507
      %4590 = vmatprep.subr.mxu0 0.0
      %4591 = vmatpush1.msra.mxu0 %v4508
      %4592 = vmatprep.subr.mxu0 0.0
      %4593 = vmatpush1.msra.mxu0 %v4509
      %4594 = vmatprep.subr.mxu0 0.0
      %4595 = vmatpush1.msra.mxu0 %v4510
      %4596 = vmatprep.subr.mxu0 0.0
      %4597 = vmatpush1.msra.mxu0 %v4511
      %4598 = vmatprep.subr.mxu0 0.0
      %4599 = vmatpush1.msra.mxu0 %v4512
      %4600 = vmatprep.subr.mxu0 0.0
      %4601 = vmatpush1.msra.mxu0 %v4513
      %4602 = vmatprep.subr.mxu0 0.0
      %4603 = vmatpush1.msra.mxu0 %v4514
      %4604 = vmatprep.subr.mxu0 0.0
      %4605 = vmatpush1.msra.mxu0 %v4515
      %4606 = vmatprep.subr.mxu0 0.0
      %4607 = vmatpush1.msra.mxu0 %v4516
      %4608 = vmatprep.subr.mxu0 0.0
      %4609 = vmatpush1.msra.mxu0 %v4517
      %4610 = vmatprep.subr.mxu0 0.0
      %4611 = vmatpush1.msra.mxu0 %v4518
      %4612 = vmatprep.subr.mxu0 0.0
      %4613 = vmatpush1.msra.mxu0 %v4519
      %4614 = vmatprep.subr.mxu0 0.0
      %4615 = vmatpush1.msra.mxu0 %v4520
      %4616 = vmatprep.subr.mxu0 0.0
      %4617 = vmatpush1.msra.mxu0 %v4521
      %4618 = vmatprep.subr.mxu0 0.0
      %4619 = vmatpush1.msra.mxu0 %v4522
      %4620 = vmatprep.subr.mxu0 0.0
      %4621 = vmatpush1.msra.mxu0 %v4523
      %4622 = vmatprep.subr.mxu0 0.0
      %4623 = vmatpush1.msra.mxu0 %v4524
      %4624 = vmatprep.subr.mxu0 0.0
      %4625 = vmatpush1.msra.mxu0 %v4525
      %4626 = vmatprep.subr.mxu0 0.0
      %4627 = vmatpush1.msra.mxu0 %v4526
      %4628 = vmatprep.subr.mxu0 0.0
      %4629 = vmatpush1.msra.mxu0 %v4527
      %4630 = vmatprep.subr.mxu0 0.0
      %4631 = vmatpush1.msra.mxu0 %v4528
      %4632 = vmatprep.subr.mxu0 0.0
      %4633 = vmatpush1.msra.mxu0 %v4529
      %4634 = vmatprep.subr.mxu0 0.0
      %4635 = vmatpush1.msra.mxu0 %v4530
      %4636 = vmatprep.subr.mxu0 0.0
      %4637 = vmatpush1.msra.mxu0 %v4531
      %4638 = vmatprep.subr.mxu0 0.0
      %4639 = vmatpush1.msra.mxu0 %v4532
      %4640 = vmatprep.subr.mxu0 0.0
      %4641 = vmatpush1.msra.mxu0 %v4533
      %4642 = vmatprep.subr.mxu0 0.0
      %4643 = vmatpush1.msra.mxu0 %v4534
      %4644 = vmatprep.subr.mxu0 0.0
      %4645 = vmatpush1.msra.mxu0 %v4535
      %4646 = vmatprep.subr.mxu0 0.0
      %4647 = vmatpush1.msra.mxu0 %v4536
      %4648 = vmatprep.subr.mxu0 0.0
      %4649 = vmatpush1.msra.mxu0 %v4537
      %4650 = vmatprep.subr.mxu0 0.0
      %4651 = vmatpush1.msra.mxu0 %v4538
      %4652 = vmatprep.mubr.f32.mxu0 %v4580
      %4653 = vmatmul.mubr.f32.gmra.mrb[0].mxu0 %v4572
      %v4654 = vpop.f32.mrb[0].mxu0
      %v4655 = vadd.f32 %v4562, %v4654
      %v4656 = vpop.f32.mrb[0].mxu0
      %4657 = vdwg.mxu0
      %4658 = vmatprep.subr.mxu0 0.0
      %4659 = vmatpush1.msra.mxu0 %v4539
      %4660 = vmatprep.subr.mxu0 0.0
      %4661 = vmatpush1.msra.mxu0 %v4540
      %4662 = vmatprep.subr.mxu0 0.0
      %4663 = vmatpush1.msra.mxu0 %v4541
      %4664 = vmatprep.subr.mxu0 0.0
      %4665 = vmatpush1.msra.mxu0 %v4542
      %4666 = vmatprep.subr.mxu0 0.0
      %4667 = vmatpush1.msra.mxu0 %v4543
      %4668 = vmatprep.subr.mxu0 0.0
      %4669 = vmatpush1.msra.mxu0 %v4544
      %4670 = vmatprep.subr.mxu0 0.0
      %4671 = vmatpush1.msra.mxu0 %v4545
      %4672 = vmatprep.subr.mxu0 0.0
      %4673 = vmatpush1.msra.mxu0 %v4546
      %4674 = vmatprep.subr.mxu0 0.0
      %4675 = vmatpush1.msra.mxu0 %v4547
      %4676 = vmatprep.subr.mxu0 0.0
      %4677 = vmatpush1.msra.mxu0 %v4548
      %4678 = vmatprep.subr.mxu0 0.0
      %4679 = vmatpush1.msra.mxu0 %v4549
      %4680 = vmatprep.subr.mxu0 0.0
      %4681 = vmatpush1.msra.mxu0 %v4550
      %4682 = vmatprep.subr.mxu0 0.0
      %4683 = vmatpush1.msra.mxu0 %v4551
      %4684 = vmatprep.subr.mxu0 0.0
      %4685 = vmatpush1.msra.mxu0 %v4552
      %4686 = vmatprep.subr.mxu0 0.0
      %4687 = vmatpush1.msra.mxu0 %v4553
      %4688 = vmatprep.subr.mxu0 0.0
      %4689 = vmatpush1.msra.mxu0 %v4554
      %4690 = vmatprep.subr.mxu0 0.0
      %4691 = vmatpush1.msra.mxu0 %v4555
      %4692 = vmatprep.subr.mxu0 0.0
      %4693 = vmatpush1.msra.mxu0 %v4556
      %4694 = vmatprep.subr.mxu0 0.0
      %4695 = vmatpush1.msra.mxu0 0.0
      %4696 = vmatprep.subr.mxu0 0.0
      %4697 = vmatpush1.msra.mxu0 0.0
      %4698 = vmatprep.subr.mxu0 0.0
      %4699 = vmatpush1.msra.mxu0 0.0
      %4700 = vmatprep.subr.mxu0 0.0
      %4701 = vmatpush1.msra.mxu0 0.0
      %4702 = vmatprep.subr.mxu0 0.0
      %4703 = vmatpush1.msra.mxu0 0.0
      %4704 = vmatprep.subr.mxu0 0.0
      %4705 = vmatpush1.msra.mxu0 0.0
      %4706 = vmatprep.subr.mxu0 0.0
      %4707 = vmatpush1.msra.mxu0 0.0
      %4708 = vmatprep.subr.mxu0 0.0
      %4709 = vmatpush1.msra.mxu0 0.0
      %4710 = vmatprep.subr.mxu0 0.0
      %4711 = vmatpush1.msra.mxu0 0.0
      %4712 = vmatprep.subr.mxu0 0.0
      %4713 = vmatpush1.msra.mxu0 0.0
      %4714 = vmatprep.subr.mxu0 0.0
      %4715 = vmatpush1.msra.mxu0 0.0
      %4716 = vmatprep.subr.mxu0 0.0
      %4717 = vmatpush1.msra.mxu0 0.0
      %4718 = vmatprep.subr.mxu0 0.0
      %4719 = vmatpush1.msra.mxu0 0.0
      %4720 = vmatprep.subr.mxu0 0.0
      %4721 = vmatpush1.msra.mxu0 0.0
      %4722 = vmatprep.mubr.f32.mxu0 %v4586
      %4723 = vmatmul.mubr.f32.gmra.mrb[0].mxu0 %v4579
      %v4724 = vpop.f32.mrb[0].mxu0
      %v4725 = vadd.f32 %v4655, %v4724
      %v4726 = vpop.f32.mrb[0].mxu0
      %4727 = vdwg.mxu0
      %v4728 = vmax.f32 %v4725, 0.0
      %v4729 = vld [vmem:[%s11] sm:$0xff]
      %v4730 = vld [vmem:[%s11 + $0x8] sm:$0xff]
      %v4731 = vld [vmem:[%s11 + $0x10] sm:$0xff]
      %v4732 = vld [vmem:[%s11 + $0x18] sm:$0xff]
      %v4733 = vld [vmem:[%s11 + $0x20] sm:$0xff]
      %v4734 = vld [vmem:[%s11 + $0x28] sm:$0xff]
      %v4735 = vld [vmem:[%s11 + $0x30] sm:$0xff]
      %v4736 = vld [vmem:[%s11 + $0x38] sm:$0xff]
      %v4737 = vld [vmem:[%s11 + $0x40] sm:$0xff]
      %v4738 = vld [vmem:[%s11 + $0x48] sm:$0xff]
      %v4739 = vld [vmem:[%s11 + $0x50] sm:$0xff]
      %v4740 = vld [vmem:[%s11 + $0x58] sm:$0xff]
      %v4741 = vld [vmem:[%s11 + $0x60] sm:$0xff]
      %v4742 = vld [vmem:[%s11 + $0x68] sm:$0xff]
      %v4743 = vld [vmem:[%s11 + $0x70] sm:$0xff]
      %v4744 = vld [vmem:[%s12] sm:$0x1]
      %v4746 = vlaneseq
      %v4747 = vshrl.u32 %v4746, 7
      %v4748 = vsub.s32 0, %v4747
      %v4749 = vrot.slane %v4744, %v4748
      %vm4751 = vcmask 982016
      %v4753 = vsel %vm4751, %v4728, 0
      %4755 = vmatprep.subr.mxu0 0.0
      %4756 = vmatpush1.msra.mxu0 %v4729
      %4757 = vmatprep.subr.mxu0 0.0
      %4758 = vmatpush1.msra.mxu0 %v4730
      %4759 = vmatprep.subr.mxu0 0.0
      %4760 = vmatpush1.msra.mxu0 %v4731
      %4761 = vmatprep.subr.mxu0 0.0
      %4762 = vmatpush1.msra.mxu0 %v4732
      %4763 = vmatprep.subr.mxu0 0.0
      %4764 = vmatpush1.msra.mxu0 %v4733
      %4765 = vmatprep.subr.mxu0 0.0
      %4766 = vmatpush1.msra.mxu0 %v4734
      %4767 = vmatprep.subr.mxu0 0.0
      %4768 = vmatpush1.msra.mxu0 %v4735
      %4769 = vmatprep.subr.mxu0 0.0
      %4770 = vmatpush1.msra.mxu0 %v4736
      %4771 = vmatprep.subr.mxu0 0.0
      %4772 = vmatpush1.msra.mxu0 %v4737
      %4773 = vmatprep.subr.mxu0 0.0
      %4774 = vmatpush1.msra.mxu0 %v4738
      %4775 = vmatprep.subr.mxu0 0.0
      %4776 = vmatpush1.msra.mxu0 %v4739
      %4777 = vmatprep.subr.mxu0 0.0
      %4778 = vmatpush1.msra.mxu0 %v4740
      %4779 = vmatprep.subr.mxu0 0.0
      %4780 = vmatpush1.msra.mxu0 %v4741
      %4781 = vmatprep.subr.mxu0 0.0
      %4782 = vmatpush1.msra.mxu0 %v4742
      %4783 = vmatprep.subr.mxu0 0.0
      %4784 = vmatpush1.msra.mxu0 %v4743
      %4785 = vmatprep.subr.mxu0 0.0
      %4786 = vmatpush1.msra.mxu0 0.0
      %4787 = vmatprep.subr.mxu0 0.0
      %4788 = vmatpush1.msra.mxu0 0.0
      %4789 = vmatprep.subr.mxu0 0.0
      %4790 = vmatpush1.msra.mxu0 0.0
      %4791 = vmatprep.subr.mxu0 0.0
      %4792 = vmatpush1.msra.mxu0 0.0
      %4793 = vmatprep.subr.mxu0 0.0
      %4794 = vmatpush1.msra.mxu0 0.0
      %4795 = vmatprep.subr.mxu0 0.0
      %4796 = vmatpush1.msra.mxu0 0.0
      %4797 = vmatprep.subr.mxu0 0.0
      %4798 = vmatpush1.msra.mxu0 0.0
      %4799 = vmatprep.subr.mxu0 0.0
      %4800 = vmatpush1.msra.mxu0 0.0
      %4801 = vmatprep.subr.mxu0 0.0
      %4802 = vmatpush1.msra.mxu0 0.0
      %4803 = vmatprep.subr.mxu0 0.0
      %4804 = vmatpush1.msra.mxu0 0.0
      %4805 = vmatprep.subr.mxu0 0.0
      %4806 = vmatpush1.msra.mxu0 0.0
      %4807 = vmatprep.subr.mxu0 0.0
      %4808 = vmatpush1.msra.mxu0 0.0
      %4809 = vmatprep.subr.mxu0 0.0
      %4810 = vmatpush1.msra.mxu0 0.0
      %4811 = vmatprep.subr.mxu0 0.0
      %4812 = vmatpush1.msra.mxu0 0.0
      %4813 = vmatprep.subr.mxu0 0.0
      %4814 = vmatpush1.msra.mxu0 0.0
      %4815 = vmatprep.subr.mxu0 0.0
      %4816 = vmatpush1.msra.mxu0 0.0
      %4817 = vmatprep.subr.mxu0 0.0
      %4818 = vmatpush1.msra.mxu0 0.0
      %4819 = vmatprep.mubr.f32.mxu0 0.0
      %4820 = vmatmul.mubr.f32.gmra.mrb[0].mxu0 %v4753
      %v4821 = vpop.f32.mrb[0].mxu0
      %v4822 = vadd.f32 %v4749, %v4821
      %v4823 = vpop.f32.mrb[0].mxu0
      %4824 = vdwg.mxu0
      %v4825 = vmax.f32 %v4822, 0.0
      %v4826 = vld [vmem:[%s13] sm:$0xff]
      %v4827 = vld [vmem:[%s13 + $0x8] sm:$0xff]
      %v4828 = vld [vmem:[%s13 + $0x10] sm:$0xff]
      %v4829 = vld [vmem:[%s13 + $0x18] sm:$0xff]
      %v4830 = vld [vmem:[%s13 + $0x20] sm:$0xff]
      %v4831 = vld [vmem:[%s13 + $0x28] sm:$0xff]
      %v4832 = vld [vmem:[%s13 + $0x30] sm:$0xff]
      %v4833 = vld [vmem:[%s13 + $0x38] sm:$0xff]
      %v4834 = vld [vmem:[%s13 + $0x40] sm:$0xff]
      %v4835 = vld [vmem:[%s13 + $0x48] sm:$0xff]
      %v4836 = vld [vmem:[%s13 + $0x50] sm:$0xf]
      %v4837 = vld [vmem:[%s14] sm:$0x1]
      %v4839 = vlaneseq
      %v4840 = vshrl.u32 %v4839, 7
      %v4841 = vsub.s32 0, %v4840
      %v4842 = vrot.slane %v4837, %v4841
      %v4845 = vsel %vm1679, %v4825, 0
      %v4848 = vsel %vm1153, %v4836, 0
      %4850 = vmatprep.subr.mxu0 0.0
      %4851 = vmatpush1.msra.mxu0 %v4826
      %4852 = vmatprep.subr.mxu0 0.0
      %4853 = vmatpush1.msra.mxu0 %v4827
      %4854 = vmatprep.subr.mxu0 0.0
      %4855 = vmatpush1.msra.mxu0 %v4828
      %4856 = vmatprep.subr.mxu0 0.0
      %4857 = vmatpush1.msra.mxu0 %v4829
      %4858 = vmatprep.subr.mxu0 0.0
      %4859 = vmatpush1.msra.mxu0 %v4830
      %4860 = vmatprep.subr.mxu0 0.0
      %4861 = vmatpush1.msra.mxu0 %v4831
      %4862 = vmatprep.subr.mxu0 0.0
      %4863 = vmatpush1.msra.mxu0 %v4832
      %4864 = vmatprep.subr.mxu0 0.0
      %4865 = vmatpush1.msra.mxu0 %v4833
      %4866 = vmatprep.subr.mxu0 0.0
      %4867 = vmatpush1.msra.mxu0 %v4834
      %4868 = vmatprep.subr.mxu0 0.0
      %4869 = vmatpush1.msra.mxu0 %v4835
      %4870 = vmatprep.subr.mxu0 0.0
      %4871 = vmatpush1.msra.mxu0 %v4848
      %4872 = vmatprep.subr.mxu0 0.0
      %4873 = vmatpush1.msra.mxu0 0.0
      %4874 = vmatprep.subr.mxu0 0.0
      %4875 = vmatpush1.msra.mxu0 0.0
      %4876 = vmatprep.subr.mxu0 0.0
      %4877 = vmatpush1.msra.mxu0 0.0
      %4878 = vmatprep.subr.mxu0 0.0
      %4879 = vmatpush1.msra.mxu0 0.0
      %4880 = vmatprep.subr.mxu0 0.0
      %4881 = vmatpush1.msra.mxu0 0.0
      %4882 = vmatprep.subr.mxu0 0.0
      %4883 = vmatpush1.msra.mxu0 0.0
      %4884 = vmatprep.subr.mxu0 0.0
      %4885 = vmatpush1.msra.mxu0 0.0
      %4886 = vmatprep.subr.mxu0 0.0
      %4887 = vmatpush1.msra.mxu0 0.0
      %4888 = vmatprep.subr.mxu0 0.0
      %4889 = vmatpush1.msra.mxu0 0.0
      %4890 = vmatprep.subr.mxu0 0.0
      %4891 = vmatpush1.msra.mxu0 0.0
      %4892 = vmatprep.subr.mxu0 0.0
      %4893 = vmatpush1.msra.mxu0 0.0
      %4894 = vmatprep.subr.mxu0 0.0
      %4895 = vmatpush1.msra.mxu0 0.0
      %4896 = vmatprep.subr.mxu0 0.0
      %4897 = vmatpush1.msra.mxu0 0.0
      %4898 = vmatprep.subr.mxu0 0.0
      %4899 = vmatpush1.msra.mxu0 0.0
      %4900 = vmatprep.subr.mxu0 0.0
      %4901 = vmatpush1.msra.mxu0 0.0
      %4902 = vmatprep.subr.mxu0 0.0
      %4903 = vmatpush1.msra.mxu0 0.0
      %4904 = vmatprep.subr.mxu0 0.0
      %4905 = vmatpush1.msra.mxu0 0.0
      %4906 = vmatprep.subr.mxu0 0.0
      %4907 = vmatpush1.msra.mxu0 0.0
      %4908 = vmatprep.subr.mxu0 0.0
      %4909 = vmatpush1.msra.mxu0 0.0
      %4910 = vmatprep.subr.mxu0 0.0
      %4911 = vmatpush1.msra.mxu0 0.0
      %4912 = vmatprep.subr.mxu0 0.0
      %4913 = vmatpush1.msra.mxu0 0.0
      %4914 = vmatprep.mubr.f32.mxu0 0.0
      %4915 = vmatmul.mubr.f32.gmra.mrb[0].mxu0 %v4845
      %v4916 = vpop.f32.mrb[0].mxu0
      %v4917 = vadd.f32 %v4842, %v4916
      %v4918 = vpop.f32.mrb[0].mxu0
      %4919 = vdwg.mxu0
      %vm4920 = vcmask 9216
      %4921 = vst.msk [vmem:[%s497] sm:$0x3] %vm4920, %v4917
      %p4922 = scmp.lt.s32.totalorder %s26, 1
      %s4923 = scalar_select %p4922, %s26, 1
      %s4924 = smul.addr %s4923, 2
      %s4925 = scalar_lea.vmem %s15, %s4924
      // Predicated region
      $region81: #{net_forward.1} parent=79 // pred_check
        %p4926 = pneg %p364
      $region82: #{net_forward.1} parent=79 // pred_check_branch
        %4928 = sbr.rel (%p4926) target = $region84
      $region83: #{net_forward.1} parent=79 // pred_region
        _
      $region84: #{net_forward.1} parent=79 // pred_fallthru
        _
    $region80: #{net_forward.1} parent=5 // pred_fallthru
      _
    %p4929 = scmp.le.s32.totalorder 2, %s21
    // Predicated region
    $region85: #{net_forward.1} parent=5 // pred_check
      %p4930 = pneg %p4929
    $region86: #{net_forward.1} parent=5 // pred_check_branch
      %4932 = sbr.rel (%p4930) target = $region88
    $region87: #{net_forward.1} parent=5 // pred_region
      %s4933 = ssub.s32 %s21, 2
      // Predicated region
      $region89: #{net_forward.1} parent=87 // pred_check
        %p4934 = pneg %p370
      $region90: #{net_forward.1} parent=87 // pred_check_branch
        %4936 = sbr.rel (%p4934) target = $region92
      $region91: #{net_forward.1} parent=87 // pred_region
        %p4937 = scmp.lt.s32.totalorder %s27, 1
        %s4938 = scalar_select %p4937, %s27, 1
        %s4939 = smul.addr %s4938, 2
        %s4940 = scalar_lea.vmem %s15, %s4939
      $region92: #{net_forward.1} parent=87 // pred_fallthru
        _
    $region88: #{net_forward.1} parent=5 // pred_fallthru
      _
  $region6: #{net_forward.1} parent=0 // loop_footer
    %s25 = sadd.s32 1, %s21
  $region7: #{net_forward.1} parent=0 // loop_footer_branch
    %20 = sbr.rel target = $region3
  $region8: #{net_forward.1} parent=0 // loop_exit
    _

</llo_original>
